<compile_context>
chip_gen: v7x
topology: tpu7x:2x2x1
jax: 0.10.0
libtpu: 0.0.40
codegen_flags: <defaults>
</compile_context>

<pallas_src>
import math
import functools

import jax
import jax.numpy as jnp
from jax import lax
from jax.experimental import pallas as pl
from jax.experimental.pallas import tpu as pltpu


# ----------------------------------------------------------------------------
# small helpers
# ----------------------------------------------------------------------------

def _round_up(x, m):
    return ((x + m - 1) // m) * m


def _row_tile(M):
    """Row (token) tile: biggest that is reasonable, sublane-aligned to 16."""
    if M <= 256:
        return _round_up(M, 16)
    if M < 512:
        return _round_up((M + 1) // 2, 16)
    return 256


def _pad_rows(x2, Mp):
    M = x2.shape[0]
    if Mp == M:
        return x2
    return jnp.pad(x2, ((0, Mp - M), (0, 0)))


def _to_heads(x2, L, N, H, dh):
    """[L*N, H*dh] -> [N, H, L, dh] (XLA-side layout change of a small tensor)."""
    return x2.reshape(L, N, H, dh).transpose(1, 2, 0, 3)


def _from_heads(ctx):
    """[N, H, L, dh] -> [L*N, H*dh]."""
    N, H, L, dh = ctx.shape
    return ctx.transpose(2, 0, 1, 3).reshape(L * N, H * dh)


# ----------------------------------------------------------------------------
# Pallas kernels
# ----------------------------------------------------------------------------

def _ln_matmul_kernel(x_ref, g_ref, b_ref, w_ref, pb_ref, o_ref):
    """o = LayerNorm(x) @ W + pb.   x: [TM, D] f32, W: [D, P] bf16, o: [TM, P] bf16."""
    x = x_ref[...]
    mu = jnp.mean(x, axis=-1, keepdims=True)
    xc = x - mu
    var = jnp.mean(xc * xc, axis=-1, keepdims=True)
    xn = xc * lax.rsqrt(var + 1e-5) * g_ref[...] + b_ref[...]          # f32 LN math
    y = jnp.dot(xn.astype(jnp.bfloat16), w_ref[...],
                preferred_element_type=jnp.float32) + pb_ref[...]
    o_ref[...] = y.astype(o_ref.dtype)


def _proj_residual_kernel(r_ref, x_ref, w_ref, b_ref, o_ref):
    """o = resid + x @ W + b.   x: [TM, D] bf16, W: [D, D] bf16, resid/o: f32."""
    y = jnp.dot(x_ref[...], w_ref[...], preferred_element_type=jnp.float32) + b_ref[...]
    o_ref[...] = r_ref[...] + y


def _ln_mlp_residual_kernel(x_ref, g_ref, b_ref, w1_ref, b1_ref, w2_ref, b2_ref, o_ref):
    """o = x + c_proj(QuickGELU(c_fc(LayerNorm(x)))).   All VPU math in f32."""
    x = x_ref[...]
    mu = jnp.mean(x, axis=-1, keepdims=True)
    xc = x - mu
    var = jnp.mean(xc * xc, axis=-1, keepdims=True)
    xn = xc * lax.rsqrt(var + 1e-5) * g_ref[...] + b_ref[...]
    h = jnp.dot(xn.astype(jnp.bfloat16), w1_ref[...],
                preferred_element_type=jnp.float32) + b1_ref[...]
    h = h * jax.nn.sigmoid(1.702 * h)                                  # QuickGELU (f32)
    y = jnp.dot(h.astype(jnp.bfloat16), w2_ref[...],
                preferred_element_type=jnp.float32) + b2_ref[...]
    o_ref[...] = x + y


def _attn_core_kernel(q_ref, k_ref, v_ref, bias_ref, ctx_ref, *, scale):
    """Per-batch attention core, head-batched.  q/k/v: [1,H,L,dh] bf16,
    bias: [1,Lq,Lk] f32 additive.  ctx: [1,H,Lq,dh] bf16."""
    q = q_ref[0]
    k = k_ref[0]
    v = v_ref[0]
    s = jnp.einsum('hqd,hkd->hqk', q, k,
                   preferred_element_type=jnp.float32) * scale
    s = s + bias_ref[0][None, :, :]
    m = jnp.max(s, axis=-1, keepdims=True)
    e = jnp.exp(s - m)
    p = e * pl.reciprocal(jnp.sum(e, axis=-1, keepdims=True), approx=True)
    ctx_ref[0] = jnp.einsum('hqk,hkd->hqd', p.astype(v.dtype), v,
                            preferred_element_type=jnp.float32).astype(ctx_ref.dtype)


def _attn_core_w_kernel(q_ref, k_ref, v_ref, bias_ref, ctx_ref, attnw_ref, *, scale):
    """Same as _attn_core_kernel but also emits head-averaged attention weights."""
    q = q_ref[0]
    k = k_ref[0]
    v = v_ref[0]
    s = jnp.einsum('hqd,hkd->hqk', q, k,
                   preferred_element_type=jnp.float32) * scale
    s = s + bias_ref[0][None, :, :]
    m = jnp.max(s, axis=-1, keepdims=True)
    e = jnp.exp(s - m)
    p = e * pl.reciprocal(jnp.sum(e, axis=-1, keepdims=True), approx=True)
    attnw_ref[0] = jnp.sum(p, axis=0) * (1.0 / p.shape[0])
    ctx_ref[0] = jnp.einsum('hqk,hkd->hqd', p.astype(v.dtype), v,
                            preferred_element_type=jnp.float32).astype(ctx_ref.dtype)


# ----------------------------------------------------------------------------
# Pallas wrappers (row-tiled token kernels + per-batch attention core)
# ----------------------------------------------------------------------------

def ln_matmul(x2, g, b, w, pb):
    """x2: [M, D] f32 -> LayerNorm -> @ w[D,P] (bf16) + pb -> [M, P] bf16."""
    M, D = x2.shape
    P = w.shape[1]
    tm = _row_tile(M)
    Mp = _round_up(M, tm)
    xp = _pad_rows(x2, Mp)
    out = pl.pallas_call(
        _ln_matmul_kernel,
        grid=(Mp // tm,),
        in_specs=[pl.BlockSpec((tm, D), lambda i: (i, 0)),
                  pl.BlockSpec((1, D), lambda i: (0, 0)),
                  pl.BlockSpec((1, D), lambda i: (0, 0)),
                  pl.BlockSpec((D, P), lambda i: (0, 0)),
                  pl.BlockSpec((1, P), lambda i: (0, 0))],
        out_specs=pl.BlockSpec((tm, P), lambda i: (i, 0)),
        out_shape=jax.ShapeDtypeStruct((Mp, P), jnp.bfloat16),
        compiler_params=pltpu.CompilerParams(dimension_semantics=("parallel",)),
    )(xp, g, b, w, pb)
    return out[:M]


def proj_residual(resid2, x2, w, b):
    """resid2: [M, D] f32, x2: [M, D] bf16 -> resid + x @ w + b, f32."""
    M, D = resid2.shape
    tm = _row_tile(M)
    Mp = _round_up(M, tm)
    rp = _pad_rows(resid2, Mp)
    xp = _pad_rows(x2, Mp)
    out = pl.pallas_call(
        _proj_residual_kernel,
        grid=(Mp // tm,),
        in_specs=[pl.BlockSpec((tm, D), lambda i: (i, 0)),
                  pl.BlockSpec((tm, D), lambda i: (i, 0)),
                  pl.BlockSpec((D, D), lambda i: (0, 0)),
                  pl.BlockSpec((1, D), lambda i: (0, 0))],
        out_specs=pl.BlockSpec((tm, D), lambda i: (i, 0)),
        out_shape=jax.ShapeDtypeStruct((Mp, D), jnp.float32),
        compiler_params=pltpu.CompilerParams(dimension_semantics=("parallel",)),
    )(rp, xp, w, b)
    return out[:M]


def ln_mlp_residual(x2, g, b, w1, b1, w2, b2):
    """x2: [M, D] f32 -> x + c_proj(gelu(c_fc(LN(x)))), f32."""
    M, D = x2.shape
    Dh = w1.shape[1]
    tm = _row_tile(M)
    Mp = _round_up(M, tm)
    xp = _pad_rows(x2, Mp)
    out = pl.pallas_call(
        _ln_mlp_residual_kernel,
        grid=(Mp // tm,),
        in_specs=[pl.BlockSpec((tm, D), lambda i: (i, 0)),
                  pl.BlockSpec((1, D), lambda i: (0, 0)),
                  pl.BlockSpec((1, D), lambda i: (0, 0)),
                  pl.BlockSpec((D, Dh), lambda i: (0, 0)),
                  pl.BlockSpec((1, Dh), lambda i: (0, 0)),
                  pl.BlockSpec((Dh, D), lambda i: (0, 0)),
                  pl.BlockSpec((1, D), lambda i: (0, 0))],
        out_specs=pl.BlockSpec((tm, D), lambda i: (i, 0)),
        out_shape=jax.ShapeDtypeStruct((Mp, D), jnp.float32),
        compiler_params=pltpu.CompilerParams(dimension_semantics=("parallel",)),
    )(xp, g, b, w1, b1, w2, b2)
    return out[:M]


def attention_core(q, k, v, bias, scale, need_weights):
    """q/k/v: [N, H, L, dh] bf16, bias: [N, Lq, Lk] f32 additive.
    Returns ctx [N, H, Lq, dh] bf16 (and head-averaged weights if requested)."""
    N, H, Lq, dh = q.shape
    Lk = k.shape[2]
    in_specs = [
        pl.BlockSpec((1, H, Lq, dh), lambda n: (n, 0, 0, 0)),
        pl.BlockSpec((1, H, Lk, dh), lambda n: (n, 0, 0, 0)),
        pl.BlockSpec((1, H, Lk, dh), lambda n: (n, 0, 0, 0)),
        pl.BlockSpec((1, Lq, Lk), lambda n: (n, 0, 0)),
    ]
    cp = pltpu.CompilerParams(dimension_semantics=("parallel",))
    if need_weights:
        ctx, attnw = pl.pallas_call(
            functools.partial(_attn_core_w_kernel, scale=scale),
            grid=(N,),
            in_specs=in_specs,
            out_specs=[pl.BlockSpec((1, H, Lq, dh), lambda n: (n, 0, 0, 0)),
                       pl.BlockSpec((1, Lq, Lk), lambda n: (n, 0, 0))],
            out_shape=[jax.ShapeDtypeStruct((N, H, Lq, dh), jnp.bfloat16),
                       jax.ShapeDtypeStruct((N, Lq, Lk), jnp.float32)],
            compiler_params=cp,
        )(q, k, v, bias)
        return ctx, attnw
    ctx = pl.pallas_call(
        functools.partial(_attn_core_kernel, scale=scale),
        grid=(N,),
        in_specs=in_specs,
        out_specs=pl.BlockSpec((1, H, Lq, dh), lambda n: (n, 0, 0, 0)),
        out_shape=jax.ShapeDtypeStruct((N, H, Lq, dh), jnp.bfloat16),
        compiler_params=cp,
    )(q, k, v, bias)
    return ctx


# ----------------------------------------------------------------------------
# HOIResidualAttentionBlock forward (eval mode)
# ----------------------------------------------------------------------------

def hoi_residual_attention_block(prep, image, hoi, mask, parse_attn_mask, n_head):
    """image: [Li, N, D], hoi: [Lh, N, D], mask: [N, Li] bool (True = padded).
    Returns (image, hoi, attn_map) matching the PyTorch module in eval mode."""
    Li, N, D = image.shape
    Lh = hoi.shape[0]
    H = n_head
    dh = D // H
    scale = 1.0 / math.sqrt(dh)
    NEG = jnp.float32(-1e30)
    # NOTE: fully key-padded rows would produce a uniform distribution instead of
    # PyTorch's NaN behaviour (same trade-off as standard fused attention kernels).

    image_f = image.astype(jnp.float32)
    hoi_f = hoi.astype(jnp.float32)

    # ---- fused LayerNorm + projections, batched over all tokens ----
    # hoi: ln_1 -> cross-attn Q                          [Lh*N, D]
    q_c = ln_matmul(hoi_f.reshape(Lh * N, D), prep["ln_1_g"], prep["ln_1_b"],
                    prep["cross_q_w"], prep["cross_q_b"])
    # image: ln_1 -> [Kc | Vc | Qs | Ks | Vs] fused      [Li*N, 5D]
    img_p = ln_matmul(image_f.reshape(Li * N, D), prep["ln_1_g"], prep["ln_1_b"],
                      prep["img_fused_w"], prep["img_fused_b"])
    k_c, v_c = img_p[:, 0:D], img_p[:, D:2 * D]
    q_s, k_s, v_s = img_p[:, 2 * D:3 * D], img_p[:, 3 * D:4 * D], img_p[:, 4 * D:5 * D]

    # ---- [HOI] x [PATCH] cross-attention (needs averaged attention weights) ----
    bias_c = jnp.broadcast_to(jnp.where(mask[:, None, :], NEG, jnp.float32(0.0)),
                              (N, Lh, Li)).astype(jnp.float32)
    ctx_c, attn_map = attention_core(
        _to_heads(q_c, Lh, N, H, dh), _to_heads(k_c, Li, N, H, dh),
        _to_heads(v_c, Li, N, H, dh), bias_c, scale, need_weights=True)
    hoi_f = proj_residual(hoi_f.reshape(Lh * N, D), _from_heads(ctx_c),
                          prep["cross_o_w"], prep["cross_o_b"]).reshape(Lh, N, D)
    # hoi = hoi + mlp(ln_2(hoi))     (dropout1/2 = identity in eval mode)
    hoi_f = ln_mlp_residual(hoi_f.reshape(Lh * N, D), prep["ln_2_g"], prep["ln_2_b"],
                            prep["mlp_w1"], prep["mlp_b1"],
                            prep["mlp_w2"], prep["mlp_b2"]).reshape(Lh, N, D)

    # ---- [CLS+PATCH] self-attention (CLS key never padded, weights discarded) ----
    image_mask = mask.at[:, 0].set(False)
    bias_s = jnp.broadcast_to(jnp.where(image_mask[:, None, :], NEG, jnp.float32(0.0)),
                              (N, Li, Li)).astype(jnp.float32)
    ctx_s = attention_core(
        _to_heads(q_s, Li, N, H, dh), _to_heads(k_s, Li, N, H, dh),
        _to_heads(v_s, Li, N, H, dh), bias_s, scale, need_weights=False)
    image_f = proj_residual(image_f.reshape(Li * N, D), _from_heads(ctx_s),
                            prep["self_o_w"], prep["self_o_b"]).reshape(Li, N, D)
    image_f = ln_mlp_residual(image_f.reshape(Li * N, D), prep["ln_2_g"], prep["ln_2_b"],
                              prep["mlp_w1"], prep["mlp_b1"],
                              prep["mlp_w2"], prep["mlp_b2"]).reshape(Li, N, D)

    # ---- [HOI] x [CLS+HOI] sequential parsing (weights discarded) ----
    x = jnp.concatenate([image_f[0:1], hoi_f], axis=0)          # [1+Lh, N, D]
    Lp = 1 + Lh
    qkv_p = ln_matmul(x.reshape(Lp * N, D), prep["hoi_ln1_g"], prep["hoi_ln1_b"],
                      prep["parse_qkv_w"], prep["parse_qkv_b"])  # [Lp*N, 3D]
    bias_p = jnp.broadcast_to(parse_attn_mask.astype(jnp.float32)[None], (N, Lp, Lp))
    ctx_p = attention_core(
        _to_heads(qkv_p[:, 0:D], Lp, N, H, dh),
        _to_heads(qkv_p[:, D:2 * D], Lp, N, H, dh),
        _to_heads(qkv_p[:, 2 * D:3 * D], Lp, N, H, dh),
        bias_p, scale, need_weights=False)
    x = proj_residual(x.reshape(Lp * N, D), _from_heads(ctx_p),
                      prep["parse_o_w"], prep["parse_o_b"]).reshape(Lp, N, D)
    hoi_f = x[1:]                                               # dropout3 = identity
    return image_f, hoi_f, attn_map


# ----------------------------------------------------------------------------
# Parameter construction / one-time preparation (transpose + bf16 cast hoisted)
# ----------------------------------------------------------------------------

def init_params(key, d_model):
    ks = iter(jax.random.split(key, 32))

    def mha_params():
        return {
            "in_proj_weight": 0.02 * jax.random.normal(next(ks), (3 * d_model, d_model), jnp.float32),
            "in_proj_bias": 0.02 * jax.random.normal(next(ks), (3 * d_model,), jnp.float32),
            "out_proj_weight": 0.02 * jax.random.normal(next(ks), (d_model, d_model), jnp.float32),
            "out_proj_bias": 0.02 * jax.random.normal(next(ks), (d_model,), jnp.float32),
        }

    def ln_params():
        return {"weight": jnp.ones((d_model,), jnp.float32),
                "bias": jnp.zeros((d_model,), jnp.float32)}

    return {
        "hoi_parse_attn": mha_params(),
        "hoi_cross_attn": mha_params(),
        "attn": mha_params(),
        "ln_1": ln_params(),
        "ln_2": ln_params(),
        "hoi_ln1": ln_params(),
        "hoi_ln2": ln_params(),   # present in __init__ but unused in forward
        "mlp": {
            "c_fc_weight": 0.02 * jax.random.normal(next(ks), (4 * d_model, d_model), jnp.float32),
            "c_fc_bias": 0.02 * jax.random.normal(next(ks), (4 * d_model,), jnp.float32),
            "c_proj_weight": 0.02 * jax.random.normal(next(ks), (d_model, 4 * d_model), jnp.float32),
            "c_proj_bias": 0.02 * jax.random.normal(next(ks), (d_model,), jnp.float32),
        },
    }


def prepare_params(params, d_model):
    """One-time: transpose weights to [in, out], fuse QKV blocks, cast to bf16."""
    D = d_model
    cross, self_, parse = params["hoi_cross_attn"], params["attn"], params["hoi_parse_attn"]
    wq_c, wk_c, wv_c = jnp.split(cross["in_proj_weight"], 3, axis=0)
    bq_c, bk_c, bv_c = jnp.split(cross["in_proj_bias"], 3)
    wq_s, wk_s, wv_s = jnp.split(self_["in_proj_weight"], 3, axis=0)
    bq_s, bk_s, bv_s = jnp.split(self_["in_proj_bias"], 3)

    def ln_gb(name):
        p = params[name]
        return (p["weight"].reshape(1, D).astype(jnp.float32),
                p["bias"].reshape(1, D).astype(jnp.float32))

    ln1_g, ln1_b = ln_gb("ln_1")
    ln2_g, ln2_b = ln_gb("ln_2")
    hln1_g, hln1_b = ln_gb("hoi_ln1")

    return {
        "ln_1_g": ln1_g, "ln_1_b": ln1_b,
        "ln_2_g": ln2_g, "ln_2_b": ln2_b,
        "hoi_ln1_g": hln1_g, "hoi_ln1_b": hln1_b,
        # cross-attn Q projection (on hoi tokens)
        "cross_q_w": wq_c.T.astype(jnp.bfloat16),
        "cross_q_b": bq_c.reshape(1, D).astype(jnp.float32),
        # fused image projection: [Kc | Vc | Qs | Ks | Vs]
        "img_fused_w": jnp.concatenate(
            [wk_c.T, wv_c.T, wq_s.T, wk_s.T, wv_s.T], axis=1).astype(jnp.bfloat16),
        "img_fused_b": jnp.concatenate(
            [bk_c, bv_c, bq_s, bk_s, bv_s]).reshape(1, 5 * D).astype(jnp.float32),
        # output projections
        "cross_o_w": cross["out_proj_weight"].T.astype(jnp.bfloat16),
        "cross_o_b": cross["out_proj_bias"].reshape(1, D).astype(jnp.float32),
        "self_o_w": self_["out_proj_weight"].T.astype(jnp.bfloat16),
        "self_o_b": self_["out_proj_bias"].reshape(1, D).astype(jnp.float32),
        "parse_o_w": parse["out_proj_weight"].T.astype(jnp.bfloat16),
        "parse_o_b": parse["out_proj_bias"].reshape(1, D).astype(jnp.float32),
        # parse-attn fused QKV
        "parse_qkv_w": parse["in_proj_weight"].T.astype(jnp.bfloat16),
        "parse_qkv_b": parse["in_proj_bias"].reshape(1, 3 * D).astype(jnp.float32),
        # MLP
        "mlp_w1": params["mlp"]["c_fc_weight"].T.astype(jnp.bfloat16),
        "mlp_b1": params["mlp"]["c_fc_bias"].reshape(1, 4 * D).astype(jnp.float32),
        "mlp_w2": params["mlp"]["c_proj_weight"].T.astype(jnp.bfloat16),
        "mlp_b2": params["mlp"]["c_proj_bias"].reshape(1, D).astype(jnp.float32),
    }


if __name__ == "__main__":
    d_model, n_head = 32, 4
    Li, Lh, N = 17, 4, 2          # 1 CLS + 16 patches, 4 HOI tokens, batch 2

    key = jax.random.PRNGKey(0)
    k_img, k_hoi, k_prm = jax.random.split(key, 3)

    image = jax.random.normal(k_img, (Li, N, d_model), jnp.float32)
    hoi = jax.random.normal(k_hoi, (Lh, N, d_model), jnp.float32)

    # key padding mask: True = padded.  Batch 1 pads its last 3 patches; batch 0
    # masks CLS (exercises the image_mask[:, 0] = False path).
    mask = jnp.zeros((N, Li), dtype=bool)
    mask = mask.at[1, -3:].set(True).at[0, 0].set(True)

    # parse attention mask over [CLS + HOI]: causal, additive (0 / -1e9).
    Lp = 1 + Lh
    parse_attn_mask = jnp.where(
        jnp.arange(Lp)[:, None] >= jnp.arange(Lp)[None, :], 0.0, -1e9
    ).astype(jnp.float32)

    params = init_params(k_prm, d_model)
    prep = prepare_params(params, d_model)

    fwd = jax.jit(hoi_residual_attention_block, static_argnames=("n_head",))
    image_out, hoi_out, attn_map = fwd(prep, image, hoi, mask, parse_attn_mask,
                                       n_head=n_head)

    jax.block_until_ready((image_out, hoi_out, attn_map))
    assert image_out.shape == (Li, N, d_model)
    assert hoi_out.shape == (Lh, N, d_model)
    assert attn_map.shape == (N, Lh, Li)
    print("KERNEL_OK")
</pallas_src>

<mosaic_0001>
module attributes {stable_mosaic.version = 11 : i64} {
  func.func @_ln_matmul_kernel(%arg0: i32, %arg1: memref<48x32xf32, #tpu.memory_space<vmem>>, %arg2: memref<1x32xf32, #tpu.memory_space<vmem>>, %arg3: memref<1x32xf32, #tpu.memory_space<vmem>>, %arg4: memref<32x160xbf16, #tpu.memory_space<vmem>>, %arg5: memref<1x160xf32, #tpu.memory_space<vmem>>, %arg6: memref<48x160xbf16, #tpu.memory_space<vmem>>) attributes {dimension_semantics = [#tpu.dimension_semantics<parallel>], iteration_bounds = array<i64: 1>, scalar_prefetch = 0 : i64, scratch_operands = 0 : i64, tpu.core_type = #tpu.core_type<tc>, window_params = [{transform_indices = @transform_0, window_bounds = array<i64: 48, 32>}, {pipeline_mode = #tpu.pipeline_mode<synchronous>, transform_indices = @transform_1, window_bounds = array<i64: 1, 32>}, {pipeline_mode = #tpu.pipeline_mode<synchronous>, transform_indices = @transform_2, window_bounds = array<i64: 1, 32>}, {pipeline_mode = #tpu.pipeline_mode<synchronous>, transform_indices = @transform_3, window_bounds = array<i64: 32, 160>}, {pipeline_mode = #tpu.pipeline_mode<synchronous>, transform_indices = @transform_4, window_bounds = array<i64: 1, 160>}, {transform_indices = @transform_5, window_bounds = array<i64: 48, 160>}]} {
    %c0 = arith.constant 0 : index
    %c0_0 = arith.constant 0 : index
    %0 = vector.load %arg1[%c0, %c0_0] : memref<48x32xf32, #tpu.memory_space<vmem>>, vector<48x32xf32>
    %cst = arith.constant dense<0.000000e+00> : vector<48xf32>
    %1 = vector.multi_reduction <add>, %0, %cst [1] : vector<48x32xf32> to vector<48xf32>
    %2 = vector.shape_cast %1 : vector<48xf32> to vector<48x1xf32>
    %cst_1 = arith.constant 3.200000e+01 : f32
    %3 = vector.broadcast %cst_1 : f32 to vector<48x1xf32>
    %4 = arith.divf %2, %3 : vector<48x1xf32>
    %5 = vector.broadcast %4 : vector<48x1xf32> to vector<48x32xf32>
    %6 = arith.subf %0, %5 : vector<48x32xf32>
    %7 = arith.mulf %6, %6 : vector<48x32xf32>
    %cst_2 = arith.constant dense<0.000000e+00> : vector<48xf32>
    %8 = vector.multi_reduction <add>, %7, %cst_2 [1] : vector<48x32xf32> to vector<48xf32>
    %9 = vector.shape_cast %8 : vector<48xf32> to vector<48x1xf32>
    %cst_3 = arith.constant 3.200000e+01 : f32
    %10 = vector.broadcast %cst_3 : f32 to vector<48x1xf32>
    %11 = arith.divf %9, %10 : vector<48x1xf32>
    %cst_4 = arith.constant 9.99999974E-6 : f32
    %12 = vector.broadcast %cst_4 : f32 to vector<48x1xf32>
    %13 = arith.addf %11, %12 : vector<48x1xf32>
    %14 = math.rsqrt %13 : vector<48x1xf32>
    %15 = vector.broadcast %14 : vector<48x1xf32> to vector<48x32xf32>
    %16 = arith.mulf %6, %15 : vector<48x32xf32>
    %c0_5 = arith.constant 0 : index
    %c0_6 = arith.constant 0 : index
    %17 = vector.load %arg2[%c0_5, %c0_6] : memref<1x32xf32, #tpu.memory_space<vmem>>, vector<1x32xf32>
    %18 = vector.broadcast %17 : vector<1x32xf32> to vector<48x32xf32>
    %19 = arith.mulf %16, %18 : vector<48x32xf32>
    %c0_7 = arith.constant 0 : index
    %c0_8 = arith.constant 0 : index
    %20 = vector.load %arg3[%c0_7, %c0_8] : memref<1x32xf32, #tpu.memory_space<vmem>>, vector<1x32xf32>
    %21 = vector.broadcast %20 : vector<1x32xf32> to vector<48x32xf32>
    %22 = arith.addf %19, %21 : vector<48x32xf32>
    %23 = arith.truncf %22 : vector<48x32xf32> to vector<48x32xbf16>
    %c0_9 = arith.constant 0 : index
    %c0_10 = arith.constant 0 : index
    %24 = vector.load %arg4[%c0_9, %c0_10] : memref<32x160xbf16, #tpu.memory_space<vmem>>, vector<32x160xbf16>
    %cst_11 = arith.constant dense<0.000000e+00> : vector<48x160xf32>
    %25 = tpu.matmul %23, %24, %cst_11 {dimension_numbers = #tpu.dot_dimension_numbers<[1], [0], [0], [1], [0, 0, 1, 1], [], []>} : vector<48x32xbf16>, vector<32x160xbf16>, vector<48x160xf32> -> vector<48x160xf32>
    %c0_12 = arith.constant 0 : index
    %c0_13 = arith.constant 0 : index
    %26 = vector.load %arg5[%c0_12, %c0_13] : memref<1x160xf32, #tpu.memory_space<vmem>>, vector<1x160xf32>
    %27 = vector.broadcast %26 : vector<1x160xf32> to vector<48x160xf32>
    %28 = arith.addf %25, %27 : vector<48x160xf32>
    %29 = arith.truncf %28 : vector<48x160xf32> to vector<48x160xbf16>
    %c0_14 = arith.constant 0 : index
    %c0_15 = arith.constant 0 : index
    %30 = vector.load %arg6[%c0_14, %c0_15] : memref<48x160xbf16, #tpu.memory_space<vmem>>, vector<48x160xbf16>
    tpu.vector_store %arg6[%c0_14, %c0_15], %29 {strides = array<i32>} : memref<48x160xbf16, #tpu.memory_space<vmem>>, vector<48x160xbf16>,
    return
  }
  func.func @transform_0(%arg0: i32) -> (i32, i32) {
    %c0_i32 = arith.constant 0 : i32
    %c0_i32_0 = arith.constant 0 : i32
    return %arg0, %c0_i32 : i32, i32
  }
  func.func @transform_1(%arg0: i32) -> (i32, i32) {
    %c0_i32 = arith.constant 0 : i32
    %c0_i32_0 = arith.constant 0 : i32
    %c0_i32_1 = arith.constant 0 : i32
    return %c0_i32, %c0_i32_0 : i32, i32
  }
  func.func @transform_2(%arg0: i32) -> (i32, i32) {
    %c0_i32 = arith.constant 0 : i32
    %c0_i32_0 = arith.constant 0 : i32
    %c0_i32_1 = arith.constant 0 : i32
    return %c0_i32, %c0_i32_0 : i32, i32
  }
  func.func @transform_3(%arg0: i32) -> (i32, i32) {
    %c0_i32 = arith.constant 0 : i32
    %c0_i32_0 = arith.constant 0 : i32
    %c0_i32_1 = arith.constant 0 : i32
    return %c0_i32, %c0_i32_0 : i32, i32
  }
  func.func @transform_4(%arg0: i32) -> (i32, i32) {
    %c0_i32 = arith.constant 0 : i32
    %c0_i32_0 = arith.constant 0 : i32
    %c0_i32_1 = arith.constant 0 : i32
    return %c0_i32, %c0_i32_0 : i32, i32
  }
  func.func @transform_5(%arg0: i32) -> (i32, i32) {
    %c0_i32 = arith.constant 0 : i32
    %c0_i32_0 = arith.constant 0 : i32
    return %arg0, %c0_i32 : i32, i32
  }
}

module attributes {stable_mosaic.version = 11 : i64} {
  func.func @_attn_core_kernel(%arg0: i32, %arg1: memref<1x4x17x8xbf16, #tpu.memory_space<vmem>>, %arg2: memref<1x4x17x8xbf16, #tpu.memory_space<vmem>>, %arg3: memref<1x4x17x8xbf16, #tpu.memory_space<vmem>>, %arg4: memref<1x17x17xf32, #tpu.memory_space<vmem>>, %arg5: memref<1x4x17x8xbf16, #tpu.memory_space<vmem>>) attributes {dimension_semantics = [#tpu.dimension_semantics<parallel>], iteration_bounds = array<i64: 2>, scalar_prefetch = 0 : i64, scratch_operands = 0 : i64, tpu.core_type = #tpu.core_type<tc>, window_params = [{transform_indices = @transform_0, window_bounds = array<i64: 1, 4, 17, 8>}, {transform_indices = @transform_1, window_bounds = array<i64: 1, 4, 17, 8>}, {transform_indices = @transform_2, window_bounds = array<i64: 1, 4, 17, 8>}, {transform_indices = @transform_3, window_bounds = array<i64: 1, 17, 17>}, {transform_indices = @transform_4, window_bounds = array<i64: 1, 4, 17, 8>}]} {
    %c0 = arith.constant 0 : index
    %c0_0 = arith.constant 0 : index
    %c0_1 = arith.constant 0 : index
    %c0_2 = arith.constant 0 : index
    %0 = vector.load %arg1[%c0, %c0_0, %c0_1, %c0_2] : memref<1x4x17x8xbf16, #tpu.memory_space<vmem>>, vector<1x4x17x8xbf16>
    %1 = vector.shape_cast %0 : vector<1x4x17x8xbf16> to vector<4x17x8xbf16>
    %c0_3 = arith.constant 0 : index
    %c0_4 = arith.constant 0 : index
    %c0_5 = arith.constant 0 : index
    %c0_6 = arith.constant 0 : index
    %2 = vector.load %arg2[%c0_3, %c0_4, %c0_5, %c0_6] : memref<1x4x17x8xbf16, #tpu.memory_space<vmem>>, vector<1x4x17x8xbf16>
    %3 = vector.shape_cast %2 : vector<1x4x17x8xbf16> to vector<4x17x8xbf16>
    %c0_7 = arith.constant 0 : index
    %c0_8 = arith.constant 0 : index
    %c0_9 = arith.constant 0 : index
    %c0_10 = arith.constant 0 : index
    %4 = vector.load %arg3[%c0_7, %c0_8, %c0_9, %c0_10] : memref<1x4x17x8xbf16, #tpu.memory_space<vmem>>, vector<1x4x17x8xbf16>
    %5 = vector.shape_cast %4 : vector<1x4x17x8xbf16> to vector<4x17x8xbf16>
    "tpu.trace_start"() <{level = 10 : i32, message = "hqd,hkd->hqk"}> : () -> ()
    %cst = arith.constant dense<0.000000e+00> : vector<4x17x17xf32>
    %6 = tpu.matmul %1, %3, %cst {dimension_numbers = #tpu.dot_dimension_numbers<[2], [2], [1], [1], [0, 0, 0, 1, 1, 1], [0], [0]>} : vector<4x17x8xbf16>, vector<4x17x8xbf16>, vector<4x17x17xf32> -> vector<4x17x17xf32>
    "tpu.trace_stop"() : () -> ()
    %cst_11 = arith.constant 0.353553385 : f32
    %7 = vector.broadcast %cst_11 : f32 to vector<4x17x17xf32>
    %8 = arith.mulf %6, %7 : vector<4x17x17xf32>
    %c0_12 = arith.constant 0 : index
    %c0_13 = arith.constant 0 : index
    %c0_14 = arith.constant 0 : index
    %9 = vector.load %arg4[%c0_12, %c0_13, %c0_14] : memref<1x17x17xf32, #tpu.memory_space<vmem>>, vector<1x17x17xf32>
    %10 = vector.shape_cast %9 : vector<1x17x17xf32> to vector<17x17xf32>
    %11 = vector.shape_cast %10 : vector<17x17xf32> to vector<1x17x17xf32>
    %12 = vector.broadcast %11 : vector<1x17x17xf32> to vector<4x17x17xf32>
    %13 = arith.addf %8, %12 : vector<4x17x17xf32>
    %cst_15 = arith.constant dense<0xFF800000> : vector<4x17xf32>
    %14 = vector.multi_reduction <maximumf>, %13, %cst_15 [2] : vector<4x17x17xf32> to vector<4x17xf32>
    %15 = vector.shape_cast %14 : vector<4x17xf32> to vector<4x17x1xf32>
    %16 = vector.broadcast %15 : vector<4x17x1xf32> to vector<4x17x17xf32>
    %17 = arith.subf %13, %16 : vector<4x17x17xf32>
    %18 = math.exp %17 : vector<4x17x17xf32>
    %cst_16 = arith.constant dense<0.000000e+00> : vector<4x17xf32>
    %19 = vector.multi_reduction <add>, %18, %cst_16 [2] : vector<4x17x17xf32> to vector<4x17xf32>
    %20 = vector.shape_cast %19 : vector<4x17xf32> to vector<4x17x1xf32>
    %21 = tpu.reciprocal %20 {approx = true} : vector<4x17x1xf32> -> vector<4x17x1xf32>
    %22 = vector.broadcast %21 : vector<4x17x1xf32> to vector<4x17x17xf32>
    %23 = arith.mulf %18, %22 : vector<4x17x17xf32>
    %24 = arith.truncf %23 : vector<4x17x17xf32> to vector<4x17x17xbf16>
    "tpu.trace_start"() <{level = 10 : i32, message = "hqk,hkd->hqd"}> : () -> ()
    %cst_17 = arith.constant dense<0.000000e+00> : vector<4x17x8xf32>
    %25 = tpu.matmul %24, %5, %cst_17 {dimension_numbers = #tpu.dot_dimension_numbers<[2], [1], [1], [2], [0, 0, 0, 1, 1, 2], [0], [0]>} : vector<4x17x17xbf16>, vector<4x17x8xbf16>, vector<4x17x8xf32> -> vector<4x17x8xf32>
    "tpu.trace_stop"() : () -> ()
    %26 = arith.truncf %25 : vector<4x17x8xf32> to vector<4x17x8xbf16>
    %c0_18 = arith.constant 0 : index
    %c0_19 = arith.constant 0 : index
    %c0_20 = arith.constant 0 : index
    %c0_21 = arith.constant 0 : index
    %27 = vector.load %arg5[%c0_18, %c0_19, %c0_20, %c0_21] : memref<1x4x17x8xbf16, #tpu.memory_space<vmem>>, vector<1x4x17x8xbf16>
    %28 = vector.shape_cast %27 : vector<1x4x17x8xbf16> to vector<4x17x8xbf16>
    %29 = vector.shape_cast %26 : vector<4x17x8xbf16> to vector<1x4x17x8xbf16>
    tpu.vector_store %arg5[%c0_18, %c0_19, %c0_20, %c0_21], %29 {strides = array<i32>} : memref<1x4x17x8xbf16, #tpu.memory_space<vmem>>, vector<1x4x17x8xbf16>,
    return
  }
  func.func @transform_0(%arg0: i32) -> (i32, i32, i32, i32) {
    %c0_i32 = arith.constant 0 : i32
    %c0_i32_0 = arith.constant 0 : i32
    %c0_i32_1 = arith.constant 0 : i32
    %c0_i32_2 = arith.constant 0 : i32
    return %arg0, %c0_i32, %c0_i32_0, %c0_i32_1 : i32, i32, i32, i32
  }
  func.func @transform_1(%arg0: i32) -> (i32, i32, i32, i32) {
    %c0_i32 = arith.constant 0 : i32
    %c0_i32_0 = arith.constant 0 : i32
    %c0_i32_1 = arith.constant 0 : i32
    %c0_i32_2 = arith.constant 0 : i32
    return %arg0, %c0_i32, %c0_i32_0, %c0_i32_1 : i32, i32, i32, i32
  }
  func.func @transform_2(%arg0: i32) -> (i32, i32, i32, i32) {
    %c0_i32 = arith.constant 0 : i32
    %c0_i32_0 = arith.constant 0 : i32
    %c0_i32_1 = arith.constant 0 : i32
    %c0_i32_2 = arith.constant 0 : i32
    return %arg0, %c0_i32, %c0_i32_0, %c0_i32_1 : i32, i32, i32, i32
  }
  func.func @transform_3(%arg0: i32) -> (i32, i32, i32) {
    %c0_i32 = arith.constant 0 : i32
    %c0_i32_0 = arith.constant 0 : i32
    %c0_i32_1 = arith.constant 0 : i32
    return %arg0, %c0_i32, %c0_i32_0 : i32, i32, i32
  }
  func.func @transform_4(%arg0: i32) -> (i32, i32, i32, i32) {
    %c0_i32 = arith.constant 0 : i32
    %c0_i32_0 = arith.constant 0 : i32
    %c0_i32_1 = arith.constant 0 : i32
    %c0_i32_2 = arith.constant 0 : i32
    return %arg0, %c0_i32, %c0_i32_0, %c0_i32_1 : i32, i32, i32, i32
  }
}

module attributes {stable_mosaic.version = 11 : i64} {
  func.func @_proj_residual_kernel(%arg0: i32, %arg1: memref<48x32xf32, #tpu.memory_space<vmem>>, %arg2: memref<48x32xbf16, #tpu.memory_space<vmem>>, %arg3: memref<32x32xbf16, #tpu.memory_space<vmem>>, %arg4: memref<1x32xf32, #tpu.memory_space<vmem>>, %arg5: memref<48x32xf32, #tpu.memory_space<vmem>>) attributes {dimension_semantics = [#tpu.dimension_semantics<parallel>], iteration_bounds = array<i64: 1>, scalar_prefetch = 0 : i64, scratch_operands = 0 : i64, tpu.core_type = #tpu.core_type<tc>, window_params = [{transform_indices = @transform_0, window_bounds = array<i64: 48, 32>}, {transform_indices = @transform_1, window_bounds = array<i64: 48, 32>}, {pipeline_mode = #tpu.pipeline_mode<synchronous>, transform_indices = @transform_2, window_bounds = array<i64: 32, 32>}, {pipeline_mode = #tpu.pipeline_mode<synchronous>, transform_indices = @transform_3, window_bounds = array<i64: 1, 32>}, {transform_indices = @transform_4, window_bounds = array<i64: 48, 32>}]} {
    %c0 = arith.constant 0 : index
    %c0_0 = arith.constant 0 : index
    %0 = vector.load %arg2[%c0, %c0_0] : memref<48x32xbf16, #tpu.memory_space<vmem>>, vector<48x32xbf16>
    %c0_1 = arith.constant 0 : index
    %c0_2 = arith.constant 0 : index
    %1 = vector.load %arg3[%c0_1, %c0_2] : memref<32x32xbf16, #tpu.memory_space<vmem>>, vector<32x32xbf16>
    %cst = arith.constant dense<0.000000e+00> : vector<48x32xf32>
    %2 = tpu.matmul %0, %1, %cst {dimension_numbers = #tpu.dot_dimension_numbers<[1], [0], [0], [1], [0, 0, 1, 1], [], []>} : vector<48x32xbf16>, vector<32x32xbf16>, vector<48x32xf32> -> vector<48x32xf32>
    %c0_3 = arith.constant 0 : index
    %c0_4 = arith.constant 0 : index
    %3 = vector.load %arg4[%c0_3, %c0_4] : memref<1x32xf32, #tpu.memory_space<vmem>>, vector<1x32xf32>
    %4 = vector.broadcast %3 : vector<1x32xf32> to vector<48x32xf32>
    %5 = arith.addf %2, %4 : vector<48x32xf32>
    %c0_5 = arith.constant 0 : index
    %c0_6 = arith.constant 0 : index
    %6 = vector.load %arg1[%c0_5, %c0_6] : memref<48x32xf32, #tpu.memory_space<vmem>>, vector<48x32xf32>
    %7 = arith.addf %6, %5 : vector<48x32xf32>
    %c0_7 = arith.constant 0 : index
    %c0_8 = arith.constant 0 : index
    %8 = vector.load %arg5[%c0_7, %c0_8] : memref<48x32xf32, #tpu.memory_space<vmem>>, vector<48x32xf32>
    tpu.vector_store %arg5[%c0_7, %c0_8], %7 {strides = array<i32>} : memref<48x32xf32, #tpu.memory_space<vmem>>, vector<48x32xf32>,
    return
  }
  func.func @transform_0(%arg0: i32) -> (i32, i32) {
    %c0_i32 = arith.constant 0 : i32
    %c0_i32_0 = arith.constant 0 : i32
    return %arg0, %c0_i32 : i32, i32
  }
  func.func @transform_1(%arg0: i32) -> (i32, i32) {
    %c0_i32 = arith.constant 0 : i32
    %c0_i32_0 = arith.constant 0 : i32
    return %arg0, %c0_i32 : i32, i32
  }
  func.func @transform_2(%arg0: i32) -> (i32, i32) {
    %c0_i32 = arith.constant 0 : i32
    %c0_i32_0 = arith.constant 0 : i32
    %c0_i32_1 = arith.constant 0 : i32
    return %c0_i32, %c0_i32_0 : i32, i32
  }
  func.func @transform_3(%arg0: i32) -> (i32, i32) {
    %c0_i32 = arith.constant 0 : i32
    %c0_i32_0 = arith.constant 0 : i32
    %c0_i32_1 = arith.constant 0 : i32
    return %c0_i32, %c0_i32_0 : i32, i32
  }
  func.func @transform_4(%arg0: i32) -> (i32, i32) {
    %c0_i32 = arith.constant 0 : i32
    %c0_i32_0 = arith.constant 0 : i32
    return %arg0, %c0_i32 : i32, i32
  }
}

module attributes {stable_mosaic.version = 11 : i64} {
  func.func @_ln_mlp_residual_kernel(%arg0: i32, %arg1: memref<48x32xf32, #tpu.memory_space<vmem>>, %arg2: memref<1x32xf32, #tpu.memory_space<vmem>>, %arg3: memref<1x32xf32, #tpu.memory_space<vmem>>, %arg4: memref<32x128xbf16, #tpu.memory_space<vmem>>, %arg5: memref<1x128xf32, #tpu.memory_space<vmem>>, %arg6: memref<128x32xbf16, #tpu.memory_space<vmem>>, %arg7: memref<1x32xf32, #tpu.memory_space<vmem>>, %arg8: memref<48x32xf32, #tpu.memory_space<vmem>>) attributes {dimension_semantics = [#tpu.dimension_semantics<parallel>], iteration_bounds = array<i64: 1>, scalar_prefetch = 0 : i64, scratch_operands = 0 : i64, tpu.core_type = #tpu.core_type<tc>, window_params = [{transform_indices = @transform_0, window_bounds = array<i64: 48, 32>}, {pipeline_mode = #tpu.pipeline_mode<synchronous>, transform_indices = @transform_1, window_bounds = array<i64: 1, 32>}, {pipeline_mode = #tpu.pipeline_mode<synchronous>, transform_indices = @transform_2, window_bounds = array<i64: 1, 32>}, {pipeline_mode = #tpu.pipeline_mode<synchronous>, transform_indices = @transform_3, window_bounds = array<i64: 32, 128>}, {pipeline_mode = #tpu.pipeline_mode<synchronous>, transform_indices = @transform_4, window_bounds = array<i64: 1, 128>}, {pipeline_mode = #tpu.pipeline_mode<synchronous>, transform_indices = @transform_5, window_bounds = array<i64: 128, 32>}, {pipeline_mode = #tpu.pipeline_mode<synchronous>, transform_indices = @transform_6, window_bounds = array<i64: 1, 32>}, {transform_indices = @transform_7, window_bounds = array<i64: 48, 32>}]} {
    %c0 = arith.constant 0 : index
    %c0_0 = arith.constant 0 : index
    %0 = vector.load %arg1[%c0, %c0_0] : memref<48x32xf32, #tpu.memory_space<vmem>>, vector<48x32xf32>
    %cst = arith.constant dense<0.000000e+00> : vector<48xf32>
    %1 = vector.multi_reduction <add>, %0, %cst [1] : vector<48x32xf32> to vector<48xf32>
    %2 = vector.shape_cast %1 : vector<48xf32> to vector<48x1xf32>
    %cst_1 = arith.constant 3.200000e+01 : f32
    %3 = vector.broadcast %cst_1 : f32 to vector<48x1xf32>
    %4 = arith.divf %2, %3 : vector<48x1xf32>
    %5 = vector.broadcast %4 : vector<48x1xf32> to vector<48x32xf32>
    %6 = arith.subf %0, %5 : vector<48x32xf32>
    %7 = arith.mulf %6, %6 : vector<48x32xf32>
    %cst_2 = arith.constant dense<0.000000e+00> : vector<48xf32>
    %8 = vector.multi_reduction <add>, %7, %cst_2 [1] : vector<48x32xf32> to vector<48xf32>
    %9 = vector.shape_cast %8 : vector<48xf32> to vector<48x1xf32>
    %cst_3 = arith.constant 3.200000e+01 : f32
    %10 = vector.broadcast %cst_3 : f32 to vector<48x1xf32>
    %11 = arith.divf %9, %10 : vector<48x1xf32>
    %cst_4 = arith.constant 9.99999974E-6 : f32
    %12 = vector.broadcast %cst_4 : f32 to vector<48x1xf32>
    %13 = arith.addf %11, %12 : vector<48x1xf32>
    %14 = math.rsqrt %13 : vector<48x1xf32>
    %15 = vector.broadcast %14 : vector<48x1xf32> to vector<48x32xf32>
    %16 = arith.mulf %6, %15 : vector<48x32xf32>
    %c0_5 = arith.constant 0 : index
    %c0_6 = arith.constant 0 : index
    %17 = vector.load %arg2[%c0_5, %c0_6] : memref<1x32xf32, #tpu.memory_space<vmem>>, vector<1x32xf32>
    %18 = vector.broadcast %17 : vector<1x32xf32> to vector<48x32xf32>
    %19 = arith.mulf %16, %18 : vector<48x32xf32>
    %c0_7 = arith.constant 0 : index
    %c0_8 = arith.constant 0 : index
    %20 = vector.load %arg3[%c0_7, %c0_8] : memref<1x32xf32, #tpu.memory_space<vmem>>, vector<1x32xf32>
    %21 = vector.broadcast %20 : vector<1x32xf32> to vector<48x32xf32>
    %22 = arith.addf %19, %21 : vector<48x32xf32>
    %23 = arith.truncf %22 : vector<48x32xf32> to vector<48x32xbf16>
    %c0_9 = arith.constant 0 : index
    %c0_10 = arith.constant 0 : index
    %24 = vector.load %arg4[%c0_9, %c0_10] : memref<32x128xbf16, #tpu.memory_space<vmem>>, vector<32x128xbf16>
    %cst_11 = arith.constant dense<0.000000e+00> : vector<48x128xf32>
    %25 = tpu.matmul %23, %24, %cst_11 {dimension_numbers = #tpu.dot_dimension_numbers<[1], [0], [0], [1], [0, 0, 1, 1], [], []>} : vector<48x32xbf16>, vector<32x128xbf16>, vector<48x128xf32> -> vector<48x128xf32>
    %c0_12 = arith.constant 0 : index
    %c0_13 = arith.constant 0 : index
    %26 = vector.load %arg5[%c0_12, %c0_13] : memref<1x128xf32, #tpu.memory_space<vmem>>, vector<1x128xf32>
    %27 = vector.broadcast %26 : vector<1x128xf32> to vector<48x128xf32>
    %28 = arith.addf %25, %27 : vector<48x128xf32>
    %cst_14 = arith.constant 1.702000e+00 : f32
    %29 = vector.broadcast %cst_14 : f32 to vector<48x128xf32>
    %30 = arith.mulf %29, %28 : vector<48x128xf32>
    %31 = arith.negf %30 : vector<48x128xf32>
    %32 = math.exp %31 : vector<48x128xf32>
    %cst_15 = arith.constant 1.000000e+00 : f32
    %33 = vector.broadcast %cst_15 : f32 to vector<48x128xf32>
    %34 = arith.addf %33, %32 : vector<48x128xf32>
    %35 = arith.divf %33, %34 : vector<48x128xf32>
    %36 = arith.mulf %28, %35 : vector<48x128xf32>
    %37 = arith.truncf %36 : vector<48x128xf32> to vector<48x128xbf16>
    %c0_16 = arith.constant 0 : index
    %c0_17 = arith.constant 0 : index
    %38 = vector.load %arg6[%c0_16, %c0_17] : memref<128x32xbf16, #tpu.memory_space<vmem>>, vector<128x32xbf16>
    %cst_18 = arith.constant dense<0.000000e+00> : vector<48x32xf32>
    %39 = tpu.matmul %37, %38, %cst_18 {dimension_numbers = #tpu.dot_dimension_numbers<[1], [0], [0], [1], [0, 0, 1, 1], [], []>} : vector<48x128xbf16>, vector<128x32xbf16>, vector<48x32xf32> -> vector<48x32xf32>
    %c0_19 = arith.constant 0 : index
    %c0_20 = arith.constant 0 : index
    %40 = vector.load %arg7[%c0_19, %c0_20] : memref<1x32xf32, #tpu.memory_space<vmem>>, vector<1x32xf32>
    %41 = vector.broadcast %40 : vector<1x32xf32> to vector<48x32xf32>
    %42 = arith.addf %39, %41 : vector<48x32xf32>
    %43 = arith.addf %0, %42 : vector<48x32xf32>
    %c0_21 = arith.constant 0 : index
    %c0_22 = arith.constant 0 : index
    %44 = vector.load %arg8[%c0_21, %c0_22] : memref<48x32xf32, #tpu.memory_space<vmem>>, vector<48x32xf32>
    tpu.vector_store %arg8[%c0_21, %c0_22], %43 {strides = array<i32>} : memref<48x32xf32, #tpu.memory_space<vmem>>, vector<48x32xf32>,
    return
  }
  func.func @transform_0(%arg0: i32) -> (i32, i32) {
    %c0_i32 = arith.constant 0 : i32
    %c0_i32_0 = arith.constant 0 : i32
    return %arg0, %c0_i32 : i32, i32
  }
  func.func @transform_1(%arg0: i32) -> (i32, i32) {
    %c0_i32 = arith.constant 0 : i32
    %c0_i32_0 = arith.constant 0 : i32
    %c0_i32_1 = arith.constant 0 : i32
    return %c0_i32, %c0_i32_0 : i32, i32
  }
  func.func @transform_2(%arg0: i32) -> (i32, i32) {
    %c0_i32 = arith.constant 0 : i32
    %c0_i32_0 = arith.constant 0 : i32
    %c0_i32_1 = arith.constant 0 : i32
    return %c0_i32, %c0_i32_0 : i32, i32
  }
  func.func @transform_3(%arg0: i32) -> (i32, i32) {
    %c0_i32 = arith.constant 0 : i32
    %c0_i32_0 = arith.constant 0 : i32
    %c0_i32_1 = arith.constant 0 : i32
    return %c0_i32, %c0_i32_0 : i32, i32
  }
  func.func @transform_4(%arg0: i32) -> (i32, i32) {
    %c0_i32 = arith.constant 0 : i32
    %c0_i32_0 = arith.constant 0 : i32
    %c0_i32_1 = arith.constant 0 : i32
    return %c0_i32, %c0_i32_0 : i32, i32
  }
  func.func @transform_5(%arg0: i32) -> (i32, i32) {
    %c0_i32 = arith.constant 0 : i32
    %c0_i32_0 = arith.constant 0 : i32
    %c0_i32_1 = arith.constant 0 : i32
    return %c0_i32, %c0_i32_0 : i32, i32
  }
  func.func @transform_6(%arg0: i32) -> (i32, i32) {
    %c0_i32 = arith.constant 0 : i32
    %c0_i32_0 = arith.constant 0 : i32
    %c0_i32_1 = arith.constant 0 : i32
    return %c0_i32, %c0_i32_0 : i32, i32
  }
  func.func @transform_7(%arg0: i32) -> (i32, i32) {
    %c0_i32 = arith.constant 0 : i32
    %c0_i32_0 = arith.constant 0 : i32
    return %arg0, %c0_i32 : i32, i32
  }
}

module attributes {stable_mosaic.version = 11 : i64} {
  func.func @_ln_matmul_kernel(%arg0: i32, %arg1: memref<16x32xf32, #tpu.memory_space<vmem>>, %arg2: memref<1x32xf32, #tpu.memory_space<vmem>>, %arg3: memref<1x32xf32, #tpu.memory_space<vmem>>, %arg4: memref<32x32xbf16, #tpu.memory_space<vmem>>, %arg5: memref<1x32xf32, #tpu.memory_space<vmem>>, %arg6: memref<16x32xbf16, #tpu.memory_space<vmem>>) attributes {dimension_semantics = [#tpu.dimension_semantics<parallel>], iteration_bounds = array<i64: 1>, scalar_prefetch = 0 : i64, scratch_operands = 0 : i64, tpu.core_type = #tpu.core_type<tc>, window_params = [{transform_indices = @transform_0, window_bounds = array<i64: 16, 32>}, {pipeline_mode = #tpu.pipeline_mode<synchronous>, transform_indices = @transform_1, window_bounds = array<i64: 1, 32>}, {pipeline_mode = #tpu.pipeline_mode<synchronous>, transform_indices = @transform_2, window_bounds = array<i64: 1, 32>}, {pipeline_mode = #tpu.pipeline_mode<synchronous>, transform_indices = @transform_3, window_bounds = array<i64: 32, 32>}, {pipeline_mode = #tpu.pipeline_mode<synchronous>, transform_indices = @transform_4, window_bounds = array<i64: 1, 32>}, {transform_indices = @transform_5, window_bounds = array<i64: 16, 32>}]} {
    %c0 = arith.constant 0 : index
    %c0_0 = arith.constant 0 : index
    %0 = vector.load %arg1[%c0, %c0_0] : memref<16x32xf32, #tpu.memory_space<vmem>>, vector<16x32xf32>
    %cst = arith.constant dense<0.000000e+00> : vector<16xf32>
    %1 = vector.multi_reduction <add>, %0, %cst [1] : vector<16x32xf32> to vector<16xf32>
    %2 = vector.shape_cast %1 : vector<16xf32> to vector<16x1xf32>
    %cst_1 = arith.constant 3.200000e+01 : f32
    %3 = vector.broadcast %cst_1 : f32 to vector<16x1xf32>
    %4 = arith.divf %2, %3 : vector<16x1xf32>
    %5 = vector.broadcast %4 : vector<16x1xf32> to vector<16x32xf32>
    %6 = arith.subf %0, %5 : vector<16x32xf32>
    %7 = arith.mulf %6, %6 : vector<16x32xf32>
    %cst_2 = arith.constant dense<0.000000e+00> : vector<16xf32>
    %8 = vector.multi_reduction <add>, %7, %cst_2 [1] : vector<16x32xf32> to vector<16xf32>
    %9 = vector.shape_cast %8 : vector<16xf32> to vector<16x1xf32>
    %cst_3 = arith.constant 3.200000e+01 : f32
    %10 = vector.broadcast %cst_3 : f32 to vector<16x1xf32>
    %11 = arith.divf %9, %10 : vector<16x1xf32>
    %cst_4 = arith.constant 9.99999974E-6 : f32
    %12 = vector.broadcast %cst_4 : f32 to vector<16x1xf32>
    %13 = arith.addf %11, %12 : vector<16x1xf32>
    %14 = math.rsqrt %13 : vector<16x1xf32>
    %15 = vector.broadcast %14 : vector<16x1xf32> to vector<16x32xf32>
    %16 = arith.mulf %6, %15 : vector<16x32xf32>
    %c0_5 = arith.constant 0 : index
    %c0_6 = arith.constant 0 : index
    %17 = vector.load %arg2[%c0_5, %c0_6] : memref<1x32xf32, #tpu.memory_space<vmem>>, vector<1x32xf32>
    %18 = vector.broadcast %17 : vector<1x32xf32> to vector<16x32xf32>
    %19 = arith.mulf %16, %18 : vector<16x32xf32>
    %c0_7 = arith.constant 0 : index
    %c0_8 = arith.constant 0 : index
    %20 = vector.load %arg3[%c0_7, %c0_8] : memref<1x32xf32, #tpu.memory_space<vmem>>, vector<1x32xf32>
    %21 = vector.broadcast %20 : vector<1x32xf32> to vector<16x32xf32>
    %22 = arith.addf %19, %21 : vector<16x32xf32>
    %23 = arith.truncf %22 : vector<16x32xf32> to vector<16x32xbf16>
    %c0_9 = arith.constant 0 : index
    %c0_10 = arith.constant 0 : index
    %24 = vector.load %arg4[%c0_9, %c0_10] : memref<32x32xbf16, #tpu.memory_space<vmem>>, vector<32x32xbf16>
    %cst_11 = arith.constant dense<0.000000e+00> : vector<16x32xf32>
    %25 = tpu.matmul %23, %24, %cst_11 {dimension_numbers = #tpu.dot_dimension_numbers<[1], [0], [0], [1], [0, 0, 1, 1], [], []>} : vector<16x32xbf16>, vector<32x32xbf16>, vector<16x32xf32> -> vector<16x32xf32>
    %c0_12 = arith.constant 0 : index
    %c0_13 = arith.constant 0 : index
    %26 = vector.load %arg5[%c0_12, %c0_13] : memref<1x32xf32, #tpu.memory_space<vmem>>, vector<1x32xf32>
    %27 = vector.broadcast %26 : vector<1x32xf32> to vector<16x32xf32>
    %28 = arith.addf %25, %27 : vector<16x32xf32>
    %29 = arith.truncf %28 : vector<16x32xf32> to vector<16x32xbf16>
    %c0_14 = arith.constant 0 : index
    %c0_15 = arith.constant 0 : index
    %30 = vector.load %arg6[%c0_14, %c0_15] : memref<16x32xbf16, #tpu.memory_space<vmem>>, vector<16x32xbf16>
    tpu.vector_store %arg6[%c0_14, %c0_15], %29 {strides = array<i32>} : memref<16x32xbf16, #tpu.memory_space<vmem>>, vector<16x32xbf16>,
    return
  }
  func.func @transform_0(%arg0: i32) -> (i32, i32) {
    %c0_i32 = arith.constant 0 : i32
    %c0_i32_0 = arith.constant 0 : i32
    return %arg0, %c0_i32 : i32, i32
  }
  func.func @transform_1(%arg0: i32) -> (i32, i32) {
    %c0_i32 = arith.constant 0 : i32
    %c0_i32_0 = arith.constant 0 : i32
    %c0_i32_1 = arith.constant 0 : i32
    return %c0_i32, %c0_i32_0 : i32, i32
  }
  func.func @transform_2(%arg0: i32) -> (i32, i32) {
    %c0_i32 = arith.constant 0 : i32
    %c0_i32_0 = arith.constant 0 : i32
    %c0_i32_1 = arith.constant 0 : i32
    return %c0_i32, %c0_i32_0 : i32, i32
  }
  func.func @transform_3(%arg0: i32) -> (i32, i32) {
    %c0_i32 = arith.constant 0 : i32
    %c0_i32_0 = arith.constant 0 : i32
    %c0_i32_1 = arith.constant 0 : i32
    return %c0_i32, %c0_i32_0 : i32, i32
  }
  func.func @transform_4(%arg0: i32) -> (i32, i32) {
    %c0_i32 = arith.constant 0 : i32
    %c0_i32_0 = arith.constant 0 : i32
    %c0_i32_1 = arith.constant 0 : i32
    return %c0_i32, %c0_i32_0 : i32, i32
  }
  func.func @transform_5(%arg0: i32) -> (i32, i32) {
    %c0_i32 = arith.constant 0 : i32
    %c0_i32_0 = arith.constant 0 : i32
    return %arg0, %c0_i32 : i32, i32
  }
}

module attributes {stable_mosaic.version = 11 : i64} {
  func.func @_attn_core_w_kernel(%arg0: i32, %arg1: memref<1x4x4x8xbf16, #tpu.memory_space<vmem>>, %arg2: memref<1x4x17x8xbf16, #tpu.memory_space<vmem>>, %arg3: memref<1x4x17x8xbf16, #tpu.memory_space<vmem>>, %arg4: memref<1x4x17xf32, #tpu.memory_space<vmem>>, %arg5: memref<1x4x4x8xbf16, #tpu.memory_space<vmem>>, %arg6: memref<1x4x17xf32, #tpu.memory_space<vmem>>) attributes {dimension_semantics = [#tpu.dimension_semantics<parallel>], iteration_bounds = array<i64: 2>, scalar_prefetch = 0 : i64, scratch_operands = 0 : i64, tpu.core_type = #tpu.core_type<tc>, window_params = [{transform_indices = @transform_0, window_bounds = array<i64: 1, 4, 4, 8>}, {transform_indices = @transform_1, window_bounds = array<i64: 1, 4, 17, 8>}, {transform_indices = @transform_2, window_bounds = array<i64: 1, 4, 17, 8>}, {transform_indices = @transform_3, window_bounds = array<i64: 1, 4, 17>}, {transform_indices = @transform_4, window_bounds = array<i64: 1, 4, 4, 8>}, {transform_indices = @transform_5, window_bounds = array<i64: 1, 4, 17>}]} {
    %c0 = arith.constant 0 : index
    %c0_0 = arith.constant 0 : index
    %c0_1 = arith.constant 0 : index
    %c0_2 = arith.constant 0 : index
    %0 = vector.load %arg1[%c0, %c0_0, %c0_1, %c0_2] : memref<1x4x4x8xbf16, #tpu.memory_space<vmem>>, vector<1x4x4x8xbf16>
    %1 = vector.shape_cast %0 : vector<1x4x4x8xbf16> to vector<4x4x8xbf16>
    %c0_3 = arith.constant 0 : index
    %c0_4 = arith.constant 0 : index
    %c0_5 = arith.constant 0 : index
    %c0_6 = arith.constant 0 : index
    %2 = vector.load %arg2[%c0_3, %c0_4, %c0_5, %c0_6] : memref<1x4x17x8xbf16, #tpu.memory_space<vmem>>, vector<1x4x17x8xbf16>
    %3 = vector.shape_cast %2 : vector<1x4x17x8xbf16> to vector<4x17x8xbf16>
    %c0_7 = arith.constant 0 : index
    %c0_8 = arith.constant 0 : index
    %c0_9 = arith.constant 0 : index
    %c0_10 = arith.constant 0 : index
    %4 = vector.load %arg3[%c0_7, %c0_8, %c0_9, %c0_10] : memref<1x4x17x8xbf16, #tpu.memory_space<vmem>>, vector<1x4x17x8xbf16>
    %5 = vector.shape_cast %4 : vector<1x4x17x8xbf16> to vector<4x17x8xbf16>
    "tpu.trace_start"() <{level = 10 : i32, message = "hqd,hkd->hqk"}> : () -> ()
    %cst = arith.constant dense<0.000000e+00> : vector<4x4x17xf32>
    %6 = tpu.matmul %1, %3, %cst {dimension_numbers = #tpu.dot_dimension_numbers<[2], [2], [1], [1], [0, 0, 0, 1, 1, 1], [0], [0]>} : vector<4x4x8xbf16>, vector<4x17x8xbf16>, vector<4x4x17xf32> -> vector<4x4x17xf32>
    "tpu.trace_stop"() : () -> ()
    %cst_11 = arith.constant 0.353553385 : f32
    %7 = vector.broadcast %cst_11 : f32 to vector<4x4x17xf32>
    %8 = arith.mulf %6, %7 : vector<4x4x17xf32>
    %c0_12 = arith.constant 0 : index
    %c0_13 = arith.constant 0 : index
    %c0_14 = arith.constant 0 : index
    %9 = vector.load %arg4[%c0_12, %c0_13, %c0_14] : memref<1x4x17xf32, #tpu.memory_space<vmem>>, vector<1x4x17xf32>
    %10 = vector.shape_cast %9 : vector<1x4x17xf32> to vector<4x17xf32>
    %11 = vector.shape_cast %10 : vector<4x17xf32> to vector<1x4x17xf32>
    %12 = vector.broadcast %11 : vector<1x4x17xf32> to vector<4x4x17xf32>
    %13 = arith.addf %8, %12 : vector<4x4x17xf32>
    %cst_15 = arith.constant dense<0xFF800000> : vector<4x4xf32>
    %14 = vector.multi_reduction <maximumf>, %13, %cst_15 [2] : vector<4x4x17xf32> to vector<4x4xf32>
    %15 = vector.shape_cast %14 : vector<4x4xf32> to vector<4x4x1xf32>
    %16 = vector.broadcast %15 : vector<4x4x1xf32> to vector<4x4x17xf32>
    %17 = arith.subf %13, %16 : vector<4x4x17xf32>
    %18 = math.exp %17 : vector<4x4x17xf32>
    %cst_16 = arith.constant dense<0.000000e+00> : vector<4x4xf32>
    %19 = vector.multi_reduction <add>, %18, %cst_16 [2] : vector<4x4x17xf32> to vector<4x4xf32>
    %20 = vector.shape_cast %19 : vector<4x4xf32> to vector<4x4x1xf32>
    %21 = tpu.reciprocal %20 {approx = true} : vector<4x4x1xf32> -> vector<4x4x1xf32>
    %22 = vector.broadcast %21 : vector<4x4x1xf32> to vector<4x4x17xf32>
    %23 = arith.mulf %18, %22 : vector<4x4x17xf32>
    %cst_17 = arith.constant dense<0.000000e+00> : vector<4x17xf32>
    %24 = vector.multi_reduction <add>, %23, %cst_17 [0] : vector<4x4x17xf32> to vector<4x17xf32>
    %cst_18 = arith.constant 2.500000e-01 : f32
    %25 = vector.broadcast %cst_18 : f32 to vector<4x17xf32>
    %26 = arith.mulf %24, %25 : vector<4x17xf32>
    %c0_19 = arith.constant 0 : index
    %c0_20 = arith.constant 0 : index
    %c0_21 = arith.constant 0 : index
    %27 = vector.load %arg6[%c0_19, %c0_20, %c0_21] : memref<1x4x17xf32, #tpu.memory_space<vmem>>, vector<1x4x17xf32>
    %28 = vector.shape_cast %27 : vector<1x4x17xf32> to vector<4x17xf32>
    %29 = vector.shape_cast %26 : vector<4x17xf32> to vector<1x4x17xf32>
    tpu.vector_store %arg6[%c0_19, %c0_20, %c0_21], %29 {strides = array<i32>} : memref<1x4x17xf32, #tpu.memory_space<vmem>>, vector<1x4x17xf32>,
    %30 = arith.truncf %23 : vector<4x4x17xf32> to vector<4x4x17xbf16>
    "tpu.trace_start"() <{level = 10 : i32, message = "hqk,hkd->hqd"}> : () -> ()
    %cst_22 = arith.constant dense<0.000000e+00> : vector<4x4x8xf32>
    %31 = tpu.matmul %30, %5, %cst_22 {dimension_numbers = #tpu.dot_dimension_numbers<[2], [1], [1], [2], [0, 0, 0, 1, 1, 2], [0], [0]>} : vector<4x4x17xbf16>, vector<4x17x8xbf16>, vector<4x4x8xf32> -> vector<4x4x8xf32>
    "tpu.trace_stop"() : () -> ()
    %32 = arith.truncf %31 : vector<4x4x8xf32> to vector<4x4x8xbf16>
    %c0_23 = arith.constant 0 : index
    %c0_24 = arith.constant 0 : index
    %c0_25 = arith.constant 0 : index
    %c0_26 = arith.constant 0 : index
    %33 = vector.load %arg5[%c0_23, %c0_24, %c0_25, %c0_26] : memref<1x4x4x8xbf16, #tpu.memory_space<vmem>>, vector<1x4x4x8xbf16>
    %34 = vector.shape_cast %33 : vector<1x4x4x8xbf16> to vector<4x4x8xbf16>
    %35 = vector.shape_cast %32 : vector<4x4x8xbf16> to vector<1x4x4x8xbf16>
    tpu.vector_store %arg5[%c0_23, %c0_24, %c0_25, %c0_26], %35 {strides = array<i32>} : memref<1x4x4x8xbf16, #tpu.memory_space<vmem>>, vector<1x4x4x8xbf16>,
    return
  }
  func.func @transform_0(%arg0: i32) -> (i32, i32, i32, i32) {
    %c0_i32 = arith.constant 0 : i32
    %c0_i32_0 = arith.constant 0 : i32
    %c0_i32_1 = arith.constant 0 : i32
    %c0_i32_2 = arith.constant 0 : i32
    return %arg0, %c0_i32, %c0_i32_0, %c0_i32_1 : i32, i32, i32, i32
  }
  func.func @transform_1(%arg0: i32) -> (i32, i32, i32, i32) {
    %c0_i32 = arith.constant 0 : i32
    %c0_i32_0 = arith.constant 0 : i32
    %c0_i32_1 = arith.constant 0 : i32
    %c0_i32_2 = arith.constant 0 : i32
    return %arg0, %c0_i32, %c0_i32_0, %c0_i32_1 : i32, i32, i32, i32
  }
  func.func @transform_2(%arg0: i32) -> (i32, i32, i32, i32) {
    %c0_i32 = arith.constant 0 : i32
    %c0_i32_0 = arith.constant 0 : i32
    %c0_i32_1 = arith.constant 0 : i32
    %c0_i32_2 = arith.constant 0 : i32
    return %arg0, %c0_i32, %c0_i32_0, %c0_i32_1 : i32, i32, i32, i32
  }
  func.func @transform_3(%arg0: i32) -> (i32, i32, i32) {
    %c0_i32 = arith.constant 0 : i32
    %c0_i32_0 = arith.constant 0 : i32
    %c0_i32_1 = arith.constant 0 : i32
    return %arg0, %c0_i32, %c0_i32_0 : i32, i32, i32
  }
  func.func @transform_4(%arg0: i32) -> (i32, i32, i32, i32) {
    %c0_i32 = arith.constant 0 : i32
    %c0_i32_0 = arith.constant 0 : i32
    %c0_i32_1 = arith.constant 0 : i32
    %c0_i32_2 = arith.constant 0 : i32
    return %arg0, %c0_i32, %c0_i32_0, %c0_i32_1 : i32, i32, i32, i32
  }
  func.func @transform_5(%arg0: i32) -> (i32, i32, i32) {
    %c0_i32 = arith.constant 0 : i32
    %c0_i32_0 = arith.constant 0 : i32
    %c0_i32_1 = arith.constant 0 : i32
    return %arg0, %c0_i32, %c0_i32_0 : i32, i32, i32
  }
}

module attributes {stable_mosaic.version = 11 : i64} {
  func.func @_proj_residual_kernel(%arg0: i32, %arg1: memref<16x32xf32, #tpu.memory_space<vmem>>, %arg2: memref<16x32xbf16, #tpu.memory_space<vmem>>, %arg3: memref<32x32xbf16, #tpu.memory_space<vmem>>, %arg4: memref<1x32xf32, #tpu.memory_space<vmem>>, %arg5: memref<16x32xf32, #tpu.memory_space<vmem>>) attributes {dimension_semantics = [#tpu.dimension_semantics<parallel>], iteration_bounds = array<i64: 1>, scalar_prefetch = 0 : i64, scratch_operands = 0 : i64, tpu.core_type = #tpu.core_type<tc>, window_params = [{transform_indices = @transform_0, window_bounds = array<i64: 16, 32>}, {transform_indices = @transform_1, window_bounds = array<i64: 16, 32>}, {pipeline_mode = #tpu.pipeline_mode<synchronous>, transform_indices = @transform_2, window_bounds = array<i64: 32, 32>}, {pipeline_mode = #tpu.pipeline_mode<synchronous>, transform_indices = @transform_3, window_bounds = array<i64: 1, 32>}, {transform_indices = @transform_4, window_bounds = array<i64: 16, 32>}]} {
    %c0 = arith.constant 0 : index
    %c0_0 = arith.constant 0 : index
    %0 = vector.load %arg2[%c0, %c0_0] : memref<16x32xbf16, #tpu.memory_space<vmem>>, vector<16x32xbf16>
    %c0_1 = arith.constant 0 : index
    %c0_2 = arith.constant 0 : index
    %1 = vector.load %arg3[%c0_1, %c0_2] : memref<32x32xbf16, #tpu.memory_space<vmem>>, vector<32x32xbf16>
    %cst = arith.constant dense<0.000000e+00> : vector<16x32xf32>
    %2 = tpu.matmul %0, %1, %cst {dimension_numbers = #tpu.dot_dimension_numbers<[1], [0], [0], [1], [0, 0, 1, 1], [], []>} : vector<16x32xbf16>, vector<32x32xbf16>, vector<16x32xf32> -> vector<16x32xf32>
    %c0_3 = arith.constant 0 : index
    %c0_4 = arith.constant 0 : index
    %3 = vector.load %arg4[%c0_3, %c0_4] : memref<1x32xf32, #tpu.memory_space<vmem>>, vector<1x32xf32>
    %4 = vector.broadcast %3 : vector<1x32xf32> to vector<16x32xf32>
    %5 = arith.addf %2, %4 : vector<16x32xf32>
    %c0_5 = arith.constant 0 : index
    %c0_6 = arith.constant 0 : index
    %6 = vector.load %arg1[%c0_5, %c0_6] : memref<16x32xf32, #tpu.memory_space<vmem>>, vector<16x32xf32>
    %7 = arith.addf %6, %5 : vector<16x32xf32>
    %c0_7 = arith.constant 0 : index
    %c0_8 = arith.constant 0 : index
    %8 = vector.load %arg5[%c0_7, %c0_8] : memref<16x32xf32, #tpu.memory_space<vmem>>, vector<16x32xf32>
    tpu.vector_store %arg5[%c0_7, %c0_8], %7 {strides = array<i32>} : memref<16x32xf32, #tpu.memory_space<vmem>>, vector<16x32xf32>,
    return
  }
  func.func @transform_0(%arg0: i32) -> (i32, i32) {
    %c0_i32 = arith.constant 0 : i32
    %c0_i32_0 = arith.constant 0 : i32
    return %arg0, %c0_i32 : i32, i32
  }
  func.func @transform_1(%arg0: i32) -> (i32, i32) {
    %c0_i32 = arith.constant 0 : i32
    %c0_i32_0 = arith.constant 0 : i32
    return %arg0, %c0_i32 : i32, i32
  }
  func.func @transform_2(%arg0: i32) -> (i32, i32) {
    %c0_i32 = arith.constant 0 : i32
    %c0_i32_0 = arith.constant 0 : i32
    %c0_i32_1 = arith.constant 0 : i32
    return %c0_i32, %c0_i32_0 : i32, i32
  }
  func.func @transform_3(%arg0: i32) -> (i32, i32) {
    %c0_i32 = arith.constant 0 : i32
    %c0_i32_0 = arith.constant 0 : i32
    %c0_i32_1 = arith.constant 0 : i32
    return %c0_i32, %c0_i32_0 : i32, i32
  }
  func.func @transform_4(%arg0: i32) -> (i32, i32) {
    %c0_i32 = arith.constant 0 : i32
    %c0_i32_0 = arith.constant 0 : i32
    return %arg0, %c0_i32 : i32, i32
  }
}

module attributes {stable_mosaic.version = 11 : i64} {
  func.func @_ln_mlp_residual_kernel(%arg0: i32, %arg1: memref<16x32xf32, #tpu.memory_space<vmem>>, %arg2: memref<1x32xf32, #tpu.memory_space<vmem>>, %arg3: memref<1x32xf32, #tpu.memory_space<vmem>>, %arg4: memref<32x128xbf16, #tpu.memory_space<vmem>>, %arg5: memref<1x128xf32, #tpu.memory_space<vmem>>, %arg6: memref<128x32xbf16, #tpu.memory_space<vmem>>, %arg7: memref<1x32xf32, #tpu.memory_space<vmem>>, %arg8: memref<16x32xf32, #tpu.memory_space<vmem>>) attributes {dimension_semantics = [#tpu.dimension_semantics<parallel>], iteration_bounds = array<i64: 1>, scalar_prefetch = 0 : i64, scratch_operands = 0 : i64, tpu.core_type = #tpu.core_type<tc>, window_params = [{transform_indices = @transform_0, window_bounds = array<i64: 16, 32>}, {pipeline_mode = #tpu.pipeline_mode<synchronous>, transform_indices = @transform_1, window_bounds = array<i64: 1, 32>}, {pipeline_mode = #tpu.pipeline_mode<synchronous>, transform_indices = @transform_2, window_bounds = array<i64: 1, 32>}, {pipeline_mode = #tpu.pipeline_mode<synchronous>, transform_indices = @transform_3, window_bounds = array<i64: 32, 128>}, {pipeline_mode = #tpu.pipeline_mode<synchronous>, transform_indices = @transform_4, window_bounds = array<i64: 1, 128>}, {pipeline_mode = #tpu.pipeline_mode<synchronous>, transform_indices = @transform_5, window_bounds = array<i64: 128, 32>}, {pipeline_mode = #tpu.pipeline_mode<synchronous>, transform_indices = @transform_6, window_bounds = array<i64: 1, 32>}, {transform_indices = @transform_7, window_bounds = array<i64: 16, 32>}]} {
    %c0 = arith.constant 0 : index
    %c0_0 = arith.constant 0 : index
    %0 = vector.load %arg1[%c0, %c0_0] : memref<16x32xf32, #tpu.memory_space<vmem>>, vector<16x32xf32>
    %cst = arith.constant dense<0.000000e+00> : vector<16xf32>
    %1 = vector.multi_reduction <add>, %0, %cst [1] : vector<16x32xf32> to vector<16xf32>
    %2 = vector.shape_cast %1 : vector<16xf32> to vector<16x1xf32>
    %cst_1 = arith.constant 3.200000e+01 : f32
    %3 = vector.broadcast %cst_1 : f32 to vector<16x1xf32>
    %4 = arith.divf %2, %3 : vector<16x1xf32>
    %5 = vector.broadcast %4 : vector<16x1xf32> to vector<16x32xf32>
    %6 = arith.subf %0, %5 : vector<16x32xf32>
    %7 = arith.mulf %6, %6 : vector<16x32xf32>
    %cst_2 = arith.constant dense<0.000000e+00> : vector<16xf32>
    %8 = vector.multi_reduction <add>, %7, %cst_2 [1] : vector<16x32xf32> to vector<16xf32>
    %9 = vector.shape_cast %8 : vector<16xf32> to vector<16x1xf32>
    %cst_3 = arith.constant 3.200000e+01 : f32
    %10 = vector.broadcast %cst_3 : f32 to vector<16x1xf32>
    %11 = arith.divf %9, %10 : vector<16x1xf32>
    %cst_4 = arith.constant 9.99999974E-6 : f32
    %12 = vector.broadcast %cst_4 : f32 to vector<16x1xf32>
    %13 = arith.addf %11, %12 : vector<16x1xf32>
    %14 = math.rsqrt %13 : vector<16x1xf32>
    %15 = vector.broadcast %14 : vector<16x1xf32> to vector<16x32xf32>
    %16 = arith.mulf %6, %15 : vector<16x32xf32>
    %c0_5 = arith.constant 0 : index
    %c0_6 = arith.constant 0 : index
    %17 = vector.load %arg2[%c0_5, %c0_6] : memref<1x32xf32, #tpu.memory_space<vmem>>, vector<1x32xf32>
    %18 = vector.broadcast %17 : vector<1x32xf32> to vector<16x32xf32>
    %19 = arith.mulf %16, %18 : vector<16x32xf32>
    %c0_7 = arith.constant 0 : index
    %c0_8 = arith.constant 0 : index
    %20 = vector.load %arg3[%c0_7, %c0_8] : memref<1x32xf32, #tpu.memory_space<vmem>>, vector<1x32xf32>
    %21 = vector.broadcast %20 : vector<1x32xf32> to vector<16x32xf32>
    %22 = arith.addf %19, %21 : vector<16x32xf32>
    %23 = arith.truncf %22 : vector<16x32xf32> to vector<16x32xbf16>
    %c0_9 = arith.constant 0 : index
    %c0_10 = arith.constant 0 : index
    %24 = vector.load %arg4[%c0_9, %c0_10] : memref<32x128xbf16, #tpu.memory_space<vmem>>, vector<32x128xbf16>
    %cst_11 = arith.constant dense<0.000000e+00> : vector<16x128xf32>
    %25 = tpu.matmul %23, %24, %cst_11 {dimension_numbers = #tpu.dot_dimension_numbers<[1], [0], [0], [1], [0, 0, 1, 1], [], []>} : vector<16x32xbf16>, vector<32x128xbf16>, vector<16x128xf32> -> vector<16x128xf32>
    %c0_12 = arith.constant 0 : index
    %c0_13 = arith.constant 0 : index
    %26 = vector.load %arg5[%c0_12, %c0_13] : memref<1x128xf32, #tpu.memory_space<vmem>>, vector<1x128xf32>
    %27 = vector.broadcast %26 : vector<1x128xf32> to vector<16x128xf32>
    %28 = arith.addf %25, %27 : vector<16x128xf32>
    %cst_14 = arith.constant 1.702000e+00 : f32
    %29 = vector.broadcast %cst_14 : f32 to vector<16x128xf32>
    %30 = arith.mulf %29, %28 : vector<16x128xf32>
    %31 = arith.negf %30 : vector<16x128xf32>
    %32 = math.exp %31 : vector<16x128xf32>
    %cst_15 = arith.constant 1.000000e+00 : f32
    %33 = vector.broadcast %cst_15 : f32 to vector<16x128xf32>
    %34 = arith.addf %33, %32 : vector<16x128xf32>
    %35 = arith.divf %33, %34 : vector<16x128xf32>
    %36 = arith.mulf %28, %35 : vector<16x128xf32>
    %37 = arith.truncf %36 : vector<16x128xf32> to vector<16x128xbf16>
    %c0_16 = arith.constant 0 : index
    %c0_17 = arith.constant 0 : index
    %38 = vector.load %arg6[%c0_16, %c0_17] : memref<128x32xbf16, #tpu.memory_space<vmem>>, vector<128x32xbf16>
    %cst_18 = arith.constant dense<0.000000e+00> : vector<16x32xf32>
    %39 = tpu.matmul %37, %38, %cst_18 {dimension_numbers = #tpu.dot_dimension_numbers<[1], [0], [0], [1], [0, 0, 1, 1], [], []>} : vector<16x128xbf16>, vector<128x32xbf16>, vector<16x32xf32> -> vector<16x32xf32>
    %c0_19 = arith.constant 0 : index
    %c0_20 = arith.constant 0 : index
    %40 = vector.load %arg7[%c0_19, %c0_20] : memref<1x32xf32, #tpu.memory_space<vmem>>, vector<1x32xf32>
    %41 = vector.broadcast %40 : vector<1x32xf32> to vector<16x32xf32>
    %42 = arith.addf %39, %41 : vector<16x32xf32>
    %43 = arith.addf %0, %42 : vector<16x32xf32>
    %c0_21 = arith.constant 0 : index
    %c0_22 = arith.constant 0 : index
    %44 = vector.load %arg8[%c0_21, %c0_22] : memref<16x32xf32, #tpu.memory_space<vmem>>, vector<16x32xf32>
    tpu.vector_store %arg8[%c0_21, %c0_22], %43 {strides = array<i32>} : memref<16x32xf32, #tpu.memory_space<vmem>>, vector<16x32xf32>,
    return
  }
  func.func @transform_0(%arg0: i32) -> (i32, i32) {
    %c0_i32 = arith.constant 0 : i32
    %c0_i32_0 = arith.constant 0 : i32
    return %arg0, %c0_i32 : i32, i32
  }
  func.func @transform_1(%arg0: i32) -> (i32, i32) {
    %c0_i32 = arith.constant 0 : i32
    %c0_i32_0 = arith.constant 0 : i32
    %c0_i32_1 = arith.constant 0 : i32
    return %c0_i32, %c0_i32_0 : i32, i32
  }
  func.func @transform_2(%arg0: i32) -> (i32, i32) {
    %c0_i32 = arith.constant 0 : i32
    %c0_i32_0 = arith.constant 0 : i32
    %c0_i32_1 = arith.constant 0 : i32
    return %c0_i32, %c0_i32_0 : i32, i32
  }
  func.func @transform_3(%arg0: i32) -> (i32, i32) {
    %c0_i32 = arith.constant 0 : i32
    %c0_i32_0 = arith.constant 0 : i32
    %c0_i32_1 = arith.constant 0 : i32
    return %c0_i32, %c0_i32_0 : i32, i32
  }
  func.func @transform_4(%arg0: i32) -> (i32, i32) {
    %c0_i32 = arith.constant 0 : i32
    %c0_i32_0 = arith.constant 0 : i32
    %c0_i32_1 = arith.constant 0 : i32
    return %c0_i32, %c0_i32_0 : i32, i32
  }
  func.func @transform_5(%arg0: i32) -> (i32, i32) {
    %c0_i32 = arith.constant 0 : i32
    %c0_i32_0 = arith.constant 0 : i32
    %c0_i32_1 = arith.constant 0 : i32
    return %c0_i32, %c0_i32_0 : i32, i32
  }
  func.func @transform_6(%arg0: i32) -> (i32, i32) {
    %c0_i32 = arith.constant 0 : i32
    %c0_i32_0 = arith.constant 0 : i32
    %c0_i32_1 = arith.constant 0 : i32
    return %c0_i32, %c0_i32_0 : i32, i32
  }
  func.func @transform_7(%arg0: i32) -> (i32, i32) {
    %c0_i32 = arith.constant 0 : i32
    %c0_i32_0 = arith.constant 0 : i32
    return %arg0, %c0_i32 : i32, i32
  }
}

module attributes {stable_mosaic.version = 11 : i64} {
  func.func @_ln_matmul_kernel(%arg0: i32, %arg1: memref<16x32xf32, #tpu.memory_space<vmem>>, %arg2: memref<1x32xf32, #tpu.memory_space<vmem>>, %arg3: memref<1x32xf32, #tpu.memory_space<vmem>>, %arg4: memref<32x96xbf16, #tpu.memory_space<vmem>>, %arg5: memref<1x96xf32, #tpu.memory_space<vmem>>, %arg6: memref<16x96xbf16, #tpu.memory_space<vmem>>) attributes {dimension_semantics = [#tpu.dimension_semantics<parallel>], iteration_bounds = array<i64: 1>, scalar_prefetch = 0 : i64, scratch_operands = 0 : i64, tpu.core_type = #tpu.core_type<tc>, window_params = [{transform_indices = @transform_0, window_bounds = array<i64: 16, 32>}, {pipeline_mode = #tpu.pipeline_mode<synchronous>, transform_indices = @transform_1, window_bounds = array<i64: 1, 32>}, {pipeline_mode = #tpu.pipeline_mode<synchronous>, transform_indices = @transform_2, window_bounds = array<i64: 1, 32>}, {pipeline_mode = #tpu.pipeline_mode<synchronous>, transform_indices = @transform_3, window_bounds = array<i64: 32, 96>}, {pipeline_mode = #tpu.pipeline_mode<synchronous>, transform_indices = @transform_4, window_bounds = array<i64: 1, 96>}, {transform_indices = @transform_5, window_bounds = array<i64: 16, 96>}]} {
    %c0 = arith.constant 0 : index
    %c0_0 = arith.constant 0 : index
    %0 = vector.load %arg1[%c0, %c0_0] : memref<16x32xf32, #tpu.memory_space<vmem>>, vector<16x32xf32>
    %cst = arith.constant dense<0.000000e+00> : vector<16xf32>
    %1 = vector.multi_reduction <add>, %0, %cst [1] : vector<16x32xf32> to vector<16xf32>
    %2 = vector.shape_cast %1 : vector<16xf32> to vector<16x1xf32>
    %cst_1 = arith.constant 3.200000e+01 : f32
    %3 = vector.broadcast %cst_1 : f32 to vector<16x1xf32>
    %4 = arith.divf %2, %3 : vector<16x1xf32>
    %5 = vector.broadcast %4 : vector<16x1xf32> to vector<16x32xf32>
    %6 = arith.subf %0, %5 : vector<16x32xf32>
    %7 = arith.mulf %6, %6 : vector<16x32xf32>
    %cst_2 = arith.constant dense<0.000000e+00> : vector<16xf32>
    %8 = vector.multi_reduction <add>, %7, %cst_2 [1] : vector<16x32xf32> to vector<16xf32>
    %9 = vector.shape_cast %8 : vector<16xf32> to vector<16x1xf32>
    %cst_3 = arith.constant 3.200000e+01 : f32
    %10 = vector.broadcast %cst_3 : f32 to vector<16x1xf32>
    %11 = arith.divf %9, %10 : vector<16x1xf32>
    %cst_4 = arith.constant 9.99999974E-6 : f32
    %12 = vector.broadcast %cst_4 : f32 to vector<16x1xf32>
    %13 = arith.addf %11, %12 : vector<16x1xf32>
    %14 = math.rsqrt %13 : vector<16x1xf32>
    %15 = vector.broadcast %14 : vector<16x1xf32> to vector<16x32xf32>
    %16 = arith.mulf %6, %15 : vector<16x32xf32>
    %c0_5 = arith.constant 0 : index
    %c0_6 = arith.constant 0 : index
    %17 = vector.load %arg2[%c0_5, %c0_6] : memref<1x32xf32, #tpu.memory_space<vmem>>, vector<1x32xf32>
    %18 = vector.broadcast %17 : vector<1x32xf32> to vector<16x32xf32>
    %19 = arith.mulf %16, %18 : vector<16x32xf32>
    %c0_7 = arith.constant 0 : index
    %c0_8 = arith.constant 0 : index
    %20 = vector.load %arg3[%c0_7, %c0_8] : memref<1x32xf32, #tpu.memory_space<vmem>>, vector<1x32xf32>
    %21 = vector.broadcast %20 : vector<1x32xf32> to vector<16x32xf32>
    %22 = arith.addf %19, %21 : vector<16x32xf32>
    %23 = arith.truncf %22 : vector<16x32xf32> to vector<16x32xbf16>
    %c0_9 = arith.constant 0 : index
    %c0_10 = arith.constant 0 : index
    %24 = vector.load %arg4[%c0_9, %c0_10] : memref<32x96xbf16, #tpu.memory_space<vmem>>, vector<32x96xbf16>
    %cst_11 = arith.constant dense<0.000000e+00> : vector<16x96xf32>
    %25 = tpu.matmul %23, %24, %cst_11 {dimension_numbers = #tpu.dot_dimension_numbers<[1], [0], [0], [1], [0, 0, 1, 1], [], []>} : vector<16x32xbf16>, vector<32x96xbf16>, vector<16x96xf32> -> vector<16x96xf32>
    %c0_12 = arith.constant 0 : index
    %c0_13 = arith.constant 0 : index
    %26 = vector.load %arg5[%c0_12, %c0_13] : memref<1x96xf32, #tpu.memory_space<vmem>>, vector<1x96xf32>
    %27 = vector.broadcast %26 : vector<1x96xf32> to vector<16x96xf32>
    %28 = arith.addf %25, %27 : vector<16x96xf32>
    %29 = arith.truncf %28 : vector<16x96xf32> to vector<16x96xbf16>
    %c0_14 = arith.constant 0 : index
    %c0_15 = arith.constant 0 : index
    %30 = vector.load %arg6[%c0_14, %c0_15] : memref<16x96xbf16, #tpu.memory_space<vmem>>, vector<16x96xbf16>
    tpu.vector_store %arg6[%c0_14, %c0_15], %29 {strides = array<i32>} : memref<16x96xbf16, #tpu.memory_space<vmem>>, vector<16x96xbf16>,
    return
  }
  func.func @transform_0(%arg0: i32) -> (i32, i32) {
    %c0_i32 = arith.constant 0 : i32
    %c0_i32_0 = arith.constant 0 : i32
    return %arg0, %c0_i32 : i32, i32
  }
  func.func @transform_1(%arg0: i32) -> (i32, i32) {
    %c0_i32 = arith.constant 0 : i32
    %c0_i32_0 = arith.constant 0 : i32
    %c0_i32_1 = arith.constant 0 : i32
    return %c0_i32, %c0_i32_0 : i32, i32
  }
  func.func @transform_2(%arg0: i32) -> (i32, i32) {
    %c0_i32 = arith.constant 0 : i32
    %c0_i32_0 = arith.constant 0 : i32
    %c0_i32_1 = arith.constant 0 : i32
    return %c0_i32, %c0_i32_0 : i32, i32
  }
  func.func @transform_3(%arg0: i32) -> (i32, i32) {
    %c0_i32 = arith.constant 0 : i32
    %c0_i32_0 = arith.constant 0 : i32
    %c0_i32_1 = arith.constant 0 : i32
    return %c0_i32, %c0_i32_0 : i32, i32
  }
  func.func @transform_4(%arg0: i32) -> (i32, i32) {
    %c0_i32 = arith.constant 0 : i32
    %c0_i32_0 = arith.constant 0 : i32
    %c0_i32_1 = arith.constant 0 : i32
    return %c0_i32, %c0_i32_0 : i32, i32
  }
  func.func @transform_5(%arg0: i32) -> (i32, i32) {
    %c0_i32 = arith.constant 0 : i32
    %c0_i32_0 = arith.constant 0 : i32
    return %arg0, %c0_i32 : i32, i32
  }
}

module attributes {stable_mosaic.version = 11 : i64} {
  func.func @_attn_core_kernel(%arg0: i32, %arg1: memref<1x4x5x8xbf16, #tpu.memory_space<vmem>>, %arg2: memref<1x4x5x8xbf16, #tpu.memory_space<vmem>>, %arg3: memref<1x4x5x8xbf16, #tpu.memory_space<vmem>>, %arg4: memref<1x5x5xf32, #tpu.memory_space<vmem>>, %arg5: memref<1x4x5x8xbf16, #tpu.memory_space<vmem>>) attributes {dimension_semantics = [#tpu.dimension_semantics<parallel>], iteration_bounds = array<i64: 2>, scalar_prefetch = 0 : i64, scratch_operands = 0 : i64, tpu.core_type = #tpu.core_type<tc>, window_params = [{transform_indices = @transform_0, window_bounds = array<i64: 1, 4, 5, 8>}, {transform_indices = @transform_1, window_bounds = array<i64: 1, 4, 5, 8>}, {transform_indices = @transform_2, window_bounds = array<i64: 1, 4, 5, 8>}, {transform_indices = @transform_3, window_bounds = array<i64: 1, 5, 5>}, {transform_indices = @transform_4, window_bounds = array<i64: 1, 4, 5, 8>}]} {
    %c0 = arith.constant 0 : index
    %c0_0 = arith.constant 0 : index
    %c0_1 = arith.constant 0 : index
    %c0_2 = arith.constant 0 : index
    %0 = vector.load %arg1[%c0, %c0_0, %c0_1, %c0_2] : memref<1x4x5x8xbf16, #tpu.memory_space<vmem>>, vector<1x4x5x8xbf16>
    %1 = vector.shape_cast %0 : vector<1x4x5x8xbf16> to vector<4x5x8xbf16>
    %c0_3 = arith.constant 0 : index
    %c0_4 = arith.constant 0 : index
    %c0_5 = arith.constant 0 : index
    %c0_6 = arith.constant 0 : index
    %2 = vector.load %arg2[%c0_3, %c0_4, %c0_5, %c0_6] : memref<1x4x5x8xbf16, #tpu.memory_space<vmem>>, vector<1x4x5x8xbf16>
    %3 = vector.shape_cast %2 : vector<1x4x5x8xbf16> to vector<4x5x8xbf16>
    %c0_7 = arith.constant 0 : index
    %c0_8 = arith.constant 0 : index
    %c0_9 = arith.constant 0 : index
    %c0_10 = arith.constant 0 : index
    %4 = vector.load %arg3[%c0_7, %c0_8, %c0_9, %c0_10] : memref<1x4x5x8xbf16, #tpu.memory_space<vmem>>, vector<1x4x5x8xbf16>
    %5 = vector.shape_cast %4 : vector<1x4x5x8xbf16> to vector<4x5x8xbf16>
    "tpu.trace_start"() <{level = 10 : i32, message = "hqd,hkd->hqk"}> : () -> ()
    %cst = arith.constant dense<0.000000e+00> : vector<4x5x5xf32>
    %6 = tpu.matmul %1, %3, %cst {dimension_numbers = #tpu.dot_dimension_numbers<[2], [2], [1], [1], [0, 0, 0, 1, 1, 1], [0], [0]>} : vector<4x5x8xbf16>, vector<4x5x8xbf16>, vector<4x5x5xf32> -> vector<4x5x5xf32>
    "tpu.trace_stop"() : () -> ()
    %cst_11 = arith.constant 0.353553385 : f32
    %7 = vector.broadcast %cst_11 : f32 to vector<4x5x5xf32>
    %8 = arith.mulf %6, %7 : vector<4x5x5xf32>
    %c0_12 = arith.constant 0 : index
    %c0_13 = arith.constant 0 : index
    %c0_14 = arith.constant 0 : index
    %9 = vector.load %arg4[%c0_12, %c0_13, %c0_14] : memref<1x5x5xf32, #tpu.memory_space<vmem>>, vector<1x5x5xf32>
    %10 = vector.shape_cast %9 : vector<1x5x5xf32> to vector<5x5xf32>
    %11 = vector.shape_cast %10 : vector<5x5xf32> to vector<1x5x5xf32>
    %12 = vector.broadcast %11 : vector<1x5x5xf32> to vector<4x5x5xf32>
    %13 = arith.addf %8, %12 : vector<4x5x5xf32>
    %cst_15 = arith.constant dense<0xFF800000> : vector<4x5xf32>
    %14 = vector.multi_reduction <maximumf>, %13, %cst_15 [2] : vector<4x5x5xf32> to vector<4x5xf32>
    %15 = vector.shape_cast %14 : vector<4x5xf32> to vector<4x5x1xf32>
    %16 = vector.broadcast %15 : vector<4x5x1xf32> to vector<4x5x5xf32>
    %17 = arith.subf %13, %16 : vector<4x5x5xf32>
    %18 = math.exp %17 : vector<4x5x5xf32>
    %cst_16 = arith.constant dense<0.000000e+00> : vector<4x5xf32>
    %19 = vector.multi_reduction <add>, %18, %cst_16 [2] : vector<4x5x5xf32> to vector<4x5xf32>
    %20 = vector.shape_cast %19 : vector<4x5xf32> to vector<4x5x1xf32>
    %21 = tpu.reciprocal %20 {approx = true} : vector<4x5x1xf32> -> vector<4x5x1xf32>
    %22 = vector.broadcast %21 : vector<4x5x1xf32> to vector<4x5x5xf32>
    %23 = arith.mulf %18, %22 : vector<4x5x5xf32>
    %24 = arith.truncf %23 : vector<4x5x5xf32> to vector<4x5x5xbf16>
    "tpu.trace_start"() <{level = 10 : i32, message = "hqk,hkd->hqd"}> : () -> ()
    %cst_17 = arith.constant dense<0.000000e+00> : vector<4x5x8xf32>
    %25 = tpu.matmul %24, %5, %cst_17 {dimension_numbers = #tpu.dot_dimension_numbers<[2], [1], [1], [2], [0, 0, 0, 1, 1, 2], [0], [0]>} : vector<4x5x5xbf16>, vector<4x5x8xbf16>, vector<4x5x8xf32> -> vector<4x5x8xf32>
    "tpu.trace_stop"() : () -> ()
    %26 = arith.truncf %25 : vector<4x5x8xf32> to vector<4x5x8xbf16>
    %c0_18 = arith.constant 0 : index
    %c0_19 = arith.constant 0 : index
    %c0_20 = arith.constant 0 : index
    %c0_21 = arith.constant 0 : index
    %27 = vector.load %arg5[%c0_18, %c0_19, %c0_20, %c0_21] : memref<1x4x5x8xbf16, #tpu.memory_space<vmem>>, vector<1x4x5x8xbf16>
    %28 = vector.shape_cast %27 : vector<1x4x5x8xbf16> to vector<4x5x8xbf16>
    %29 = vector.shape_cast %26 : vector<4x5x8xbf16> to vector<1x4x5x8xbf16>
    tpu.vector_store %arg5[%c0_18, %c0_19, %c0_20, %c0_21], %29 {strides = array<i32>} : memref<1x4x5x8xbf16, #tpu.memory_space<vmem>>, vector<1x4x5x8xbf16>,
    return
  }
  func.func @transform_0(%arg0: i32) -> (i32, i32, i32, i32) {
    %c0_i32 = arith.constant 0 : i32
    %c0_i32_0 = arith.constant 0 : i32
    %c0_i32_1 = arith.constant 0 : i32
    %c0_i32_2 = arith.constant 0 : i32
    return %arg0, %c0_i32, %c0_i32_0, %c0_i32_1 : i32, i32, i32, i32
  }
  func.func @transform_1(%arg0: i32) -> (i32, i32, i32, i32) {
    %c0_i32 = arith.constant 0 : i32
    %c0_i32_0 = arith.constant 0 : i32
    %c0_i32_1 = arith.constant 0 : i32
    %c0_i32_2 = arith.constant 0 : i32
    return %arg0, %c0_i32, %c0_i32_0, %c0_i32_1 : i32, i32, i32, i32
  }
  func.func @transform_2(%arg0: i32) -> (i32, i32, i32, i32) {
    %c0_i32 = arith.constant 0 : i32
    %c0_i32_0 = arith.constant 0 : i32
    %c0_i32_1 = arith.constant 0 : i32
    %c0_i32_2 = arith.constant 0 : i32
    return %arg0, %c0_i32, %c0_i32_0, %c0_i32_1 : i32, i32, i32, i32
  }
  func.func @transform_3(%arg0: i32) -> (i32, i32, i32) {
    %c0_i32 = arith.constant 0 : i32
    %c0_i32_0 = arith.constant 0 : i32
    %c0_i32_1 = arith.constant 0 : i32
    return %arg0, %c0_i32, %c0_i32_0 : i32, i32, i32
  }
  func.func @transform_4(%arg0: i32) -> (i32, i32, i32, i32) {
    %c0_i32 = arith.constant 0 : i32
    %c0_i32_0 = arith.constant 0 : i32
    %c0_i32_1 = arith.constant 0 : i32
    %c0_i32_2 = arith.constant 0 : i32
    return %arg0, %c0_i32, %c0_i32_0, %c0_i32_1 : i32, i32, i32, i32
  }
}

</mosaic_0001>

<llo_original>
// kernel: hoi_residual_attention_block.12
$region0: #{hoi_residual_attention_block.12}
  #allocation0 [shape = 'u32[]', space=smem, size = 0x4, offset = 0x4, fixed_abs, tag = 'smem constant byte address 0x4 - core index']
  #allocation1 [shape = 'u32[144,128]{1,0:T(1,128)}', space=vmem, size = 0x12000, scoped, tag = 'internal scratch']
  %s0 = inlined_call_operand.vmem [shape: f32[48,32], index: 0, kind: input, shape index: {}]
  %s1 = inlined_call_operand.vmem [shape: f32[1,32], index: 1, kind: input, shape index: {}]
  %s2 = inlined_call_operand.vmem [shape: f32[1,32], index: 2, kind: input, shape index: {}]
  %s3 = inlined_call_operand.vmem [shape: bf16[32,160], index: 3, kind: input, shape index: {}]
  %s4 = inlined_call_operand.vmem [shape: f32[1,160], index: 4, kind: input, shape index: {}]
  %s5 = inlined_call_operand.vmem [shape: bf16[48,160], index: 5, kind: output, shape index: {}]
  %s6 = sld [smem:[#allocation0]]
  $region30: #{hoi_residual_attention_block.12} parent=0
    _
  %s8 = ssub.s32 1, %s6
  %s9 = scalar_select 0, %s8, %s6
  // Predicated region
  $region2: #{hoi_residual_attention_block.12} parent=0 // pred_check
    _
  $region3: #{hoi_residual_attention_block.12} parent=0 // pred_check_branch
    %11 = sbr.rel (0) target = $region5
  $region4: #{hoi_residual_attention_block.12} parent=0 // pred_region
    _
  $region5: #{hoi_residual_attention_block.12} parent=0 // pred_fallthru
    _
  // Predicated region
  $region6: #{hoi_residual_attention_block.12} parent=0 // pred_check
    _
  $region7: #{hoi_residual_attention_block.12} parent=0 // pred_check_branch
    %13 = sbr.rel (0) target = $region9
  $region8: #{hoi_residual_attention_block.12} parent=0 // pred_region
    _
  $region9: #{hoi_residual_attention_block.12} parent=0 // pred_fallthru
    _
  // Predicated region
  $region10: #{hoi_residual_attention_block.12} parent=0 // pred_check
    _
  $region11: #{hoi_residual_attention_block.12} parent=0 // pred_check_branch
    %15 = sbr.rel (0) target = $region13
  $region12: #{hoi_residual_attention_block.12} parent=0 // pred_region
    _
  $region13: #{hoi_residual_attention_block.12} parent=0 // pred_fallthru
    _
  // Predicated region
  $region14: #{hoi_residual_attention_block.12} parent=0 // pred_check
    _
  $region15: #{hoi_residual_attention_block.12} parent=0 // pred_check_branch
    %17 = sbr.rel (0) target = $region17
  $region16: #{hoi_residual_attention_block.12} parent=0 // pred_region
    _
  $region17: #{hoi_residual_attention_block.12} parent=0 // pred_fallthru
    _
  // Predicated region
  $region18: #{hoi_residual_attention_block.12} parent=0 // pred_check
    _
  $region19: #{hoi_residual_attention_block.12} parent=0 // pred_check_branch
    %19 = sbr.rel (0) target = $region21
  $region20: #{hoi_residual_attention_block.12} parent=0 // pred_region
    _
  $region21: #{hoi_residual_attention_block.12} parent=0 // pred_fallthru
    _
  %v21 = vld [vmem:[%s0] sm:$0xff]
  %v22 = vld [vmem:[%s0 + $0x8] sm:$0xff]
  %v23 = vld [vmem:[%s0 + $0x10] sm:$0xff]
  %v24 = vld [vmem:[%s0 + $0x18] sm:$0xff]
  %v25 = vld [vmem:[%s0 + $0x20] sm:$0xff]
  %v26 = vld [vmem:[%s0 + $0x28] sm:$0xff]
  %vm27 = vcmask 261120
  %v28 = vsel %vm27, %v21, 0.0
  %29 = vadd.xlane.f32.xlu0 %v28
  %v30 = vpop.xlane.xlu0 %29
  %v31 = vsel %vm27, %v22, 0.0
  %32 = vadd.xlane.f32.xlu0 %v31
  %v33 = vpop.xlane.xlu0 %32
  %v34 = vsel %vm27, %v23, 0.0
  %35 = vadd.xlane.f32.xlu0 %v34
  %v36 = vpop.xlane.xlu0 %35
  %v37 = vsel %vm27, %v24, 0.0
  %38 = vadd.xlane.f32.xlu0 %v37
  %v39 = vpop.xlane.xlu0 %38
  %v40 = vsel %vm27, %v25, 0.0
  %41 = vadd.xlane.f32.xlu0 %v40
  %v42 = vpop.xlane.xlu0 %41
  %v43 = vsel %vm27, %v26, 0.0
  %44 = vadd.xlane.f32.xlu0 %v43
  %v45 = vpop.xlane.xlu0 %44
  %v46 = vrcp.pop 32.0
  %v47 = vmul.f32 %v30, %v46
  %v48 = vmul.f32 %v33, %v46
  %v49 = vmul.f32 %v36, %v46
  %v50 = vmul.f32 %v39, %v46
  %v51 = vmul.f32 %v42, %v46
  %v52 = vmul.f32 %v45, %v46
  %v53 = vsub.f32 %v21, %v47
  %v54 = vsub.f32 %v22, %v48
  %v55 = vsub.f32 %v23, %v49
  %v56 = vsub.f32 %v24, %v50
  %v57 = vsub.f32 %v25, %v51
  %v58 = vsub.f32 %v26, %v52
  %v59 = vmul.f32 %v53, %v53
  %v60 = vmul.f32 %v54, %v54
  %v61 = vmul.f32 %v55, %v55
  %v62 = vmul.f32 %v56, %v56
  %v63 = vmul.f32 %v57, %v57
  %v64 = vmul.f32 %v58, %v58
  %v65 = vsel %vm27, %v59, 0.0
  %66 = vadd.xlane.f32.xlu0 %v65
  %v67 = vpop.xlane.xlu0 %66
  %v68 = vsel %vm27, %v60, 0.0
  %69 = vadd.xlane.f32.xlu0 %v68
  %v70 = vpop.xlane.xlu0 %69
  %v71 = vsel %vm27, %v61, 0.0
  %72 = vadd.xlane.f32.xlu0 %v71
  %v73 = vpop.xlane.xlu0 %72
  %v74 = vsel %vm27, %v62, 0.0
  %75 = vadd.xlane.f32.xlu0 %v74
  %v76 = vpop.xlane.xlu0 %75
  %v77 = vsel %vm27, %v63, 0.0
  %78 = vadd.xlane.f32.xlu0 %v77
  %v79 = vpop.xlane.xlu0 %78
  %v80 = vsel %vm27, %v64, 0.0
  %81 = vadd.xlane.f32.xlu0 %v80
  %v82 = vpop.xlane.xlu0 %81
  %v83 = vmul.f32 %v67, %v46
  %v84 = vmul.f32 %v70, %v46
  %v85 = vmul.f32 %v73, %v46
  %v86 = vmul.f32 %v76, %v46
  %v87 = vmul.f32 %v79, %v46
  %v88 = vmul.f32 %v82, %v46
  %v89 = vadd.f32 %v83, 1e-05
  %v90 = vadd.f32 %v84, 1e-05
  %v91 = vadd.f32 %v85, 1e-05
  %v92 = vadd.f32 %v86, 1e-05
  %v93 = vadd.f32 %v87, 1e-05
  %v94 = vadd.f32 %v88, 1e-05
  %v95 = vrsqrt.pop %v89
  %v96 = vrsqrt.pop %v90
  %v97 = vrsqrt.pop %v91
  %v98 = vrsqrt.pop %v92
  %v99 = vrsqrt.pop %v93
  %v100 = vrsqrt.pop %v94
  %v101 = vmul.f32 %v53, %v95
  %v102 = vmul.f32 %v54, %v96
  %v103 = vmul.f32 %v55, %v97
  %v104 = vmul.f32 %v56, %v98
  %v105 = vmul.f32 %v57, %v99
  %v106 = vmul.f32 %v58, %v100
  %v107 = vld [vmem:[%s1] sm:$0x1]
  %v109 = vlaneseq
  %v110 = vshrl.u32 %v109, 7
  %v111 = vsub.s32 0, %v110
  %v112 = vrot.slane %v107, %v111
  %v114 = vmul.f32 %v101, %v112
  %v115 = vmul.f32 %v102, %v112
  %v116 = vmul.f32 %v103, %v112
  %v117 = vmul.f32 %v104, %v112
  %v118 = vmul.f32 %v105, %v112
  %v119 = vmul.f32 %v106, %v112
  %v120 = vld [vmem:[%s2] sm:$0x1]
  %v122 = vlaneseq
  %v123 = vshrl.u32 %v122, 7
  %v124 = vsub.s32 0, %v123
  %v125 = vrot.slane %v120, %v124
  %v127 = vadd.f32 %v114, %v125
  %v128 = vadd.f32 %v115, %v125
  %v129 = vadd.f32 %v116, %v125
  %v130 = vadd.f32 %v117, %v125
  %v131 = vadd.f32 %v118, %v125
  %v132 = vadd.f32 %v119, %v125
  %v133 = vpack.c.bf16 %v128, %v127
  %v134 = vpack.c.bf16 %v130, %v129
  %v135 = vpack.c.bf16 %v132, %v131
  %v136 = vld [vmem:[%s3] sm:$0xff]
  %v137 = vld [vmem:[%s3 + $0x8] sm:$0xff]
  %v138 = vld [vmem:[%s3 + $0x10] sm:$0xff]
  %v139 = vld [vmem:[%s3 + $0x18] sm:$0xff]
  %v140 = vld [vmem:[%s4] sm:$0x3]
  %v142 = vlaneseq
  %v143 = vshrl.u32 %v142, 7
  %v144 = vsub.s32 0, %v143
  %v145 = vrot.slane %v140, %v144
  %v146 = vlaneseq
  %v147 = vshrl.u32 %v146, 7
  %v148 = vsub.s32 1, %v147
  %v149 = vrot.slane %v140, %v148
  %v156 = vunpack.c.l.b16 %v136
  %v157 = vunpack.c.h.b16 %v136
  %v158 = vunpack.c.l.b16 %v137
  %v159 = vunpack.c.h.b16 %v137
  %v160 = vunpack.c.l.b16 %v138
  %v161 = vunpack.c.h.b16 %v138
  %v162 = vunpack.c.l.b16 %v139
  %v163 = vunpack.c.h.b16 %v139
  %v164 = vpack.c.b16 %v158, %v156
  %v165 = vpack.c.b16 %v159, %v157
  %v166 = vpack.c.b16 %v162, %v160
  %v167 = vpack.c.b16 %v163, %v161
  %v173 = vsel %vm27, %v133, 0
  %v176 = vsel %vm27, %v134, 0
  %v179 = vsel %vm27, %v135, 0
  %181 = vmatprep.subr.bf16.mxu0 %v165
  %182 = vmatpush1.bf16.msra.mxu0 %v164
  %183 = vmatprep.subr.bf16.mxu0 %v167
  %184 = vmatpush1.bf16.msra.mxu0 %v166
  %185 = vmatprep.subr.bf16.mxu0 0
  %186 = vmatpush1.bf16.msra.mxu0 0
  %187 = vmatprep.subr.bf16.mxu0 0
  %188 = vmatpush1.bf16.msra.mxu0 0
  %189 = vmatprep.subr.bf16.mxu0 0
  %190 = vmatpush1.bf16.msra.mxu0 0
  %191 = vmatprep.subr.bf16.mxu0 0
  %192 = vmatpush1.bf16.msra.mxu0 0
  %193 = vmatprep.subr.bf16.mxu0 0
  %194 = vmatpush1.bf16.msra.mxu0 0
  %195 = vmatprep.subr.bf16.mxu0 0
  %196 = vmatpush1.bf16.msra.mxu0 0
  %197 = vmatprep.subr.bf16.mxu0 0
  %198 = vmatpush1.bf16.msra.mxu0 0
  %199 = vmatprep.subr.bf16.mxu0 0
  %200 = vmatpush1.bf16.msra.mxu0 0
  %201 = vmatprep.subr.bf16.mxu0 0
  %202 = vmatpush1.bf16.msra.mxu0 0
  %203 = vmatprep.subr.bf16.mxu0 0
  %204 = vmatpush1.bf16.msra.mxu0 0
  %205 = vmatprep.subr.bf16.mxu0 0
  %206 = vmatpush1.bf16.msra.mxu0 0
  %207 = vmatprep.subr.bf16.mxu0 0
  %208 = vmatpush1.bf16.msra.mxu0 0
  %209 = vmatprep.subr.bf16.mxu0 0
  %210 = vmatpush1.bf16.msra.mxu0 0
  %211 = vmatprep.subr.bf16.mxu0 0
  %212 = vmatpush1.bf16.msra.mxu0 0
  %213 = vmatprep.mubr.bf16.mxu0 0
  %214 = vmatmul.mubr.bf16.gmra.mrb[0].mxu0 %v173
  %v215 = vpop.f32.mrb[0].mxu0
  %v216 = vadd.f32 %v145, %v215
  %v217 = vpop.f32.mrb[0].mxu0
  %v218 = vadd.f32 %v149, %v217
  %v219 = vpop.f32.mrb[0].mxu0
  %v220 = vadd.f32 %v145, %v219
  %v221 = vpop.f32.mrb[0].mxu0
  %v222 = vadd.f32 %v149, %v221
  %223 = vmatprep.mubr.bf16.mxu0 0
  %224 = vmatmul.mubr.bf16.gmra.mrb[0].mxu0 %v176
  %v225 = vpop.f32.mrb[0].mxu0
  %v226 = vadd.f32 %v145, %v225
  %v227 = vpop.f32.mrb[0].mxu0
  %v228 = vadd.f32 %v149, %v227
  %v229 = vpop.f32.mrb[0].mxu0
  %v230 = vadd.f32 %v145, %v229
  %v231 = vpop.f32.mrb[0].mxu0
  %v232 = vadd.f32 %v149, %v231
  %233 = vmatprep.mubr.bf16.mxu0 0
  %234 = vmatmul.mubr.bf16.gmra.mrb[0].mxu0 %v179
  %v235 = vpop.f32.mrb[0].mxu0
  %v236 = vadd.f32 %v145, %v235
  %v237 = vpop.f32.mrb[0].mxu0
  %v238 = vadd.f32 %v149, %v237
  %v239 = vpop.f32.mrb[0].mxu0
  %v240 = vadd.f32 %v145, %v239
  %v241 = vpop.f32.mrb[0].mxu0
  %v242 = vadd.f32 %v149, %v241
  %243 = vdwg.mxu0
  %v244 = vpack.c.bf16 %v220, %v216
  %v245 = vpack.c.bf16 %v222, %v218
  %v246 = vpack.c.bf16 %v230, %v226
  %v247 = vpack.c.bf16 %v232, %v228
  %v248 = vpack.c.bf16 %v240, %v236
  %v249 = vpack.c.bf16 %v242, %v238
  %v256 = vunpack.c.l.b16 %v244
  %v257 = vunpack.c.l.b16 %v245
  %v258 = vunpack.c.h.b16 %v244
  %v259 = vunpack.c.h.b16 %v245
  %v260 = vunpack.c.l.b16 %v246
  %v261 = vunpack.c.l.b16 %v247
  %v262 = vunpack.c.h.b16 %v246
  %v263 = vunpack.c.h.b16 %v247
  %v264 = vunpack.c.l.b16 %v248
  %v265 = vunpack.c.l.b16 %v249
  %v266 = vunpack.c.h.b16 %v248
  %v267 = vunpack.c.h.b16 %v249
  %v268 = vpack.c.b16 %v257, %v256
  %v269 = vpack.c.b16 %v259, %v258
  %v270 = vpack.c.b16 %v261, %v260
  %v271 = vpack.c.b16 %v263, %v262
  %v272 = vpack.c.b16 %v265, %v264
  %v273 = vpack.c.b16 %v267, %v266
  %vm280 = vcmask 1043456
  %vm281 = vcmask 261124
  %vm282 = vmor %vm281, %vm280
  %283 = vst.msk [vmem:[%s5] sm:$0xff] %vm282, %v268
  %284 = vst.msk [vmem:[%s5 + $0x8] sm:$0xff] %vm282, %v269
  %285 = vst.msk [vmem:[%s5 + $0x10] sm:$0xff] %vm282, %v270
  %286 = vst.msk [vmem:[%s5 + $0x18] sm:$0xff] %vm282, %v271
  %287 = vst.msk [vmem:[%s5 + $0x20] sm:$0xff] %vm282, %v272
  %288 = vst.msk [vmem:[%s5 + $0x28] sm:$0xff] %vm282, %v273
  // Predicated region
  $region22: #{hoi_residual_attention_block.12} parent=0 // pred_check
    _
  $region23: #{hoi_residual_attention_block.12} parent=0 // pred_check_branch
    %290 = sbr.rel (0) target = $region25
  $region24: #{hoi_residual_attention_block.12} parent=0 // pred_region
    _
  $region25: #{hoi_residual_attention_block.12} parent=0 // pred_fallthru
    _
  // Predicated region
  $region26: #{hoi_residual_attention_block.12} parent=0 // pred_check
    _
  $region27: #{hoi_residual_attention_block.12} parent=0 // pred_check_branch
    %292 = sbr.rel (0) target = $region29
  $region28: #{hoi_residual_attention_block.12} parent=0 // pred_region
    _
  $region29: #{hoi_residual_attention_block.12} parent=0 // pred_fallthru
    _

// kernel: hoi_residual_attention_block.17
$region0: #{hoi_residual_attention_block.17}
  #allocation0 [shape = 'u32[]', space=smem, size = 0x4, offset = 0x4, fixed_abs, tag = 'smem constant byte address 0x4 - core index']
  #allocation1 [shape = 'u32[144,128]{1,0:T(1,128)}', space=vmem, size = 0x12000, scoped, tag = 'internal scratch']
  %s0 = inlined_call_operand.vmem [shape: f32[48,32], index: 0, kind: input, shape index: {}]
  %s1 = inlined_call_operand.vmem [shape: bf16[48,32], index: 1, kind: input, shape index: {}]
  %s2 = inlined_call_operand.vmem [shape: bf16[32,32], index: 2, kind: input, shape index: {}]
  %s3 = inlined_call_operand.vmem [shape: f32[1,32], index: 3, kind: input, shape index: {}]
  %s4 = inlined_call_operand.vmem [shape: f32[48,32], index: 4, kind: output, shape index: {}]
  %s5 = sld [smem:[#allocation0]]
  $region26: #{hoi_residual_attention_block.17} parent=0
    _
  %s7 = ssub.s32 1, %s5
  %s8 = scalar_select 0, %s7, %s5
  // Predicated region
  $region2: #{hoi_residual_attention_block.17} parent=0 // pred_check
    _
  $region3: #{hoi_residual_attention_block.17} parent=0 // pred_check_branch
    %10 = sbr.rel (0) target = $region5
  $region4: #{hoi_residual_attention_block.17} parent=0 // pred_region
    _
  $region5: #{hoi_residual_attention_block.17} parent=0 // pred_fallthru
    _
  // Predicated region
  $region6: #{hoi_residual_attention_block.17} parent=0 // pred_check
    _
  $region7: #{hoi_residual_attention_block.17} parent=0 // pred_check_branch
    %12 = sbr.rel (0) target = $region9
  $region8: #{hoi_residual_attention_block.17} parent=0 // pred_region
    _
  $region9: #{hoi_residual_attention_block.17} parent=0 // pred_fallthru
    _
  // Predicated region
  $region10: #{hoi_residual_attention_block.17} parent=0 // pred_check
    _
  $region11: #{hoi_residual_attention_block.17} parent=0 // pred_check_branch
    %14 = sbr.rel (0) target = $region13
  $region12: #{hoi_residual_attention_block.17} parent=0 // pred_region
    _
  $region13: #{hoi_residual_attention_block.17} parent=0 // pred_fallthru
    _
  // Predicated region
  $region14: #{hoi_residual_attention_block.17} parent=0 // pred_check
    _
  $region15: #{hoi_residual_attention_block.17} parent=0 // pred_check_branch
    %16 = sbr.rel (0) target = $region17
  $region16: #{hoi_residual_attention_block.17} parent=0 // pred_region
    _
  $region17: #{hoi_residual_attention_block.17} parent=0 // pred_fallthru
    _
  %v18 = vld [vmem:[%s1] sm:$0xf]
  %v19 = vld [vmem:[%s1 + $0x4] sm:$0xf]
  %v20 = vld [vmem:[%s1 + $0x8] sm:$0xf]
  %v21 = vld [vmem:[%s1 + $0xc] sm:$0xf]
  %v22 = vld [vmem:[%s1 + $0x10] sm:$0xf]
  %v23 = vld [vmem:[%s1 + $0x14] sm:$0xf]
  %v24 = vld [vmem:[%s2] sm:$0xf]
  %v25 = vld [vmem:[%s2 + $0x4] sm:$0xf]
  %v26 = vld [vmem:[%s2 + $0x8] sm:$0xf]
  %v27 = vld [vmem:[%s2 + $0xc] sm:$0xf]
  %v28 = vld [vmem:[%s3] sm:$0x1]
  %v30 = vlaneseq
  %v31 = vshrl.u32 %v30, 7
  %v32 = vsub.s32 0, %v31
  %v33 = vrot.slane %v28, %v32
  %v41 = vunpack.c.l.b16 %v18
  %v42 = vunpack.c.l.b16 %v19
  %v43 = vunpack.c.l.b16 %v20
  %v44 = vunpack.c.l.b16 %v21
  %v45 = vunpack.c.l.b16 %v22
  %v46 = vunpack.c.l.b16 %v23
  %v47 = vpack.c.b16 %v42, %v41
  %v48 = vpack.c.b16 %v44, %v43
  %v49 = vpack.c.b16 %v46, %v45
  %v54 = vunpack.c.l.b16 %v24
  %v55 = vunpack.c.l.b16 %v25
  %v56 = vunpack.c.l.b16 %v26
  %v57 = vunpack.c.l.b16 %v27
  %v58 = vpack.c.b16 %v55, %v54
  %v59 = vpack.c.b16 %v57, %v56
  %vm62 = vcmask 261120
  %v64 = vsel %vm62, %v47, 0
  %v67 = vsel %vm62, %v48, 0
  %v70 = vsel %vm62, %v49, 0
  %72 = vmatprep.subr.bf16.mxu0 0
  %73 = vmatpush1.bf16.msra.mxu0 %v58
  %74 = vmatprep.subr.bf16.mxu0 0
  %75 = vmatpush1.bf16.msra.mxu0 %v59
  %76 = vmatprep.subr.bf16.mxu0 0
  %77 = vmatpush1.bf16.msra.mxu0 0
  %78 = vmatprep.subr.bf16.mxu0 0
  %79 = vmatpush1.bf16.msra.mxu0 0
  %80 = vmatprep.subr.bf16.mxu0 0
  %81 = vmatpush1.bf16.msra.mxu0 0
  %82 = vmatprep.subr.bf16.mxu0 0
  %83 = vmatpush1.bf16.msra.mxu0 0
  %84 = vmatprep.subr.bf16.mxu0 0
  %85 = vmatpush1.bf16.msra.mxu0 0
  %86 = vmatprep.subr.bf16.mxu0 0
  %87 = vmatpush1.bf16.msra.mxu0 0
  %88 = vmatprep.subr.bf16.mxu0 0
  %89 = vmatpush1.bf16.msra.mxu0 0
  %90 = vmatprep.subr.bf16.mxu0 0
  %91 = vmatpush1.bf16.msra.mxu0 0
  %92 = vmatprep.subr.bf16.mxu0 0
  %93 = vmatpush1.bf16.msra.mxu0 0
  %94 = vmatprep.subr.bf16.mxu0 0
  %95 = vmatpush1.bf16.msra.mxu0 0
  %96 = vmatprep.subr.bf16.mxu0 0
  %97 = vmatpush1.bf16.msra.mxu0 0
  %98 = vmatprep.subr.bf16.mxu0 0
  %99 = vmatpush1.bf16.msra.mxu0 0
  %100 = vmatprep.subr.bf16.mxu0 0
  %101 = vmatpush1.bf16.msra.mxu0 0
  %102 = vmatprep.subr.bf16.mxu0 0
  %103 = vmatpush1.bf16.msra.mxu0 0
  %104 = vmatprep.mubr.bf16.mxu0 0
  %105 = vmatmul.mubr.bf16.gmra.mrb[0].mxu0 %v64
  %v106 = vpop.f32.mrb[0].mxu0
  %v107 = vadd.f32 %v33, %v106
  %v108 = vpop.f32.mrb[0].mxu0
  %v109 = vpop.f32.mrb[0].mxu0
  %v110 = vadd.f32 %v33, %v109
  %v111 = vpop.f32.mrb[0].mxu0
  %112 = vmatprep.mubr.bf16.mxu0 0
  %113 = vmatmul.mubr.bf16.gmra.mrb[0].mxu0 %v67
  %v114 = vpop.f32.mrb[0].mxu0
  %v115 = vadd.f32 %v33, %v114
  %v116 = vpop.f32.mrb[0].mxu0
  %v117 = vpop.f32.mrb[0].mxu0
  %v118 = vadd.f32 %v33, %v117
  %v119 = vpop.f32.mrb[0].mxu0
  %120 = vmatprep.mubr.bf16.mxu0 0
  %121 = vmatmul.mubr.bf16.gmra.mrb[0].mxu0 %v70
  %v122 = vpop.f32.mrb[0].mxu0
  %v123 = vadd.f32 %v33, %v122
  %v124 = vpop.f32.mrb[0].mxu0
  %v125 = vpop.f32.mrb[0].mxu0
  %v126 = vadd.f32 %v33, %v125
  %v127 = vpop.f32.mrb[0].mxu0
  %128 = vdwg.mxu0
  %v129 = vld [vmem:[%s0] sm:$0xff]
  %v130 = vld [vmem:[%s0 + $0x8] sm:$0xff]
  %v131 = vld [vmem:[%s0 + $0x10] sm:$0xff]
  %v132 = vld [vmem:[%s0 + $0x18] sm:$0xff]
  %v133 = vld [vmem:[%s0 + $0x20] sm:$0xff]
  %v134 = vld [vmem:[%s0 + $0x28] sm:$0xff]
  %v135 = vadd.f32 %v129, %v107
  %v136 = vadd.f32 %v130, %v110
  %v137 = vadd.f32 %v131, %v115
  %v138 = vadd.f32 %v132, %v118
  %v139 = vadd.f32 %v133, %v123
  %v140 = vadd.f32 %v134, %v126
  %141 = vst.msk [vmem:[%s4] sm:$0xff] %vm62, %v135
  %142 = vst.msk [vmem:[%s4 + $0x8] sm:$0xff] %vm62, %v136
  %143 = vst.msk [vmem:[%s4 + $0x10] sm:$0xff] %vm62, %v137
  %144 = vst.msk [vmem:[%s4 + $0x18] sm:$0xff] %vm62, %v138
  %145 = vst.msk [vmem:[%s4 + $0x20] sm:$0xff] %vm62, %v139
  %146 = vst.msk [vmem:[%s4 + $0x28] sm:$0xff] %vm62, %v140
  // Predicated region
  $region18: #{hoi_residual_attention_block.17} parent=0 // pred_check
    _
  $region19: #{hoi_residual_attention_block.17} parent=0 // pred_check_branch
    %148 = sbr.rel (0) target = $region21
  $region20: #{hoi_residual_attention_block.17} parent=0 // pred_region
    _
  $region21: #{hoi_residual_attention_block.17} parent=0 // pred_fallthru
    _
  // Predicated region
  $region22: #{hoi_residual_attention_block.17} parent=0 // pred_check
    _
  $region23: #{hoi_residual_attention_block.17} parent=0 // pred_check_branch
    %150 = sbr.rel (0) target = $region25
  $region24: #{hoi_residual_attention_block.17} parent=0 // pred_region
    _
  $region25: #{hoi_residual_attention_block.17} parent=0 // pred_fallthru
    _

// kernel: hoi_residual_attention_block.16
$region0: #{hoi_residual_attention_block.16}
  #allocation0 [shape = 'u32[]', space=smem, size = 0x4, offset = 0x4, fixed_abs, tag = 'smem constant byte address 0x4 - core index']
  #allocation1 [shape = 'u32[144,128]{1,0:T(1,128)}', space=vmem, size = 0x12000, scoped, tag = 'internal scratch']
  %s0 = inlined_call_operand.vmem [shape: bf16[2,4,17,8], index: 0, kind: input, shape index: {}]
  %s1 = inlined_call_operand.vmem [shape: bf16[2,4,17,8], index: 1, kind: input, shape index: {}]
  %s2 = inlined_call_operand.vmem [shape: bf16[2,4,17,8], index: 2, kind: input, shape index: {}]
  %s3 = inlined_call_operand.vmem [shape: f32[2,17,17], index: 3, kind: input, shape index: {}]
  %s4 = inlined_call_operand.vmem [shape: bf16[2,4,17,8], index: 4, kind: output, shape index: {}]
  %s5 = sld [smem:[#allocation0]]
  $region49: #{hoi_residual_attention_block.16} parent=0
    _
  %s7 = ssub.s32 1, %s5
  %s8 = scalar_select 0, %s7, %s5
  loop: start=0, step=1, limit=4
  $region2: #{hoi_residual_attention_block.16} parent=0 // loop_pre_header
    _
  $region3: #{hoi_residual_attention_block.16} parent=0 // loop_header
    %s10 = sphi 0, %s14
    %p11 = scmp.ge.s32.totalorder %s10, 4
    %s20 = sphi 0, %s22
    %s23 = sphi 0, %s20
    %s24 = sphi 0, %s23
    %s40 = sphi 0, %s24
    %s46 = sphi 0, %s48
    %s49 = sphi 0, %s46
    %s50 = sphi 0, %s49
    %s66 = sphi 0, %s50
    %s72 = sphi 0, %s74
    %s75 = sphi 0, %s72
    %s76 = sphi 0, %s75
    %s92 = sphi 0, %s76
    %s98 = sphi 0, %s100
    %s101 = sphi 0, %s98
    %s102 = sphi 0, %s101
    %s118 = sphi 0, %s102
    %s124 = sphi 0, %s126
    %s127 = sphi 0, %s124
    %s128 = sphi 0, %s127
    %s144 = sphi 0, %s128
  $region4: #{hoi_residual_attention_block.16} parent=0 // loop_header_branch
    %13 = sbr.rel (%p11) target = $region8
  $region5: #{hoi_residual_attention_block.16} parent=0 // loop_body
    %s15 = ssub.s32 %s10, 1
    %s16 = ssub.s32 %s10, 2
    %s17 = sadd.s32 %s10, 1
    %s18 = ssub.s32 %s10, %s17
    %p19 = scmp.eq.s32.totalorder %s18, 0
    %s21 = sadd.s32 %s20, 1
    %s22 = scalar_select %p19, %s20, %s21
    %p25 = pneg %p19
    %p26 = scmp.eq.s32.totalorder %s10, 1
    %p27 = por %p25, %p26
    %p28 = scmp.ne.s32.totalorder %s20, %s23
    %p29 = scmp.eq.s32.totalorder %s10, 0
    %p30 = por %p28, %p29
    %p31 = scmp.ne.s32.totalorder %s20, %s23
    %p32 = scmp.eq.s32.totalorder %s15, 1
    %p33 = por %p31, %p32
    %p34 = scmp.ne.s32.totalorder %s23, %s24
    %p35 = scmp.eq.s32.totalorder %s15, 0
    %p36 = por %p34, %p35
    %p37 = scmp.ne.s32.totalorder %s23, %s24
    %p38 = scmp.eq.s32.totalorder %s16, 1
    %p39 = por %p37, %p38
    %p41 = scmp.ne.s32.totalorder %s24, %s40
    %p42 = scmp.eq.s32.totalorder %s16, 0
    %p43 = por %p41, %p42
    %s44 = ssub.s32 %s10, %s17
    %p45 = scmp.eq.s32.totalorder %s44, 0
    %s47 = sadd.s32 %s46, 1
    %s48 = scalar_select %p45, %s46, %s47
    %p51 = pneg %p45
    %p52 = scmp.eq.s32.totalorder %s10, 1
    %p53 = por %p51, %p52
    %p54 = scmp.ne.s32.totalorder %s46, %s49
    %p55 = scmp.eq.s32.totalorder %s10, 0
    %p56 = por %p54, %p55
    %p57 = scmp.ne.s32.totalorder %s46, %s49
    %p58 = scmp.eq.s32.totalorder %s15, 1
    %p59 = por %p57, %p58
    %p60 = scmp.ne.s32.totalorder %s49, %s50
    %p61 = scmp.eq.s32.totalorder %s15, 0
    %p62 = por %p60, %p61
    %p63 = scmp.ne.s32.totalorder %s49, %s50
    %p64 = scmp.eq.s32.totalorder %s16, 1
    %p65 = por %p63, %p64
    %p67 = scmp.ne.s32.totalorder %s50, %s66
    %p68 = scmp.eq.s32.totalorder %s16, 0
    %p69 = por %p67, %p68
    %s70 = ssub.s32 %s10, %s17
    %p71 = scmp.eq.s32.totalorder %s70, 0
    %s73 = sadd.s32 %s72, 1
    %s74 = scalar_select %p71, %s72, %s73
    %p77 = pneg %p71
    %p78 = scmp.eq.s32.totalorder %s10, 1
    %p79 = por %p77, %p78
    %p80 = scmp.ne.s32.totalorder %s72, %s75
    %p81 = scmp.eq.s32.totalorder %s10, 0
    %p82 = por %p80, %p81
    %p83 = scmp.ne.s32.totalorder %s72, %s75
    %p84 = scmp.eq.s32.totalorder %s15, 1
    %p85 = por %p83, %p84
    %p86 = scmp.ne.s32.totalorder %s75, %s76
    %p87 = scmp.eq.s32.totalorder %s15, 0
    %p88 = por %p86, %p87
    %p89 = scmp.ne.s32.totalorder %s75, %s76
    %p90 = scmp.eq.s32.totalorder %s16, 1
    %p91 = por %p89, %p90
    %p93 = scmp.ne.s32.totalorder %s76, %s92
    %p94 = scmp.eq.s32.totalorder %s16, 0
    %p95 = por %p93, %p94
    %s96 = ssub.s32 %s10, %s17
    %p97 = scmp.eq.s32.totalorder %s96, 0
    %s99 = sadd.s32 %s98, 1
    %s100 = scalar_select %p97, %s98, %s99
    %p103 = pneg %p97
    %p104 = scmp.eq.s32.totalorder %s10, 1
    %p105 = por %p103, %p104
    %p106 = scmp.ne.s32.totalorder %s98, %s101
    %p107 = scmp.eq.s32.totalorder %s10, 0
    %p108 = por %p106, %p107
    %p109 = scmp.ne.s32.totalorder %s98, %s101
    %p110 = scmp.eq.s32.totalorder %s15, 1
    %p111 = por %p109, %p110
    %p112 = scmp.ne.s32.totalorder %s101, %s102
    %p113 = scmp.eq.s32.totalorder %s15, 0
    %p114 = por %p112, %p113
    %p115 = scmp.ne.s32.totalorder %s101, %s102
    %p116 = scmp.eq.s32.totalorder %s16, 1
    %p117 = por %p115, %p116
    %p119 = scmp.ne.s32.totalorder %s102, %s118
    %p120 = scmp.eq.s32.totalorder %s16, 0
    %p121 = por %p119, %p120
    %s122 = ssub.s32 %s10, %s17
    %p123 = scmp.eq.s32.totalorder %s122, 0
    %s125 = sadd.s32 %s124, 1
    %s126 = scalar_select %p123, %s124, %s125
    %p129 = pneg %p123
    %p130 = scmp.eq.s32.totalorder %s10, 1
    %p131 = por %p129, %p130
    %p132 = scmp.ne.s32.totalorder %s124, %s127
    %p133 = scmp.eq.s32.totalorder %s10, 0
    %p134 = por %p132, %p133
    %p135 = scmp.ne.s32.totalorder %s124, %s127
    %p136 = scmp.eq.s32.totalorder %s15, 1
    %p137 = por %p135, %p136
    %p138 = scmp.ne.s32.totalorder %s127, %s128
    %p139 = scmp.eq.s32.totalorder %s15, 0
    %p140 = por %p138, %p139
    %p141 = scmp.ne.s32.totalorder %s127, %s128
    %p142 = scmp.eq.s32.totalorder %s16, 1
    %p143 = por %p141, %p142
    %p145 = scmp.ne.s32.totalorder %s128, %s144
    %p146 = scmp.eq.s32.totalorder %s16, 0
    %p147 = por %p145, %p146
    %p148 = scmp.le.s32.totalorder 1, %s10
    %p149 = scmp.lt.s32.totalorder %s10, 3
    %p150 = pnand %p148, %p149
    %p151 = pneg %p150
    // Predicated region
    $region9: #{hoi_residual_attention_block.16} parent=5 // pred_check
      _
    $region10: #{hoi_residual_attention_block.16} parent=5 // pred_check_branch
      %153 = sbr.rel (%p150) target = $region12
    $region11: #{hoi_residual_attention_block.16} parent=5 // pred_region
      %s154 = ssub.s32 %s10, 1
    $region12: #{hoi_residual_attention_block.16} parent=5 // pred_fallthru
      _
    %p155 = scmp.lt.s32.totalorder %s10, 2
    // Predicated region
    $region13: #{hoi_residual_attention_block.16} parent=5 // pred_check
      %p156 = pneg %p155
    $region14: #{hoi_residual_attention_block.16} parent=5 // pred_check_branch
      %158 = sbr.rel (%p156) target = $region16
    $region15: #{hoi_residual_attention_block.16} parent=5 // pred_region
      // Predicated region
      $region17: #{hoi_residual_attention_block.16} parent=15 // pred_check
        %p159 = pneg %p30
      $region18: #{hoi_residual_attention_block.16} parent=15 // pred_check_branch
        %161 = sbr.rel (%p159) target = $region20
      $region19: #{hoi_residual_attention_block.16} parent=15 // pred_region
        %p162 = scmp.lt.s32.totalorder %s10, 1
        %s163 = scalar_select %p162, %s10, 1
        %s164 = smul.addr %s163, 12
        %s165 = smul.addr %s164, 4
        %s166 = scalar_lea.vmem %s0, %s165
      $region20: #{hoi_residual_attention_block.16} parent=15 // pred_fallthru
        _
      // Predicated region
      $region21: #{hoi_residual_attention_block.16} parent=15 // pred_check
        %p167 = pneg %p56
      $region22: #{hoi_residual_attention_block.16} parent=15 // pred_check_branch
        %169 = sbr.rel (%p167) target = $region24
      $region23: #{hoi_residual_attention_block.16} parent=15 // pred_region
        %p170 = scmp.lt.s32.totalorder %s10, 1
        %s171 = scalar_select %p170, %s10, 1
        %s172 = smul.addr %s171, 12
        %s173 = smul.addr %s172, 4
        %s174 = scalar_lea.vmem %s1, %s173
      $region24: #{hoi_residual_attention_block.16} parent=15 // pred_fallthru
        _
      // Predicated region
      $region25: #{hoi_residual_attention_block.16} parent=15 // pred_check
        %p175 = pneg %p82
      $region26: #{hoi_residual_attention_block.16} parent=15 // pred_check_branch
        %177 = sbr.rel (%p175) target = $region28
      $region27: #{hoi_residual_attention_block.16} parent=15 // pred_region
        %p178 = scmp.lt.s32.totalorder %s10, 1
        %s179 = scalar_select %p178, %s10, 1
        %s180 = smul.addr %s179, 12
        %s181 = smul.addr %s180, 4
        %s182 = scalar_lea.vmem %s2, %s181
      $region28: #{hoi_residual_attention_block.16} parent=15 // pred_fallthru
        _
      // Predicated region
      $region29: #{hoi_residual_attention_block.16} parent=15 // pred_check
        %p183 = pneg %p108
      $region30: #{hoi_residual_attention_block.16} parent=15 // pred_check_branch
        %185 = sbr.rel (%p183) target = $region32
      $region31: #{hoi_residual_attention_block.16} parent=15 // pred_region
        %p186 = scmp.lt.s32.totalorder %s10, 1
        %s187 = scalar_select %p186, %s10, 1
        %s188 = smul.addr %s187, 3
        %s189 = smul.addr %s188, 8
        %s190 = scalar_lea.vmem %s3, %s189
      $region32: #{hoi_residual_attention_block.16} parent=15 // pred_fallthru
        _
    $region16: #{hoi_residual_attention_block.16} parent=5 // pred_fallthru
      _
    %p191 = scmp.le.s32.totalorder 1, %s10
    %p192 = scmp.lt.s32.totalorder %s10, 3
    %p193 = pnand %p191, %p192
    %p194 = pneg %p193
    // Predicated region
    $region33: #{hoi_residual_attention_block.16} parent=5 // pred_check
      _
    $region34: #{hoi_residual_attention_block.16} parent=5 // pred_check_branch
      %196 = sbr.rel (%p193) target = $region36
    $region35: #{hoi_residual_attention_block.16} parent=5 // pred_region
      %s197 = ssub.s32 %s10, 1
      %p198 = scmp.lt.s32.totalorder %s15, 1
      %s199 = scalar_select %p198, %s15, 1
      %s200 = smul.addr %s199, 12
      %s201 = smul.addr %s200, 4
      %s202 = scalar_lea.vmem %s0, %s201
      %p203 = pneg %p36
      %p204 = pneg %p33
      %p205 = scmp.lt.s32.totalorder %s15, 1
      %s206 = scalar_select %p205, %s15, 1
      %s207 = smul.addr %s206, 12
      %s208 = smul.addr %s207, 4
      %s209 = scalar_lea.vmem %s1, %s208
      %p210 = pneg %p62
      %p211 = pneg %p59
      %p212 = scmp.lt.s32.totalorder %s15, 1
      %s213 = scalar_select %p212, %s15, 1
      %s214 = smul.addr %s213, 12
      %s215 = smul.addr %s214, 4
      %s216 = scalar_lea.vmem %s2, %s215
      %p217 = pneg %p88
      %p218 = pneg %p85
      %p219 = scmp.lt.s32.totalorder %s15, 1
      %s220 = scalar_select %p219, %s15, 1
      %s221 = smul.addr %s220, 3
      %s222 = smul.addr %s221, 8
      %s223 = scalar_lea.vmem %s3, %s222
      %p224 = pneg %p114
      %p225 = pneg %p111
      %p226 = pneg %p140
      %p227 = pneg %p137
      %p228 = scmp.lt.s32.totalorder %s15, 1
      %s229 = scalar_select %p228, %s15, 1
      %s230 = smul.addr %s229, 12
      %s231 = smul.addr %s230, 4
      %s232 = scalar_lea.vmem %s4, %s231
      %p233 = scmp.lt.s32.totalorder %s15, 1
      %s234 = scalar_select %p233, %s15, 1
      %s235 = smul.addr %s234, 12
      %s236 = smul.addr %s235, 4
      %s237 = scalar_lea.vmem %s0, %s236
      %p238 = scmp.lt.s32.totalorder %s15, 1
      %s239 = scalar_select %p238, %s15, 1
      %s240 = smul.addr %s239, 12
      %s241 = smul.addr %s240, 4
      %s242 = scalar_lea.vmem %s1, %s241
      %p243 = scmp.lt.s32.totalorder %s15, 1
      %s244 = scalar_select %p243, %s15, 1
      %s245 = smul.addr %s244, 12
      %s246 = smul.addr %s245, 4
      %s247 = scalar_lea.vmem %s2, %s246
      %p248 = scmp.lt.s32.totalorder %s15, 1
      %s249 = scalar_select %p248, %s15, 1
      %s250 = smul.addr %s249, 3
      %s251 = smul.addr %s250, 8
      %s252 = scalar_lea.vmem %s3, %s251
      %p253 = scmp.lt.s32.totalorder %s15, 1
      %s254 = scalar_select %p253, %s15, 1
      %s255 = smul.addr %s254, 12
      %s256 = smul.addr %s255, 4
      %s257 = scalar_lea.vmem %s4, %s256
      %v259 = vld [vmem:[%s237] sm:$0xf]
      %v260 = vld [vmem:[%s237 + $0x4] sm:$0xf]
      %v261 = vld [vmem:[%s237 + $0x8] sm:$0x1]
      %v262 = vld [vmem:[%s237 + $0xc] sm:$0xf]
      %v263 = vld [vmem:[%s237 + $0x10] sm:$0xf]
      %v264 = vld [vmem:[%s237 + $0x14] sm:$0x1]
      %v265 = vld [vmem:[%s237 + $0x18] sm:$0xf]
      %v266 = vld [vmem:[%s237 + $0x1c] sm:$0xf]
      %v267 = vld [vmem:[%s237 + $0x20] sm:$0x1]
      %v268 = vld [vmem:[%s237 + $0x24] sm:$0xf]
      %v269 = vld [vmem:[%s237 + $0x28] sm:$0xf]
      %v270 = vld [vmem:[%s237 + $0x2c] sm:$0x1]
      %v271 = vld [vmem:[%s242] sm:$0xf]
      %v272 = vld [vmem:[%s242 + $0x4] sm:$0xf]
      %v273 = vld [vmem:[%s242 + $0x8] sm:$0x1]
      %v274 = vld [vmem:[%s242 + $0xc] sm:$0xf]
      %v275 = vld [vmem:[%s242 + $0x10] sm:$0xf]
      %v276 = vld [vmem:[%s242 + $0x14] sm:$0x1]
      %v277 = vld [vmem:[%s242 + $0x18] sm:$0xf]
      %v278 = vld [vmem:[%s242 + $0x1c] sm:$0xf]
      %v279 = vld [vmem:[%s242 + $0x20] sm:$0x1]
      %v280 = vld [vmem:[%s242 + $0x24] sm:$0xf]
      %v281 = vld [vmem:[%s242 + $0x28] sm:$0xf]
      %v282 = vld [vmem:[%s242 + $0x2c] sm:$0x1]
      %v283 = vld [vmem:[%s247] sm:$0xf]
      %v284 = vld [vmem:[%s247 + $0x4] sm:$0xf]
      %v285 = vld [vmem:[%s247 + $0x8] sm:$0x1]
      %v286 = vld [vmem:[%s247 + $0xc] sm:$0xf]
      %v287 = vld [vmem:[%s247 + $0x10] sm:$0xf]
      %v288 = vld [vmem:[%s247 + $0x14] sm:$0x1]
      %v289 = vld [vmem:[%s247 + $0x18] sm:$0xf]
      %v290 = vld [vmem:[%s247 + $0x1c] sm:$0xf]
      %v291 = vld [vmem:[%s247 + $0x20] sm:$0x1]
      %v292 = vld [vmem:[%s247 + $0x24] sm:$0xf]
      %v293 = vld [vmem:[%s247 + $0x28] sm:$0xf]
      %v294 = vld [vmem:[%s247 + $0x2c] sm:$0x1]
      %v298 = vunpack.c.l.b16 %v259
      %v299 = vunpack.c.l.b16 %v260
      %v300 = vunpack.c.l.b16 %v261
      %v301 = vpack.c.b16 %v299, %v298
      %v302 = vpack.c.b16 %v300, %v300
      %v306 = vunpack.c.l.b16 %v271
      %v307 = vunpack.c.l.b16 %v272
      %v308 = vunpack.c.l.b16 %v273
      %v309 = vpack.c.b16 %v307, %v306
      %v310 = vpack.c.b16 %v308, %v308
      %vm311 = vcmask 64512
      %v313 = vsel %vm311, %v301, 0
      %v316 = vsel %vm311, %v302, 0
      %v319 = vsel %vm311, %v309, 0
      %v322 = vsel %vm311, %v310, 0
      %324 = vmatprep.subr.bf16.mxu0 0
      %325 = vmatpush1.bf16.xpose.msra.mxu0 %v319
      %326 = vmatprep.subr.bf16.mxu0 0
      %327 = vmatpush1.bf16.xpose.msra.mxu0 %v322
      %328 = vmatprep.subr.bf16.mxu0 0
      %329 = vmatpush1.bf16.xpose.msra.mxu0 0
      %330 = vmatprep.subr.bf16.mxu0 0
      %331 = vmatpush1.bf16.xpose.msra.mxu0 0
      %332 = vmatprep.subr.bf16.mxu0 0
      %333 = vmatpush1.bf16.xpose.msra.mxu0 0
      %334 = vmatprep.subr.bf16.mxu0 0
      %335 = vmatpush1.bf16.xpose.msra.mxu0 0
      %336 = vmatprep.subr.bf16.mxu0 0
      %337 = vmatpush1.bf16.xpose.msra.mxu0 0
      %338 = vmatprep.subr.bf16.mxu0 0
      %339 = vmatpush1.bf16.xpose.msra.mxu0 0
      %340 = vmatprep.subr.bf16.mxu0 0
      %341 = vmatpush1.bf16.xpose.msra.mxu0 0
      %342 = vmatprep.subr.bf16.mxu0 0
      %343 = vmatpush1.bf16.xpose.msra.mxu0 0
      %344 = vmatprep.subr.bf16.mxu0 0
      %345 = vmatpush1.bf16.xpose.msra.mxu0 0
      %346 = vmatprep.subr.bf16.mxu0 0
      %347 = vmatpush1.bf16.xpose.msra.mxu0 0
      %348 = vmatprep.subr.bf16.mxu0 0
      %349 = vmatpush1.bf16.xpose.msra.mxu0 0
      %350 = vmatprep.subr.bf16.mxu0 0
      %351 = vmatpush1.bf16.xpose.msra.mxu0 0
      %352 = vmatprep.subr.bf16.mxu0 0
      %353 = vmatpush1.bf16.xpose.msra.mxu0 0
      %354 = vmatprep.subr.bf16.mxu0 0
      %355 = vmatpush1.bf16.xpose.msra.mxu0 0
      %356 = vmatprep.mubr.bf16.mxu0 0
      %357 = vmatmul.mubr.bf16.gmra.mrb[0].mxu0 %v313
      %v358 = vpop.f32.mrb[0].mxu0
      %v359 = vadd.f32 0.0, %v358
      %v360 = vpop.f32.mrb[0].mxu0
      %v361 = vpop.f32.mrb[0].mxu0
      %v362 = vadd.f32 0.0, %v361
      %v363 = vpop.f32.mrb[0].mxu0
      %364 = vmatprep.mubr.bf16.mxu0 0
      %365 = vmatmul.mubr.bf16.gmra.mrb[0].mxu0 %v316
      %v366 = vpop.f32.mrb[0].mxu0
      %v367 = vadd.f32 0.0, %v366
      %v368 = vpop.f32.mrb[0].mxu0
      %v369 = vpop.f32.mrb[0].mxu0
      %v370 = vpop.f32.mrb[0].mxu0
      %371 = vdwg.mxu0
      %v375 = vunpack.c.l.b16 %v262
      %v376 = vunpack.c.l.b16 %v263
      %v377 = vunpack.c.l.b16 %v264
      %v378 = vpack.c.b16 %v376, %v375
      %v379 = vpack.c.b16 %v377, %v377
      %v383 = vunpack.c.l.b16 %v274
      %v384 = vunpack.c.l.b16 %v275
      %v385 = vunpack.c.l.b16 %v276
      %v386 = vpack.c.b16 %v384, %v383
      %v387 = vpack.c.b16 %v385, %v385
      %v389 = vsel %vm311, %v378, 0
      %v392 = vsel %vm311, %v379, 0
      %v395 = vsel %vm311, %v386, 0
      %v398 = vsel %vm311, %v387, 0
      %400 = vmatprep.subr.bf16.mxu0 0
      %401 = vmatpush1.bf16.xpose.msra.mxu0 %v395
      %402 = vmatprep.subr.bf16.mxu0 0
      %403 = vmatpush1.bf16.xpose.msra.mxu0 %v398
      %404 = vmatprep.subr.bf16.mxu0 0
      %405 = vmatpush1.bf16.xpose.msra.mxu0 0
      %406 = vmatprep.subr.bf16.mxu0 0
      %407 = vmatpush1.bf16.xpose.msra.mxu0 0
      %408 = vmatprep.subr.bf16.mxu0 0
      %409 = vmatpush1.bf16.xpose.msra.mxu0 0
      %410 = vmatprep.subr.bf16.mxu0 0
      %411 = vmatpush1.bf16.xpose.msra.mxu0 0
      %412 = vmatprep.subr.bf16.mxu0 0
      %413 = vmatpush1.bf16.xpose.msra.mxu0 0
      %414 = vmatprep.subr.bf16.mxu0 0
      %415 = vmatpush1.bf16.xpose.msra.mxu0 0
      %416 = vmatprep.subr.bf16.mxu0 0
      %417 = vmatpush1.bf16.xpose.msra.mxu0 0
      %418 = vmatprep.subr.bf16.mxu0 0
      %419 = vmatpush1.bf16.xpose.msra.mxu0 0
      %420 = vmatprep.subr.bf16.mxu0 0
      %421 = vmatpush1.bf16.xpose.msra.mxu0 0
      %422 = vmatprep.subr.bf16.mxu0 0
      %423 = vmatpush1.bf16.xpose.msra.mxu0 0
      %424 = vmatprep.subr.bf16.mxu0 0
      %425 = vmatpush1.bf16.xpose.msra.mxu0 0
      %426 = vmatprep.subr.bf16.mxu0 0
      %427 = vmatpush1.bf16.xpose.msra.mxu0 0
      %428 = vmatprep.subr.bf16.mxu0 0
      %429 = vmatpush1.bf16.xpose.msra.mxu0 0
      %430 = vmatprep.subr.bf16.mxu0 0
      %431 = vmatpush1.bf16.xpose.msra.mxu0 0
      %432 = vmatprep.mubr.bf16.mxu0 0
      %433 = vmatmul.mubr.bf16.gmra.mrb[0].mxu0 %v389
      %v434 = vpop.f32.mrb[0].mxu0
      %v435 = vadd.f32 0.0, %v434
      %v436 = vpop.f32.mrb[0].mxu0
      %v437 = vpop.f32.mrb[0].mxu0
      %v438 = vadd.f32 0.0, %v437
      %v439 = vpop.f32.mrb[0].mxu0
      %440 = vmatprep.mubr.bf16.mxu0 0
      %441 = vmatmul.mubr.bf16.gmra.mrb[0].mxu0 %v392
      %v442 = vpop.f32.mrb[0].mxu0
      %v443 = vadd.f32 0.0, %v442
      %v444 = vpop.f32.mrb[0].mxu0
      %v445 = vpop.f32.mrb[0].mxu0
      %v446 = vpop.f32.mrb[0].mxu0
      %447 = vdwg.mxu0
      %v451 = vunpack.c.l.b16 %v265
      %v452 = vunpack.c.l.b16 %v266
      %v453 = vunpack.c.l.b16 %v267
      %v454 = vpack.c.b16 %v452, %v451
      %v455 = vpack.c.b16 %v453, %v453
      %v459 = vunpack.c.l.b16 %v277
      %v460 = vunpack.c.l.b16 %v278
      %v461 = vunpack.c.l.b16 %v279
      %v462 = vpack.c.b16 %v460, %v459
      %v463 = vpack.c.b16 %v461, %v461
      %v465 = vsel %vm311, %v454, 0
      %v468 = vsel %vm311, %v455, 0
      %v471 = vsel %vm311, %v462, 0
      %v474 = vsel %vm311, %v463, 0
      %476 = vmatprep.subr.bf16.mxu0 0
      %477 = vmatpush1.bf16.xpose.msra.mxu0 %v471
      %478 = vmatprep.subr.bf16.mxu0 0
      %479 = vmatpush1.bf16.xpose.msra.mxu0 %v474
      %480 = vmatprep.subr.bf16.mxu0 0
      %481 = vmatpush1.bf16.xpose.msra.mxu0 0
      %482 = vmatprep.subr.bf16.mxu0 0
      %483 = vmatpush1.bf16.xpose.msra.mxu0 0
      %484 = vmatprep.subr.bf16.mxu0 0
      %485 = vmatpush1.bf16.xpose.msra.mxu0 0
      %486 = vmatprep.subr.bf16.mxu0 0
      %487 = vmatpush1.bf16.xpose.msra.mxu0 0
      %488 = vmatprep.subr.bf16.mxu0 0
      %489 = vmatpush1.bf16.xpose.msra.mxu0 0
      %490 = vmatprep.subr.bf16.mxu0 0
      %491 = vmatpush1.bf16.xpose.msra.mxu0 0
      %492 = vmatprep.subr.bf16.mxu0 0
      %493 = vmatpush1.bf16.xpose.msra.mxu0 0
      %494 = vmatprep.subr.bf16.mxu0 0
      %495 = vmatpush1.bf16.xpose.msra.mxu0 0
      %496 = vmatprep.subr.bf16.mxu0 0
      %497 = vmatpush1.bf16.xpose.msra.mxu0 0
      %498 = vmatprep.subr.bf16.mxu0 0
      %499 = vmatpush1.bf16.xpose.msra.mxu0 0
      %500 = vmatprep.subr.bf16.mxu0 0
      %501 = vmatpush1.bf16.xpose.msra.mxu0 0
      %502 = vmatprep.subr.bf16.mxu0 0
      %503 = vmatpush1.bf16.xpose.msra.mxu0 0
      %504 = vmatprep.subr.bf16.mxu0 0
      %505 = vmatpush1.bf16.xpose.msra.mxu0 0
      %506 = vmatprep.subr.bf16.mxu0 0
      %507 = vmatpush1.bf16.xpose.msra.mxu0 0
      %508 = vmatprep.mubr.bf16.mxu0 0
      %509 = vmatmul.mubr.bf16.gmra.mrb[0].mxu0 %v465
      %v510 = vpop.f32.mrb[0].mxu0
      %v511 = vadd.f32 0.0, %v510
      %v512 = vpop.f32.mrb[0].mxu0
      %v513 = vpop.f32.mrb[0].mxu0
      %v514 = vadd.f32 0.0, %v513
      %v515 = vpop.f32.mrb[0].mxu0
      %516 = vmatprep.mubr.bf16.mxu0 0
      %517 = vmatmul.mubr.bf16.gmra.mrb[0].mxu0 %v468
      %v518 = vpop.f32.mrb[0].mxu0
      %v519 = vadd.f32 0.0, %v518
      %v520 = vpop.f32.mrb[0].mxu0
      %v521 = vpop.f32.mrb[0].mxu0
      %v522 = vpop.f32.mrb[0].mxu0
      %523 = vdwg.mxu0
      %v527 = vunpack.c.l.b16 %v268
      %v528 = vunpack.c.l.b16 %v269
      %v529 = vunpack.c.l.b16 %v270
      %v530 = vpack.c.b16 %v528, %v527
      %v531 = vpack.c.b16 %v529, %v529
      %v535 = vunpack.c.l.b16 %v280
      %v536 = vunpack.c.l.b16 %v281
      %v537 = vunpack.c.l.b16 %v282
      %v538 = vpack.c.b16 %v536, %v535
      %v539 = vpack.c.b16 %v537, %v537
      %v541 = vsel %vm311, %v530, 0
      %v544 = vsel %vm311, %v531, 0
      %v547 = vsel %vm311, %v538, 0
      %v550 = vsel %vm311, %v539, 0
      %552 = vmatprep.subr.bf16.mxu0 0
      %553 = vmatpush1.bf16.xpose.msra.mxu0 %v547
      %554 = vmatprep.subr.bf16.mxu0 0
      %555 = vmatpush1.bf16.xpose.msra.mxu0 %v550
      %556 = vmatprep.subr.bf16.mxu0 0
      %557 = vmatpush1.bf16.xpose.msra.mxu0 0
      %558 = vmatprep.subr.bf16.mxu0 0
      %559 = vmatpush1.bf16.xpose.msra.mxu0 0
      %560 = vmatprep.subr.bf16.mxu0 0
      %561 = vmatpush1.bf16.xpose.msra.mxu0 0
      %562 = vmatprep.subr.bf16.mxu0 0
      %563 = vmatpush1.bf16.xpose.msra.mxu0 0
      %564 = vmatprep.subr.bf16.mxu0 0
      %565 = vmatpush1.bf16.xpose.msra.mxu0 0
      %566 = vmatprep.subr.bf16.mxu0 0
      %567 = vmatpush1.bf16.xpose.msra.mxu0 0
      %568 = vmatprep.subr.bf16.mxu0 0
      %569 = vmatpush1.bf16.xpose.msra.mxu0 0
      %570 = vmatprep.subr.bf16.mxu0 0
      %571 = vmatpush1.bf16.xpose.msra.mxu0 0
      %572 = vmatprep.subr.bf16.mxu0 0
      %573 = vmatpush1.bf16.xpose.msra.mxu0 0
      %574 = vmatprep.subr.bf16.mxu0 0
      %575 = vmatpush1.bf16.xpose.msra.mxu0 0
      %576 = vmatprep.subr.bf16.mxu0 0
      %577 = vmatpush1.bf16.xpose.msra.mxu0 0
      %578 = vmatprep.subr.bf16.mxu0 0
      %579 = vmatpush1.bf16.xpose.msra.mxu0 0
      %580 = vmatprep.subr.bf16.mxu0 0
      %581 = vmatpush1.bf16.xpose.msra.mxu0 0
      %582 = vmatprep.subr.bf16.mxu0 0
      %583 = vmatpush1.bf16.xpose.msra.mxu0 0
      %584 = vmatprep.mubr.bf16.mxu0 0
      %585 = vmatmul.mubr.bf16.gmra.mrb[0].mxu0 %v541
      %v586 = vpop.f32.mrb[0].mxu0
      %v587 = vadd.f32 0.0, %v586
      %v588 = vpop.f32.mrb[0].mxu0
      %v589 = vpop.f32.mrb[0].mxu0
      %v590 = vadd.f32 0.0, %v589
      %v591 = vpop.f32.mrb[0].mxu0
      %592 = vmatprep.mubr.bf16.mxu0 0
      %593 = vmatmul.mubr.bf16.gmra.mrb[0].mxu0 %v544
      %v594 = vpop.f32.mrb[0].mxu0
      %v595 = vadd.f32 0.0, %v594
      %v596 = vpop.f32.mrb[0].mxu0
      %v597 = vpop.f32.mrb[0].mxu0
      %v598 = vpop.f32.mrb[0].mxu0
      %599 = vdwg.mxu0
      %v600 = vmul.f32 %v359, 0.35355338
      %v601 = vmul.f32 %v362, 0.35355338
      %v602 = vmul.f32 %v367, 0.35355338
      %v603 = vmul.f32 %v435, 0.35355338
      %v604 = vmul.f32 %v438, 0.35355338
      %v605 = vmul.f32 %v443, 0.35355338
      %v606 = vmul.f32 %v511, 0.35355338
      %v607 = vmul.f32 %v514, 0.35355338
      %v608 = vmul.f32 %v519, 0.35355338
      %v609 = vmul.f32 %v587, 0.35355338
      %v610 = vmul.f32 %v590, 0.35355338
      %v611 = vmul.f32 %v595, 0.35355338
      %v612 = vld [vmem:[%s252] sm:$0xff]
      %v613 = vld [vmem:[%s252 + $0x8] sm:$0xff]
      %v614 = vld [vmem:[%s252 + $0x10] sm:$0x1]
      %v615 = vadd.f32 %v600, %v612
      %v616 = vadd.f32 %v601, %v613
      %v617 = vadd.f32 %v602, %v614
      %v618 = vadd.f32 %v603, %v612
      %v619 = vadd.f32 %v604, %v613
      %v620 = vadd.f32 %v605, %v614
      %v621 = vadd.f32 %v606, %v612
      %v622 = vadd.f32 %v607, %v613
      %v623 = vadd.f32 %v608, %v614
      %v624 = vadd.f32 %v609, %v612
      %v625 = vadd.f32 %v610, %v613
      %v626 = vadd.f32 %v611, %v614
      %vm627 = vcmask 138240
      %v628 = vsel %vm627, %v615, -inf
      %629 = vmax.xlane.f32.xlu0 %v628
      %v630 = vpop.xlane.xlu0 %629
      %v631 = vsel %vm627, %v616, -inf
      %632 = vmax.xlane.f32.xlu0 %v631
      %v633 = vpop.xlane.xlu0 %632
      %vm634 = vcmask 131072
      %v635 = vsel %vm634, %v617, -inf
      %636 = vmax.xlane.f32.xlu0 %v635
      %v637 = vpop.xlane.xlu0 %636
      %v638 = vsel %vm627, %v618, -inf
      %639 = vmax.xlane.f32.xlu0 %v638
      %v640 = vpop.xlane.xlu0 %639
      %v641 = vsel %vm627, %v619, -inf
      %642 = vmax.xlane.f32.xlu0 %v641
      %v643 = vpop.xlane.xlu0 %642
      %v644 = vsel %vm634, %v620, -inf
      %645 = vmax.xlane.f32.xlu0 %v644
      %v646 = vpop.xlane.xlu0 %645
      %v647 = vsel %vm627, %v621, -inf
      %648 = vmax.xlane.f32.xlu0 %v647
      %v649 = vpop.xlane.xlu0 %648
      %v650 = vsel %vm627, %v622, -inf
      %651 = vmax.xlane.f32.xlu0 %v650
      %v652 = vpop.xlane.xlu0 %651
      %v653 = vsel %vm634, %v623, -inf
      %654 = vmax.xlane.f32.xlu0 %v653
      %v655 = vpop.xlane.xlu0 %654
      %v656 = vsel %vm627, %v624, -inf
      %657 = vmax.xlane.f32.xlu0 %v656
      %v658 = vpop.xlane.xlu0 %657
      %v659 = vsel %vm627, %v625, -inf
      %660 = vmax.xlane.f32.xlu0 %v659
      %v661 = vpop.xlane.xlu0 %660
      %v662 = vsel %vm634, %v626, -inf
      %663 = vmax.xlane.f32.xlu0 %v662
      %v664 = vpop.xlane.xlu0 %663
      %v665 = vsub.f32 %v615, %v630
      %v666 = vsub.f32 %v616, %v633
      %v667 = vsub.f32 %v617, %v637
      %v668 = vsub.f32 %v618, %v640
      %v669 = vsub.f32 %v619, %v643
      %v670 = vsub.f32 %v620, %v646
      %v671 = vsub.f32 %v621, %v649
      %v672 = vsub.f32 %v622, %v652
      %v673 = vsub.f32 %v623, %v655
      %v674 = vsub.f32 %v624, %v658
      %v675 = vsub.f32 %v625, %v661
      %v676 = vsub.f32 %v626, %v664
      %v677 = vmul.f32 %v665, 1.442695
      %v678 = vpow.pop %v677
      %v679 = vmul.f32 %v666, 1.442695
      %v680 = vpow.pop %v679
      %v681 = vmul.f32 %v667, 1.442695
      %v682 = vpow.pop %v681
      %v683 = vmul.f32 %v668, 1.442695
      %v684 = vpow.pop %v683
      %v685 = vmul.f32 %v669, 1.442695
      %v686 = vpow.pop %v685
      %v687 = vmul.f32 %v670, 1.442695
      %v688 = vpow.pop %v687
      %v689 = vmul.f32 %v671, 1.442695
      %v690 = vpow.pop %v689
      %v691 = vmul.f32 %v672, 1.442695
      %v692 = vpow.pop %v691
      %v693 = vmul.f32 %v673, 1.442695
      %v694 = vpow.pop %v693
      %v695 = vmul.f32 %v674, 1.442695
      %v696 = vpow.pop %v695
      %v697 = vmul.f32 %v675, 1.442695
      %v698 = vpow.pop %v697
      %v699 = vmul.f32 %v676, 1.442695
      %v700 = vpow.pop %v699
      %v701 = vsel %vm627, %v678, 0.0
      %702 = vadd.xlane.f32.xlu0 %v701
      %v703 = vpop.xlane.xlu0 %702
      %v704 = vsel %vm627, %v680, 0.0
      %705 = vadd.xlane.f32.xlu0 %v704
      %v706 = vpop.xlane.xlu0 %705
      %v707 = vsel %vm634, %v682, 0.0
      %708 = vadd.xlane.f32.xlu0 %v707
      %v709 = vpop.xlane.xlu0 %708
      %v710 = vsel %vm627, %v684, 0.0
      %711 = vadd.xlane.f32.xlu0 %v710
      %v712 = vpop.xlane.xlu0 %711
      %v713 = vsel %vm627, %v686, 0.0
      %714 = vadd.xlane.f32.xlu0 %v713
      %v715 = vpop.xlane.xlu0 %714
      %v716 = vsel %vm634, %v688, 0.0
      %717 = vadd.xlane.f32.xlu0 %v716
      %v718 = vpop.xlane.xlu0 %717
      %v719 = vsel %vm627, %v690, 0.0
      %720 = vadd.xlane.f32.xlu0 %v719
      %v721 = vpop.xlane.xlu0 %720
      %v722 = vsel %vm627, %v692, 0.0
      %723 = vadd.xlane.f32.xlu0 %v722
      %v724 = vpop.xlane.xlu0 %723
      %v725 = vsel %vm634, %v694, 0.0
      %726 = vadd.xlane.f32.xlu0 %v725
      %v727 = vpop.xlane.xlu0 %726
      %v728 = vsel %vm627, %v696, 0.0
      %729 = vadd.xlane.f32.xlu0 %v728
      %v730 = vpop.xlane.xlu0 %729
      %v731 = vsel %vm627, %v698, 0.0
      %732 = vadd.xlane.f32.xlu0 %v731
      %v733 = vpop.xlane.xlu0 %732
      %v734 = vsel %vm634, %v700, 0.0
      %735 = vadd.xlane.f32.xlu0 %v734
      %v736 = vpop.xlane.xlu0 %735
      %v737 = vrcp.pop %v703
      %v738 = vrcp.pop %v706
      %v739 = vrcp.pop %v709
      %v740 = vrcp.pop %v712
      %v741 = vrcp.pop %v715
      %v742 = vrcp.pop %v718
      %v743 = vrcp.pop %v721
      %v744 = vrcp.pop %v724
      %v745 = vrcp.pop %v727
      %v746 = vrcp.pop %v730
      %v747 = vrcp.pop %v733
      %v748 = vrcp.pop %v736
      %v749 = vmul.f32 %v678, %v737
      %v750 = vmul.f32 %v680, %v738
      %v751 = vmul.f32 %v682, %v739
      %v752 = vmul.f32 %v684, %v740
      %v753 = vmul.f32 %v686, %v741
      %v754 = vmul.f32 %v688, %v742
      %v755 = vmul.f32 %v690, %v743
      %v756 = vmul.f32 %v692, %v744
      %v757 = vmul.f32 %v694, %v745
      %v758 = vmul.f32 %v696, %v746
      %v759 = vmul.f32 %v698, %v747
      %v760 = vmul.f32 %v700, %v748
      %v761 = vpack.c.bf16 %v750, %v749
      %v762 = vpack.c.bf16 %v751, %v751
      %v763 = vpack.c.bf16 %v753, %v752
      %v764 = vpack.c.bf16 %v754, %v754
      %v765 = vpack.c.bf16 %v756, %v755
      %v766 = vpack.c.bf16 %v757, %v757
      %v767 = vpack.c.bf16 %v759, %v758
      %v768 = vpack.c.bf16 %v760, %v760
      %v772 = vunpack.c.l.b16 %v283
      %v773 = vunpack.c.l.b16 %v284
      %v774 = vunpack.c.l.b16 %v285
      %v775 = vpack.c.b16 %v773, %v772
      %v776 = vpack.c.b16 %v774, %v774
      %v779 = vsel %vm627, %v761, 0
      %v782 = vsel %vm627, %v762, 0
      %vm784 = vcmask 1040384
      %v785 = vsel 0, 4294967295, 65535
      %v786 = vsel %vm784, %v785, 0
      %v788 = vand.u32 %v776, %v786
      %790 = vmatprep.subr.bf16.mxu0 0
      %791 = vmatpush1.bf16.msra.mxu0 %v775
      %792 = vmatprep.subr.bf16.mxu0 0
      %793 = vmatpush1.bf16.msra.mxu0 %v788
      %794 = vmatprep.subr.bf16.mxu0 0
      %795 = vmatpush1.bf16.msra.mxu0 0
      %796 = vmatprep.subr.bf16.mxu0 0
      %797 = vmatpush1.bf16.msra.mxu0 0
      %798 = vmatprep.subr.bf16.mxu0 0
      %799 = vmatpush1.bf16.msra.mxu0 0
      %800 = vmatprep.subr.bf16.mxu0 0
      %801 = vmatpush1.bf16.msra.mxu0 0
      %802 = vmatprep.subr.bf16.mxu0 0
      %803 = vmatpush1.bf16.msra.mxu0 0
      %804 = vmatprep.subr.bf16.mxu0 0
      %805 = vmatpush1.bf16.msra.mxu0 0
      %806 = vmatprep.subr.bf16.mxu0 0
      %807 = vmatpush1.bf16.msra.mxu0 0
      %808 = vmatprep.subr.bf16.mxu0 0
      %809 = vmatpush1.bf16.msra.mxu0 0
      %810 = vmatprep.subr.bf16.mxu0 0
      %811 = vmatpush1.bf16.msra.mxu0 0
      %812 = vmatprep.subr.bf16.mxu0 0
      %813 = vmatpush1.bf16.msra.mxu0 0
      %814 = vmatprep.subr.bf16.mxu0 0
      %815 = vmatpush1.bf16.msra.mxu0 0
      %816 = vmatprep.subr.bf16.mxu0 0
      %817 = vmatpush1.bf16.msra.mxu0 0
      %818 = vmatprep.subr.bf16.mxu0 0
      %819 = vmatpush1.bf16.msra.mxu0 0
      %820 = vmatprep.subr.bf16.mxu0 0
      %821 = vmatpush1.bf16.msra.mxu0 0
      %822 = vmatprep.mubr.bf16.mxu0 0
      %823 = vmatmul.mubr.bf16.gmra.mrb[0].mxu0 %v779
      %v824 = vpop.f32.mrb[0].mxu0
      %v825 = vadd.f32 0.0, %v824
      %v826 = vpop.f32.mrb[0].mxu0
      %v827 = vpop.f32.mrb[0].mxu0
      %v828 = vadd.f32 0.0, %v827
      %v829 = vpop.f32.mrb[0].mxu0
      %830 = vmatprep.mubr.bf16.mxu0 0
      %831 = vmatmul.mubr.bf16.gmra.mrb[0].mxu0 %v782
      %v832 = vpop.f32.mrb[0].mxu0
      %v833 = vadd.f32 0.0, %v832
      %v834 = vpop.f32.mrb[0].mxu0
      %v835 = vpop.f32.mrb[0].mxu0
      %v836 = vpop.f32.mrb[0].mxu0
      %837 = vdwg.mxu0
      %v841 = vunpack.c.l.b16 %v286
      %v842 = vunpack.c.l.b16 %v287
      %v843 = vunpack.c.l.b16 %v288
      %v844 = vpack.c.b16 %v842, %v841
      %v845 = vpack.c.b16 %v843, %v843
      %v848 = vsel %vm627, %v763, 0
      %v851 = vsel %vm627, %v764, 0
      %v854 = vand.u32 %v845, %v786
      %856 = vmatprep.subr.bf16.mxu0 0
      %857 = vmatpush1.bf16.msra.mxu0 %v844
      %858 = vmatprep.subr.bf16.mxu0 0
      %859 = vmatpush1.bf16.msra.mxu0 %v854
      %860 = vmatprep.subr.bf16.mxu0 0
      %861 = vmatpush1.bf16.msra.mxu0 0
      %862 = vmatprep.subr.bf16.mxu0 0
      %863 = vmatpush1.bf16.msra.mxu0 0
      %864 = vmatprep.subr.bf16.mxu0 0
      %865 = vmatpush1.bf16.msra.mxu0 0
      %866 = vmatprep.subr.bf16.mxu0 0
      %867 = vmatpush1.bf16.msra.mxu0 0
      %868 = vmatprep.subr.bf16.mxu0 0
      %869 = vmatpush1.bf16.msra.mxu0 0
      %870 = vmatprep.subr.bf16.mxu0 0
      %871 = vmatpush1.bf16.msra.mxu0 0
      %872 = vmatprep.subr.bf16.mxu0 0
      %873 = vmatpush1.bf16.msra.mxu0 0
      %874 = vmatprep.subr.bf16.mxu0 0
      %875 = vmatpush1.bf16.msra.mxu0 0
      %876 = vmatprep.subr.bf16.mxu0 0
      %877 = vmatpush1.bf16.msra.mxu0 0
      %878 = vmatprep.subr.bf16.mxu0 0
      %879 = vmatpush1.bf16.msra.mxu0 0
      %880 = vmatprep.subr.bf16.mxu0 0
      %881 = vmatpush1.bf16.msra.mxu0 0
      %882 = vmatprep.subr.bf16.mxu0 0
      %883 = vmatpush1.bf16.msra.mxu0 0
      %884 = vmatprep.subr.bf16.mxu0 0
      %885 = vmatpush1.bf16.msra.mxu0 0
      %886 = vmatprep.subr.bf16.mxu0 0
      %887 = vmatpush1.bf16.msra.mxu0 0
      %888 = vmatprep.mubr.bf16.mxu0 0
      %889 = vmatmul.mubr.bf16.gmra.mrb[0].mxu0 %v848
      %v890 = vpop.f32.mrb[0].mxu0
      %v891 = vadd.f32 0.0, %v890
      %v892 = vpop.f32.mrb[0].mxu0
      %v893 = vpop.f32.mrb[0].mxu0
      %v894 = vadd.f32 0.0, %v893
      %v895 = vpop.f32.mrb[0].mxu0
      %896 = vmatprep.mubr.bf16.mxu0 0
      %897 = vmatmul.mubr.bf16.gmra.mrb[0].mxu0 %v851
      %v898 = vpop.f32.mrb[0].mxu0
      %v899 = vadd.f32 0.0, %v898
      %v900 = vpop.f32.mrb[0].mxu0
      %v901 = vpop.f32.mrb[0].mxu0
      %v902 = vpop.f32.mrb[0].mxu0
      %903 = vdwg.mxu0
      %v907 = vunpack.c.l.b16 %v289
      %v908 = vunpack.c.l.b16 %v290
      %v909 = vunpack.c.l.b16 %v291
      %v910 = vpack.c.b16 %v908, %v907
      %v911 = vpack.c.b16 %v909, %v909
      %v914 = vsel %vm627, %v765, 0
      %v917 = vsel %vm627, %v766, 0
      %v920 = vand.u32 %v911, %v786
      %922 = vmatprep.subr.bf16.mxu0 0
      %923 = vmatpush1.bf16.msra.mxu0 %v910
      %924 = vmatprep.subr.bf16.mxu0 0
      %925 = vmatpush1.bf16.msra.mxu0 %v920
      %926 = vmatprep.subr.bf16.mxu0 0
      %927 = vmatpush1.bf16.msra.mxu0 0
      %928 = vmatprep.subr.bf16.mxu0 0
      %929 = vmatpush1.bf16.msra.mxu0 0
      %930 = vmatprep.subr.bf16.mxu0 0
      %931 = vmatpush1.bf16.msra.mxu0 0
      %932 = vmatprep.subr.bf16.mxu0 0
      %933 = vmatpush1.bf16.msra.mxu0 0
      %934 = vmatprep.subr.bf16.mxu0 0
      %935 = vmatpush1.bf16.msra.mxu0 0
      %936 = vmatprep.subr.bf16.mxu0 0
      %937 = vmatpush1.bf16.msra.mxu0 0
      %938 = vmatprep.subr.bf16.mxu0 0
      %939 = vmatpush1.bf16.msra.mxu0 0
      %940 = vmatprep.subr.bf16.mxu0 0
      %941 = vmatpush1.bf16.msra.mxu0 0
      %942 = vmatprep.subr.bf16.mxu0 0
      %943 = vmatpush1.bf16.msra.mxu0 0
      %944 = vmatprep.subr.bf16.mxu0 0
      %945 = vmatpush1.bf16.msra.mxu0 0
      %946 = vmatprep.subr.bf16.mxu0 0
      %947 = vmatpush1.bf16.msra.mxu0 0
      %948 = vmatprep.subr.bf16.mxu0 0
      %949 = vmatpush1.bf16.msra.mxu0 0
      %950 = vmatprep.subr.bf16.mxu0 0
      %951 = vmatpush1.bf16.msra.mxu0 0
      %952 = vmatprep.subr.bf16.mxu0 0
      %953 = vmatpush1.bf16.msra.mxu0 0
      %954 = vmatprep.mubr.bf16.mxu0 0
      %955 = vmatmul.mubr.bf16.gmra.mrb[0].mxu0 %v914
      %v956 = vpop.f32.mrb[0].mxu0
      %v957 = vadd.f32 0.0, %v956
      %v958 = vpop.f32.mrb[0].mxu0
      %v959 = vpop.f32.mrb[0].mxu0
      %v960 = vadd.f32 0.0, %v959
      %v961 = vpop.f32.mrb[0].mxu0
      %962 = vmatprep.mubr.bf16.mxu0 0
      %963 = vmatmul.mubr.bf16.gmra.mrb[0].mxu0 %v917
      %v964 = vpop.f32.mrb[0].mxu0
      %v965 = vadd.f32 0.0, %v964
      %v966 = vpop.f32.mrb[0].mxu0
      %v967 = vpop.f32.mrb[0].mxu0
      %v968 = vpop.f32.mrb[0].mxu0
      %969 = vdwg.mxu0
      %v973 = vunpack.c.l.b16 %v292
      %v974 = vunpack.c.l.b16 %v293
      %v975 = vunpack.c.l.b16 %v294
      %v976 = vpack.c.b16 %v974, %v973
      %v977 = vpack.c.b16 %v975, %v975
      %v980 = vsel %vm627, %v767, 0
      %v983 = vsel %vm627, %v768, 0
      %v986 = vand.u32 %v977, %v786
      %988 = vmatprep.subr.bf16.mxu0 0
      %989 = vmatpush1.bf16.msra.mxu0 %v976
      %990 = vmatprep.subr.bf16.mxu0 0
      %991 = vmatpush1.bf16.msra.mxu0 %v986
      %992 = vmatprep.subr.bf16.mxu0 0
      %993 = vmatpush1.bf16.msra.mxu0 0
      %994 = vmatprep.subr.bf16.mxu0 0
      %995 = vmatpush1.bf16.msra.mxu0 0
      %996 = vmatprep.subr.bf16.mxu0 0
      %997 = vmatpush1.bf16.msra.mxu0 0
      %998 = vmatprep.subr.bf16.mxu0 0
      %999 = vmatpush1.bf16.msra.mxu0 0
      %1000 = vmatprep.subr.bf16.mxu0 0
      %1001 = vmatpush1.bf16.msra.mxu0 0
      %1002 = vmatprep.subr.bf16.mxu0 0
      %1003 = vmatpush1.bf16.msra.mxu0 0
      %1004 = vmatprep.subr.bf16.mxu0 0
      %1005 = vmatpush1.bf16.msra.mxu0 0
      %1006 = vmatprep.subr.bf16.mxu0 0
      %1007 = vmatpush1.bf16.msra.mxu0 0
      %1008 = vmatprep.subr.bf16.mxu0 0
      %1009 = vmatpush1.bf16.msra.mxu0 0
      %1010 = vmatprep.subr.bf16.mxu0 0
      %1011 = vmatpush1.bf16.msra.mxu0 0
      %1012 = vmatprep.subr.bf16.mxu0 0
      %1013 = vmatpush1.bf16.msra.mxu0 0
      %1014 = vmatprep.subr.bf16.mxu0 0
      %1015 = vmatpush1.bf16.msra.mxu0 0
      %1016 = vmatprep.subr.bf16.mxu0 0
      %1017 = vmatpush1.bf16.msra.mxu0 0
      %1018 = vmatprep.subr.bf16.mxu0 0
      %1019 = vmatpush1.bf16.msra.mxu0 0
      %1020 = vmatprep.mubr.bf16.mxu0 0
      %1021 = vmatmul.mubr.bf16.gmra.mrb[0].mxu0 %v980
      %v1022 = vpop.f32.mrb[0].mxu0
      %v1023 = vadd.f32 0.0, %v1022
      %v1024 = vpop.f32.mrb[0].mxu0
      %v1025 = vpop.f32.mrb[0].mxu0
      %v1026 = vadd.f32 0.0, %v1025
      %v1027 = vpop.f32.mrb[0].mxu0
      %1028 = vmatprep.mubr.bf16.mxu0 0
      %1029 = vmatmul.mubr.bf16.gmra.mrb[0].mxu0 %v983
      %v1030 = vpop.f32.mrb[0].mxu0
      %v1031 = vadd.f32 0.0, %v1030
      %v1032 = vpop.f32.mrb[0].mxu0
      %v1033 = vpop.f32.mrb[0].mxu0
      %v1034 = vpop.f32.mrb[0].mxu0
      %1035 = vdwg.mxu0
      %v1036 = vpack.c.bf16 %v828, %v825
      %v1037 = vpack.c.bf16 %v833, %v833
      %v1038 = vpack.c.bf16 %v894, %v891
      %v1039 = vpack.c.bf16 %v899, %v899
      %v1040 = vpack.c.bf16 %v960, %v957
      %v1041 = vpack.c.bf16 %v965, %v965
      %v1042 = vpack.c.bf16 %v1026, %v1023
      %v1043 = vpack.c.bf16 %v1031, %v1031
      %v1052 = vunpack.c.l.b16 %v1036
      %v1053 = vunpack.c.h.b16 %v1036
      %v1054 = vunpack.c.l.b16 %v1037
      %v1055 = vunpack.c.l.b16 %v1038
      %v1056 = vunpack.c.h.b16 %v1038
      %v1057 = vunpack.c.l.b16 %v1039
      %v1058 = vunpack.c.l.b16 %v1040
      %v1059 = vunpack.c.h.b16 %v1040
      %v1060 = vunpack.c.l.b16 %v1041
      %v1061 = vunpack.c.l.b16 %v1042
      %v1062 = vunpack.c.h.b16 %v1042
      %v1063 = vunpack.c.l.b16 %v1043
      %v1064 = vpack.c.b16 %v1052, %v1052
      %v1065 = vpack.c.b16 %v1053, %v1053
      %v1066 = vpack.c.b16 %v1054, %v1054
      %v1067 = vpack.c.b16 %v1055, %v1055
      %v1068 = vpack.c.b16 %v1056, %v1056
      %v1069 = vpack.c.b16 %v1057, %v1057
      %v1070 = vpack.c.b16 %v1058, %v1058
      %v1071 = vpack.c.b16 %v1059, %v1059
      %v1072 = vpack.c.b16 %v1060, %v1060
      %v1073 = vpack.c.b16 %v1061, %v1061
      %v1074 = vpack.c.b16 %v1062, %v1062
      %v1075 = vpack.c.b16 %v1063, %v1063
      %vm1088 = vcmask 60416
      %1089 = vst.msk [vmem:[%s257] sm:$0xf] %vm1088, %v1064
      %1090 = vst.msk [vmem:[%s257 + $0x4] sm:$0xf] %vm1088, %v1065
      %vm1091 = vcmask 57344
      %vm1092 = vsmask.f32 256
      %vm1093 = vmand %vm1091, %vm1092
      %v1094 = vld [vmem:[%s257 + $0x8] sm:$0x1]
      %v1095 = vsel %vm1093, %v1066, %v1094
      %1096 = vst [vmem:[%s257 + $0x8] sm:$0x1] %v1095
      %1097 = vst.msk [vmem:[%s257 + $0xc] sm:$0xf] %vm1088, %v1067
      %1098 = vst.msk [vmem:[%s257 + $0x10] sm:$0xf] %vm1088, %v1068
      %v1099 = vld [vmem:[%s257 + $0x14] sm:$0x1]
      %v1100 = vsel %vm1093, %v1069, %v1099
      %1101 = vst [vmem:[%s257 + $0x14] sm:$0x1] %v1100
      %1102 = vst.msk [vmem:[%s257 + $0x18] sm:$0xf] %vm1088, %v1070
      %1103 = vst.msk [vmem:[%s257 + $0x1c] sm:$0xf] %vm1088, %v1071
      %v1104 = vld [vmem:[%s257 + $0x20] sm:$0x1]
      %v1105 = vsel %vm1093, %v1072, %v1104
      %1106 = vst [vmem:[%s257 + $0x20] sm:$0x1] %v1105
      %1107 = vst.msk [vmem:[%s257 + $0x24] sm:$0xf] %vm1088, %v1073
      %1108 = vst.msk [vmem:[%s257 + $0x28] sm:$0xf] %vm1088, %v1074
      %v1109 = vld [vmem:[%s257 + $0x2c] sm:$0x1]
      %v1110 = vsel %vm1093, %v1075, %v1109
      %1111 = vst [vmem:[%s257 + $0x2c] sm:$0x1] %v1110
      %p1112 = scmp.lt.s32.totalorder %s15, 1
      %s1113 = scalar_select %p1112, %s15, 1
      %s1114 = smul.addr %s1113, 12
      %s1115 = smul.addr %s1114, 4
      %s1116 = scalar_lea.vmem %s4, %s1115
      // Predicated region
      $region37: #{hoi_residual_attention_block.16} parent=35 // pred_check
        %p1117 = pneg %p137
      $region38: #{hoi_residual_attention_block.16} parent=35 // pred_check_branch
        %1119 = sbr.rel (%p1117) target = $region40
      $region39: #{hoi_residual_attention_block.16} parent=35 // pred_region
        _
      $region40: #{hoi_residual_attention_block.16} parent=35 // pred_fallthru
        _
    $region36: #{hoi_residual_attention_block.16} parent=5 // pred_fallthru
      _
    %p1120 = scmp.le.s32.totalorder 2, %s10
    // Predicated region
    $region41: #{hoi_residual_attention_block.16} parent=5 // pred_check
      %p1121 = pneg %p1120
    $region42: #{hoi_residual_attention_block.16} parent=5 // pred_check_branch
      %1123 = sbr.rel (%p1121) target = $region44
    $region43: #{hoi_residual_attention_block.16} parent=5 // pred_region
      %s1124 = ssub.s32 %s10, 2
      // Predicated region
      $region45: #{hoi_residual_attention_block.16} parent=43 // pred_check
        %p1125 = pneg %p143
      $region46: #{hoi_residual_attention_block.16} parent=43 // pred_check_branch
        %1127 = sbr.rel (%p1125) target = $region48
      $region47: #{hoi_residual_attention_block.16} parent=43 // pred_region
        %p1128 = scmp.lt.s32.totalorder %s16, 1
        %s1129 = scalar_select %p1128, %s16, 1
        %s1130 = smul.addr %s1129, 12
        %s1131 = smul.addr %s1130, 4
        %s1132 = scalar_lea.vmem %s4, %s1131
      $region48: #{hoi_residual_attention_block.16} parent=43 // pred_fallthru
        _
    $region44: #{hoi_residual_attention_block.16} parent=5 // pred_fallthru
      _
  $region6: #{hoi_residual_attention_block.16} parent=0 // loop_footer
    %s14 = sadd.s32 1, %s10
  $region7: #{hoi_residual_attention_block.16} parent=0 // loop_footer_branch
    %9 = sbr.rel target = $region3
  $region8: #{hoi_residual_attention_block.16} parent=0 // loop_exit
    _

// kernel: hoi_residual_attention_block.18
$region0: #{hoi_residual_attention_block.18}
  #allocation0 [shape = 'u32[]', space=smem, size = 0x4, offset = 0x4, fixed_abs, tag = 'smem constant byte address 0x4 - core index']
  #allocation1 [shape = 'u32[144,128]{1,0:T(1,128)}', space=vmem, size = 0x12000, scoped, tag = 'internal scratch']
  %s0 = inlined_call_operand.vmem [shape: f32[48,32], index: 0, kind: input, shape index: {}]
  %s1 = inlined_call_operand.vmem [shape: f32[1,32], index: 1, kind: input, shape index: {}]
  %s2 = inlined_call_operand.vmem [shape: f32[1,32], index: 2, kind: input, shape index: {}]
  %s3 = inlined_call_operand.vmem [shape: bf16[32,128], index: 3, kind: input, shape index: {}]
  %s4 = inlined_call_operand.vmem [shape: f32[1,128], index: 4, kind: input, shape index: {}]
  %s5 = inlined_call_operand.vmem [shape: bf16[128,32], index: 5, kind: input, shape index: {}]
  %s6 = inlined_call_operand.vmem [shape: f32[1,32], index: 6, kind: input, shape index: {}]
  %s7 = inlined_call_operand.vmem [shape: f32[48,32], index: 7, kind: output, shape index: {}]
  %s8 = sld [smem:[#allocation0]]
  $region38: #{hoi_residual_attention_block.18} parent=0
    _
  %s10 = ssub.s32 1, %s8
  %s11 = scalar_select 0, %s10, %s8
  // Predicated region
  $region2: #{hoi_residual_attention_block.18} parent=0 // pred_check
    _
  $region3: #{hoi_residual_attention_block.18} parent=0 // pred_check_branch
    %13 = sbr.rel (0) target = $region5
  $region4: #{hoi_residual_attention_block.18} parent=0 // pred_region
    _
  $region5: #{hoi_residual_attention_block.18} parent=0 // pred_fallthru
    _
  // Predicated region
  $region6: #{hoi_residual_attention_block.18} parent=0 // pred_check
    _
  $region7: #{hoi_residual_attention_block.18} parent=0 // pred_check_branch
    %15 = sbr.rel (0) target = $region9
  $region8: #{hoi_residual_attention_block.18} parent=0 // pred_region
    _
  $region9: #{hoi_residual_attention_block.18} parent=0 // pred_fallthru
    _
  // Predicated region
  $region10: #{hoi_residual_attention_block.18} parent=0 // pred_check
    _
  $region11: #{hoi_residual_attention_block.18} parent=0 // pred_check_branch
    %17 = sbr.rel (0) target = $region13
  $region12: #{hoi_residual_attention_block.18} parent=0 // pred_region
    _
  $region13: #{hoi_residual_attention_block.18} parent=0 // pred_fallthru
    _
  // Predicated region
  $region14: #{hoi_residual_attention_block.18} parent=0 // pred_check
    _
  $region15: #{hoi_residual_attention_block.18} parent=0 // pred_check_branch
    %19 = sbr.rel (0) target = $region17
  $region16: #{hoi_residual_attention_block.18} parent=0 // pred_region
    _
  $region17: #{hoi_residual_attention_block.18} parent=0 // pred_fallthru
    _
  // Predicated region
  $region18: #{hoi_residual_attention_block.18} parent=0 // pred_check
    _
  $region19: #{hoi_residual_attention_block.18} parent=0 // pred_check_branch
    %21 = sbr.rel (0) target = $region21
  $region20: #{hoi_residual_attention_block.18} parent=0 // pred_region
    _
  $region21: #{hoi_residual_attention_block.18} parent=0 // pred_fallthru
    _
  // Predicated region
  $region22: #{hoi_residual_attention_block.18} parent=0 // pred_check
    _
  $region23: #{hoi_residual_attention_block.18} parent=0 // pred_check_branch
    %23 = sbr.rel (0) target = $region25
  $region24: #{hoi_residual_attention_block.18} parent=0 // pred_region
    _
  $region25: #{hoi_residual_attention_block.18} parent=0 // pred_fallthru
    _
  // Predicated region
  $region26: #{hoi_residual_attention_block.18} parent=0 // pred_check
    _
  $region27: #{hoi_residual_attention_block.18} parent=0 // pred_check_branch
    %25 = sbr.rel (0) target = $region29
  $region28: #{hoi_residual_attention_block.18} parent=0 // pred_region
    _
  $region29: #{hoi_residual_attention_block.18} parent=0 // pred_fallthru
    _
  %v27 = vld [vmem:[%s0] sm:$0xff]
  %v28 = vld [vmem:[%s0 + $0x8] sm:$0xff]
  %v29 = vld [vmem:[%s0 + $0x10] sm:$0xff]
  %v30 = vld [vmem:[%s0 + $0x18] sm:$0xff]
  %v31 = vld [vmem:[%s0 + $0x20] sm:$0xff]
  %v32 = vld [vmem:[%s0 + $0x28] sm:$0xff]
  %vm33 = vcmask 261120
  %v34 = vsel %vm33, %v27, 0.0
  %35 = vadd.xlane.f32.xlu0 %v34
  %v36 = vpop.xlane.xlu0 %35
  %v37 = vsel %vm33, %v28, 0.0
  %38 = vadd.xlane.f32.xlu0 %v37
  %v39 = vpop.xlane.xlu0 %38
  %v40 = vsel %vm33, %v29, 0.0
  %41 = vadd.xlane.f32.xlu0 %v40
  %v42 = vpop.xlane.xlu0 %41
  %v43 = vsel %vm33, %v30, 0.0
  %44 = vadd.xlane.f32.xlu0 %v43
  %v45 = vpop.xlane.xlu0 %44
  %v46 = vsel %vm33, %v31, 0.0
  %47 = vadd.xlane.f32.xlu0 %v46
  %v48 = vpop.xlane.xlu0 %47
  %v49 = vsel %vm33, %v32, 0.0
  %50 = vadd.xlane.f32.xlu0 %v49
  %v51 = vpop.xlane.xlu0 %50
  %v52 = vrcp.pop 32.0
  %v53 = vmul.f32 %v36, %v52
  %v54 = vmul.f32 %v39, %v52
  %v55 = vmul.f32 %v42, %v52
  %v56 = vmul.f32 %v45, %v52
  %v57 = vmul.f32 %v48, %v52
  %v58 = vmul.f32 %v51, %v52
  %v59 = vsub.f32 %v27, %v53
  %v60 = vsub.f32 %v28, %v54
  %v61 = vsub.f32 %v29, %v55
  %v62 = vsub.f32 %v30, %v56
  %v63 = vsub.f32 %v31, %v57
  %v64 = vsub.f32 %v32, %v58
  %v65 = vmul.f32 %v59, %v59
  %v66 = vmul.f32 %v60, %v60
  %v67 = vmul.f32 %v61, %v61
  %v68 = vmul.f32 %v62, %v62
  %v69 = vmul.f32 %v63, %v63
  %v70 = vmul.f32 %v64, %v64
  %v71 = vsel %vm33, %v65, 0.0
  %72 = vadd.xlane.f32.xlu0 %v71
  %v73 = vpop.xlane.xlu0 %72
  %v74 = vsel %vm33, %v66, 0.0
  %75 = vadd.xlane.f32.xlu0 %v74
  %v76 = vpop.xlane.xlu0 %75
  %v77 = vsel %vm33, %v67, 0.0
  %78 = vadd.xlane.f32.xlu0 %v77
  %v79 = vpop.xlane.xlu0 %78
  %v80 = vsel %vm33, %v68, 0.0
  %81 = vadd.xlane.f32.xlu0 %v80
  %v82 = vpop.xlane.xlu0 %81
  %v83 = vsel %vm33, %v69, 0.0
  %84 = vadd.xlane.f32.xlu0 %v83
  %v85 = vpop.xlane.xlu0 %84
  %v86 = vsel %vm33, %v70, 0.0
  %87 = vadd.xlane.f32.xlu0 %v86
  %v88 = vpop.xlane.xlu0 %87
  %v89 = vmul.f32 %v73, %v52
  %v90 = vmul.f32 %v76, %v52
  %v91 = vmul.f32 %v79, %v52
  %v92 = vmul.f32 %v82, %v52
  %v93 = vmul.f32 %v85, %v52
  %v94 = vmul.f32 %v88, %v52
  %v95 = vadd.f32 %v89, 1e-05
  %v96 = vadd.f32 %v90, 1e-05
  %v97 = vadd.f32 %v91, 1e-05
  %v98 = vadd.f32 %v92, 1e-05
  %v99 = vadd.f32 %v93, 1e-05
  %v100 = vadd.f32 %v94, 1e-05
  %v101 = vrsqrt.pop %v95
  %v102 = vrsqrt.pop %v96
  %v103 = vrsqrt.pop %v97
  %v104 = vrsqrt.pop %v98
  %v105 = vrsqrt.pop %v99
  %v106 = vrsqrt.pop %v100
  %v107 = vmul.f32 %v59, %v101
  %v108 = vmul.f32 %v60, %v102
  %v109 = vmul.f32 %v61, %v103
  %v110 = vmul.f32 %v62, %v104
  %v111 = vmul.f32 %v63, %v105
  %v112 = vmul.f32 %v64, %v106
  %v113 = vld [vmem:[%s1] sm:$0x1]
  %v115 = vlaneseq
  %v116 = vshrl.u32 %v115, 7
  %v117 = vsub.s32 0, %v116
  %v118 = vrot.slane %v113, %v117
  %v120 = vmul.f32 %v107, %v118
  %v121 = vmul.f32 %v108, %v118
  %v122 = vmul.f32 %v109, %v118
  %v123 = vmul.f32 %v110, %v118
  %v124 = vmul.f32 %v111, %v118
  %v125 = vmul.f32 %v112, %v118
  %v126 = vld [vmem:[%s2] sm:$0x1]
  %v128 = vlaneseq
  %v129 = vshrl.u32 %v128, 7
  %v130 = vsub.s32 0, %v129
  %v131 = vrot.slane %v126, %v130
  %v133 = vadd.f32 %v120, %v131
  %v134 = vadd.f32 %v121, %v131
  %v135 = vadd.f32 %v122, %v131
  %v136 = vadd.f32 %v123, %v131
  %v137 = vadd.f32 %v124, %v131
  %v138 = vadd.f32 %v125, %v131
  %v139 = vpack.c.bf16 %v134, %v133
  %v140 = vpack.c.bf16 %v136, %v135
  %v141 = vpack.c.bf16 %v138, %v137
  %v142 = vld [vmem:[%s3] sm:$0xf]
  %v143 = vld [vmem:[%s3 + $0x4] sm:$0xf]
  %v144 = vld [vmem:[%s3 + $0x8] sm:$0xf]
  %v145 = vld [vmem:[%s3 + $0xc] sm:$0xf]
  %v146 = vld [vmem:[%s4] sm:$0x1]
  %v148 = vlaneseq
  %v149 = vshrl.u32 %v148, 7
  %v150 = vsub.s32 0, %v149
  %v151 = vrot.slane %v146, %v150
  %v157 = vunpack.c.l.b16 %v142
  %v158 = vunpack.c.l.b16 %v143
  %v159 = vunpack.c.l.b16 %v144
  %v160 = vunpack.c.l.b16 %v145
  %v161 = vpack.c.b16 %v158, %v157
  %v162 = vpack.c.b16 %v160, %v159
  %v166 = vsel %vm33, %v139, 0
  %v169 = vsel %vm33, %v140, 0
  %v172 = vsel %vm33, %v141, 0
  %174 = vmatprep.subr.bf16.mxu0 0
  %175 = vmatpush1.bf16.msra.mxu0 %v161
  %176 = vmatprep.subr.bf16.mxu0 0
  %177 = vmatpush1.bf16.msra.mxu0 %v162
  %178 = vmatprep.subr.bf16.mxu0 0
  %179 = vmatpush1.bf16.msra.mxu0 0
  %180 = vmatprep.subr.bf16.mxu0 0
  %181 = vmatpush1.bf16.msra.mxu0 0
  %182 = vmatprep.subr.bf16.mxu0 0
  %183 = vmatpush1.bf16.msra.mxu0 0
  %184 = vmatprep.subr.bf16.mxu0 0
  %185 = vmatpush1.bf16.msra.mxu0 0
  %186 = vmatprep.subr.bf16.mxu0 0
  %187 = vmatpush1.bf16.msra.mxu0 0
  %188 = vmatprep.subr.bf16.mxu0 0
  %189 = vmatpush1.bf16.msra.mxu0 0
  %190 = vmatprep.subr.bf16.mxu0 0
  %191 = vmatpush1.bf16.msra.mxu0 0
  %192 = vmatprep.subr.bf16.mxu0 0
  %193 = vmatpush1.bf16.msra.mxu0 0
  %194 = vmatprep.subr.bf16.mxu0 0
  %195 = vmatpush1.bf16.msra.mxu0 0
  %196 = vmatprep.subr.bf16.mxu0 0
  %197 = vmatpush1.bf16.msra.mxu0 0
  %198 = vmatprep.subr.bf16.mxu0 0
  %199 = vmatpush1.bf16.msra.mxu0 0
  %200 = vmatprep.subr.bf16.mxu0 0
  %201 = vmatpush1.bf16.msra.mxu0 0
  %202 = vmatprep.subr.bf16.mxu0 0
  %203 = vmatpush1.bf16.msra.mxu0 0
  %204 = vmatprep.subr.bf16.mxu0 0
  %205 = vmatpush1.bf16.msra.mxu0 0
  %206 = vmatprep.mubr.bf16.mxu0 0
  %207 = vmatmul.mubr.bf16.gmra.mrb[0].mxu0 %v166
  %v208 = vpop.f32.mrb[0].mxu0
  %v209 = vadd.f32 %v151, %v208
  %v210 = vpop.f32.mrb[0].mxu0
  %v211 = vpop.f32.mrb[0].mxu0
  %v212 = vadd.f32 %v151, %v211
  %v213 = vpop.f32.mrb[0].mxu0
  %214 = vmatprep.mubr.bf16.mxu0 0
  %215 = vmatmul.mubr.bf16.gmra.mrb[0].mxu0 %v169
  %v216 = vpop.f32.mrb[0].mxu0
  %v217 = vadd.f32 %v151, %v216
  %v218 = vpop.f32.mrb[0].mxu0
  %v219 = vpop.f32.mrb[0].mxu0
  %v220 = vadd.f32 %v151, %v219
  %v221 = vpop.f32.mrb[0].mxu0
  %222 = vmatprep.mubr.bf16.mxu0 0
  %223 = vmatmul.mubr.bf16.gmra.mrb[0].mxu0 %v172
  %v224 = vpop.f32.mrb[0].mxu0
  %v225 = vadd.f32 %v151, %v224
  %v226 = vpop.f32.mrb[0].mxu0
  %v227 = vpop.f32.mrb[0].mxu0
  %v228 = vadd.f32 %v151, %v227
  %v229 = vpop.f32.mrb[0].mxu0
  %230 = vdwg.mxu0
  %v231 = vmul.f32 %v209, 1.702
  %v232 = vmul.f32 %v212, 1.702
  %v233 = vmul.f32 %v217, 1.702
  %v234 = vmul.f32 %v220, 1.702
  %v235 = vmul.f32 %v225, 1.702
  %v236 = vmul.f32 %v228, 1.702
  %v237 = vxor.u32 %v231, 2147483648
  %v238 = vxor.u32 %v232, 2147483648
  %v239 = vxor.u32 %v233, 2147483648
  %v240 = vxor.u32 %v234, 2147483648
  %v241 = vxor.u32 %v235, 2147483648
  %v242 = vxor.u32 %v236, 2147483648
  %v243 = vmul.f32 %v237, 1.442695
  %v244 = vpow.pop %v243
  %v245 = vmul.f32 %v238, 1.442695
  %v246 = vpow.pop %v245
  %v247 = vmul.f32 %v239, 1.442695
  %v248 = vpow.pop %v247
  %v249 = vmul.f32 %v240, 1.442695
  %v250 = vpow.pop %v249
  %v251 = vmul.f32 %v241, 1.442695
  %v252 = vpow.pop %v251
  %v253 = vmul.f32 %v242, 1.442695
  %v254 = vpow.pop %v253
  %v255 = vadd.f32 %v244, 1.0
  %v256 = vadd.f32 %v246, 1.0
  %v257 = vadd.f32 %v248, 1.0
  %v258 = vadd.f32 %v250, 1.0
  %v259 = vadd.f32 %v252, 1.0
  %v260 = vadd.f32 %v254, 1.0
  %v261 = vrcp.pop %v255
  %v262 = vmul.f32 1.0, %v261
  %v263 = vrcp.pop %v256
  %v264 = vmul.f32 1.0, %v263
  %v265 = vrcp.pop %v257
  %v266 = vmul.f32 1.0, %v265
  %v267 = vrcp.pop %v258
  %v268 = vmul.f32 1.0, %v267
  %v269 = vrcp.pop %v259
  %v270 = vmul.f32 1.0, %v269
  %v271 = vrcp.pop %v260
  %v272 = vmul.f32 1.0, %v271
  %v273 = vmul.f32 %v209, %v262
  %v274 = vmul.f32 %v212, %v264
  %v275 = vmul.f32 %v217, %v266
  %v276 = vmul.f32 %v220, %v268
  %v277 = vmul.f32 %v225, %v270
  %v278 = vmul.f32 %v228, %v272
  %v279 = vpack.c.bf16 %v274, %v273
  %v280 = vpack.c.bf16 %v276, %v275
  %v281 = vpack.c.bf16 %v278, %v277
  %v282 = vld [vmem:[%s5] sm:$0xf]
  %v283 = vld [vmem:[%s5 + $0x4] sm:$0xf]
  %v284 = vld [vmem:[%s5 + $0x8] sm:$0xf]
  %v285 = vld [vmem:[%s5 + $0xc] sm:$0xf]
  %v286 = vld [vmem:[%s5 + $0x10] sm:$0xf]
  %v287 = vld [vmem:[%s5 + $0x14] sm:$0xf]
  %v288 = vld [vmem:[%s5 + $0x18] sm:$0xf]
  %v289 = vld [vmem:[%s5 + $0x1c] sm:$0xf]
  %v290 = vld [vmem:[%s5 + $0x20] sm:$0xf]
  %v291 = vld [vmem:[%s5 + $0x24] sm:$0xf]
  %v292 = vld [vmem:[%s5 + $0x28] sm:$0xf]
  %v293 = vld [vmem:[%s5 + $0x2c] sm:$0xf]
  %v294 = vld [vmem:[%s5 + $0x30] sm:$0xf]
  %v295 = vld [vmem:[%s5 + $0x34] sm:$0xf]
  %v296 = vld [vmem:[%s5 + $0x38] sm:$0xf]
  %v297 = vld [vmem:[%s5 + $0x3c] sm:$0xf]
  %v298 = vld [vmem:[%s6] sm:$0x1]
  %v300 = vlaneseq
  %v301 = vshrl.u32 %v300, 7
  %v302 = vsub.s32 0, %v301
  %v303 = vrot.slane %v298, %v302
  %v321 = vunpack.c.l.b16 %v282
  %v322 = vunpack.c.l.b16 %v283
  %v323 = vunpack.c.l.b16 %v284
  %v324 = vunpack.c.l.b16 %v285
  %v325 = vunpack.c.l.b16 %v286
  %v326 = vunpack.c.l.b16 %v287
  %v327 = vunpack.c.l.b16 %v288
  %v328 = vunpack.c.l.b16 %v289
  %v329 = vunpack.c.l.b16 %v290
  %v330 = vunpack.c.l.b16 %v291
  %v331 = vunpack.c.l.b16 %v292
  %v332 = vunpack.c.l.b16 %v293
  %v333 = vunpack.c.l.b16 %v294
  %v334 = vunpack.c.l.b16 %v295
  %v335 = vunpack.c.l.b16 %v296
  %v336 = vunpack.c.l.b16 %v297
  %v337 = vpack.c.b16 %v322, %v321
  %v338 = vpack.c.b16 %v324, %v323
  %v339 = vpack.c.b16 %v326, %v325
  %v340 = vpack.c.b16 %v328, %v327
  %v341 = vpack.c.b16 %v330, %v329
  %v342 = vpack.c.b16 %v332, %v331
  %v343 = vpack.c.b16 %v334, %v333
  %v344 = vpack.c.b16 %v336, %v335
  %353 = vmatprep.subr.bf16.mxu0 0
  %354 = vmatpush1.bf16.msra.mxu0 %v337
  %355 = vmatprep.subr.bf16.mxu0 0
  %356 = vmatpush1.bf16.msra.mxu0 %v338
  %357 = vmatprep.subr.bf16.mxu0 0
  %358 = vmatpush1.bf16.msra.mxu0 %v339
  %359 = vmatprep.subr.bf16.mxu0 0
  %360 = vmatpush1.bf16.msra.mxu0 %v340
  %361 = vmatprep.subr.bf16.mxu0 0
  %362 = vmatpush1.bf16.msra.mxu0 %v341
  %363 = vmatprep.subr.bf16.mxu0 0
  %364 = vmatpush1.bf16.msra.mxu0 %v342
  %365 = vmatprep.subr.bf16.mxu0 0
  %366 = vmatpush1.bf16.msra.mxu0 %v343
  %367 = vmatprep.subr.bf16.mxu0 0
  %368 = vmatpush1.bf16.msra.mxu0 %v344
  %369 = vmatprep.subr.bf16.mxu0 0
  %370 = vmatpush1.bf16.msra.mxu0 0
  %371 = vmatprep.subr.bf16.mxu0 0
  %372 = vmatpush1.bf16.msra.mxu0 0
  %373 = vmatprep.subr.bf16.mxu0 0
  %374 = vmatpush1.bf16.msra.mxu0 0
  %375 = vmatprep.subr.bf16.mxu0 0
  %376 = vmatpush1.bf16.msra.mxu0 0
  %377 = vmatprep.subr.bf16.mxu0 0
  %378 = vmatpush1.bf16.msra.mxu0 0
  %379 = vmatprep.subr.bf16.mxu0 0
  %380 = vmatpush1.bf16.msra.mxu0 0
  %381 = vmatprep.subr.bf16.mxu0 0
  %382 = vmatpush1.bf16.msra.mxu0 0
  %383 = vmatprep.subr.bf16.mxu0 0
  %384 = vmatpush1.bf16.msra.mxu0 0
  %385 = vmatprep.mubr.bf16.mxu0 0
  %386 = vmatmul.mubr.bf16.gmra.mrb[0].mxu0 %v279
  %v387 = vpop.f32.mrb[0].mxu0
  %v388 = vadd.f32 %v303, %v387
  %v389 = vpop.f32.mrb[0].mxu0
  %v390 = vpop.f32.mrb[0].mxu0
  %v391 = vadd.f32 %v303, %v390
  %v392 = vpop.f32.mrb[0].mxu0
  %393 = vmatprep.mubr.bf16.mxu0 0
  %394 = vmatmul.mubr.bf16.gmra.mrb[0].mxu0 %v280
  %v395 = vpop.f32.mrb[0].mxu0
  %v396 = vadd.f32 %v303, %v395
  %v397 = vpop.f32.mrb[0].mxu0
  %v398 = vpop.f32.mrb[0].mxu0
  %v399 = vadd.f32 %v303, %v398
  %v400 = vpop.f32.mrb[0].mxu0
  %401 = vmatprep.mubr.bf16.mxu0 0
  %402 = vmatmul.mubr.bf16.gmra.mrb[0].mxu0 %v281
  %v403 = vpop.f32.mrb[0].mxu0
  %v404 = vadd.f32 %v303, %v403
  %v405 = vpop.f32.mrb[0].mxu0
  %v406 = vpop.f32.mrb[0].mxu0
  %v407 = vadd.f32 %v303, %v406
  %v408 = vpop.f32.mrb[0].mxu0
  %409 = vdwg.mxu0
  %v410 = vadd.f32 %v27, %v388
  %v411 = vadd.f32 %v28, %v391
  %v412 = vadd.f32 %v29, %v396
  %v413 = vadd.f32 %v30, %v399
  %v414 = vadd.f32 %v31, %v404
  %v415 = vadd.f32 %v32, %v407
  %416 = vst.msk [vmem:[%s7] sm:$0xff] %vm33, %v410
  %417 = vst.msk [vmem:[%s7 + $0x8] sm:$0xff] %vm33, %v411
  %418 = vst.msk [vmem:[%s7 + $0x10] sm:$0xff] %vm33, %v412
  %419 = vst.msk [vmem:[%s7 + $0x18] sm:$0xff] %vm33, %v413
  %420 = vst.msk [vmem:[%s7 + $0x20] sm:$0xff] %vm33, %v414
  %421 = vst.msk [vmem:[%s7 + $0x28] sm:$0xff] %vm33, %v415
  // Predicated region
  $region30: #{hoi_residual_attention_block.18} parent=0 // pred_check
    _
  $region31: #{hoi_residual_attention_block.18} parent=0 // pred_check_branch
    %423 = sbr.rel (0) target = $region33
  $region32: #{hoi_residual_attention_block.18} parent=0 // pred_region
    _
  $region33: #{hoi_residual_attention_block.18} parent=0 // pred_fallthru
    _
  // Predicated region
  $region34: #{hoi_residual_attention_block.18} parent=0 // pred_check
    _
  $region35: #{hoi_residual_attention_block.18} parent=0 // pred_check_branch
    %425 = sbr.rel (0) target = $region37
  $region36: #{hoi_residual_attention_block.18} parent=0 // pred_region
    _
  $region37: #{hoi_residual_attention_block.18} parent=0 // pred_fallthru
    _

// kernel: hoi_residual_attention_block.11
$region0: #{hoi_residual_attention_block.11}
  #allocation0 [shape = 'u32[]', space=smem, size = 0x4, offset = 0x4, fixed_abs, tag = 'smem constant byte address 0x4 - core index']
  #allocation1 [shape = 'u32[144,128]{1,0:T(1,128)}', space=vmem, size = 0x12000, scoped, tag = 'internal scratch']
  %s0 = inlined_call_operand.vmem [shape: f32[16,32], index: 0, kind: input, shape index: {}]
  %s1 = inlined_call_operand.vmem [shape: f32[1,32], index: 1, kind: input, shape index: {}]
  %s2 = inlined_call_operand.vmem [shape: f32[1,32], index: 2, kind: input, shape index: {}]
  %s3 = inlined_call_operand.vmem [shape: bf16[32,32], index: 3, kind: input, shape index: {}]
  %s4 = inlined_call_operand.vmem [shape: f32[1,32], index: 4, kind: input, shape index: {}]
  %s5 = inlined_call_operand.vmem [shape: bf16[16,32], index: 5, kind: output, shape index: {}]
  %s6 = sld [smem:[#allocation0]]
  $region30: #{hoi_residual_attention_block.11} parent=0
    _
  %s8 = ssub.s32 1, %s6
  %s9 = scalar_select 0, %s8, %s6
  // Predicated region
  $region2: #{hoi_residual_attention_block.11} parent=0 // pred_check
    _
  $region3: #{hoi_residual_attention_block.11} parent=0 // pred_check_branch
    %11 = sbr.rel (0) target = $region5
  $region4: #{hoi_residual_attention_block.11} parent=0 // pred_region
    _
  $region5: #{hoi_residual_attention_block.11} parent=0 // pred_fallthru
    _
  // Predicated region
  $region6: #{hoi_residual_attention_block.11} parent=0 // pred_check
    _
  $region7: #{hoi_residual_attention_block.11} parent=0 // pred_check_branch
    %13 = sbr.rel (0) target = $region9
  $region8: #{hoi_residual_attention_block.11} parent=0 // pred_region
    _
  $region9: #{hoi_residual_attention_block.11} parent=0 // pred_fallthru
    _
  // Predicated region
  $region10: #{hoi_residual_attention_block.11} parent=0 // pred_check
    _
  $region11: #{hoi_residual_attention_block.11} parent=0 // pred_check_branch
    %15 = sbr.rel (0) target = $region13
  $region12: #{hoi_residual_attention_block.11} parent=0 // pred_region
    _
  $region13: #{hoi_residual_attention_block.11} parent=0 // pred_fallthru
    _
  // Predicated region
  $region14: #{hoi_residual_attention_block.11} parent=0 // pred_check
    _
  $region15: #{hoi_residual_attention_block.11} parent=0 // pred_check_branch
    %17 = sbr.rel (0) target = $region17
  $region16: #{hoi_residual_attention_block.11} parent=0 // pred_region
    _
  $region17: #{hoi_residual_attention_block.11} parent=0 // pred_fallthru
    _
  // Predicated region
  $region18: #{hoi_residual_attention_block.11} parent=0 // pred_check
    _
  $region19: #{hoi_residual_attention_block.11} parent=0 // pred_check_branch
    %19 = sbr.rel (0) target = $region21
  $region20: #{hoi_residual_attention_block.11} parent=0 // pred_region
    _
  $region21: #{hoi_residual_attention_block.11} parent=0 // pred_fallthru
    _
  %v21 = vld [vmem:[%s0] sm:$0xff]
  %v22 = vld [vmem:[%s0 + $0x8] sm:$0xff]
  %vm23 = vcmask 261120
  %v24 = vsel %vm23, %v21, 0.0
  %25 = vadd.xlane.f32.xlu0 %v24
  %v26 = vpop.xlane.xlu0 %25
  %v27 = vsel %vm23, %v22, 0.0
  %28 = vadd.xlane.f32.xlu0 %v27
  %v29 = vpop.xlane.xlu0 %28
  %v30 = vrcp.pop 32.0
  %v31 = vmul.f32 %v26, %v30
  %v32 = vmul.f32 %v29, %v30
  %v33 = vsub.f32 %v21, %v31
  %v34 = vsub.f32 %v22, %v32
  %v35 = vmul.f32 %v33, %v33
  %v36 = vmul.f32 %v34, %v34
  %v37 = vsel %vm23, %v35, 0.0
  %38 = vadd.xlane.f32.xlu0 %v37
  %v39 = vpop.xlane.xlu0 %38
  %v40 = vsel %vm23, %v36, 0.0
  %41 = vadd.xlane.f32.xlu0 %v40
  %v42 = vpop.xlane.xlu0 %41
  %v43 = vmul.f32 %v39, %v30
  %v44 = vmul.f32 %v42, %v30
  %v45 = vadd.f32 %v43, 1e-05
  %v46 = vadd.f32 %v44, 1e-05
  %v47 = vrsqrt.pop %v45
  %v48 = vrsqrt.pop %v46
  %v49 = vmul.f32 %v33, %v47
  %v50 = vmul.f32 %v34, %v48
  %v51 = vld [vmem:[%s1] sm:$0x1]
  %v53 = vlaneseq
  %v54 = vshrl.u32 %v53, 7
  %v55 = vsub.s32 0, %v54
  %v56 = vrot.slane %v51, %v55
  %v58 = vmul.f32 %v49, %v56
  %v59 = vmul.f32 %v50, %v56
  %v60 = vld [vmem:[%s2] sm:$0x1]
  %v62 = vlaneseq
  %v63 = vshrl.u32 %v62, 7
  %v64 = vsub.s32 0, %v63
  %v65 = vrot.slane %v60, %v64
  %v67 = vadd.f32 %v58, %v65
  %v68 = vadd.f32 %v59, %v65
  %v69 = vpack.c.bf16 %v68, %v67
  %v70 = vld [vmem:[%s3] sm:$0xf]
  %v71 = vld [vmem:[%s3 + $0x4] sm:$0xf]
  %v72 = vld [vmem:[%s3 + $0x8] sm:$0xf]
  %v73 = vld [vmem:[%s3 + $0xc] sm:$0xf]
  %v74 = vld [vmem:[%s4] sm:$0x1]
  %v76 = vlaneseq
  %v77 = vshrl.u32 %v76, 7
  %v78 = vsub.s32 0, %v77
  %v79 = vrot.slane %v74, %v78
  %v85 = vunpack.c.l.b16 %v70
  %v86 = vunpack.c.l.b16 %v71
  %v87 = vunpack.c.l.b16 %v72
  %v88 = vunpack.c.l.b16 %v73
  %v89 = vpack.c.b16 %v86, %v85
  %v90 = vpack.c.b16 %v88, %v87
  %v94 = vsel %vm23, %v69, 0
  %96 = vmatprep.subr.bf16.mxu0 0
  %97 = vmatpush1.bf16.msra.mxu0 %v89
  %98 = vmatprep.subr.bf16.mxu0 0
  %99 = vmatpush1.bf16.msra.mxu0 %v90
  %100 = vmatprep.subr.bf16.mxu0 0
  %101 = vmatpush1.bf16.msra.mxu0 0
  %102 = vmatprep.subr.bf16.mxu0 0
  %103 = vmatpush1.bf16.msra.mxu0 0
  %104 = vmatprep.subr.bf16.mxu0 0
  %105 = vmatpush1.bf16.msra.mxu0 0
  %106 = vmatprep.subr.bf16.mxu0 0
  %107 = vmatpush1.bf16.msra.mxu0 0
  %108 = vmatprep.subr.bf16.mxu0 0
  %109 = vmatpush1.bf16.msra.mxu0 0
  %110 = vmatprep.subr.bf16.mxu0 0
  %111 = vmatpush1.bf16.msra.mxu0 0
  %112 = vmatprep.subr.bf16.mxu0 0
  %113 = vmatpush1.bf16.msra.mxu0 0
  %114 = vmatprep.subr.bf16.mxu0 0
  %115 = vmatpush1.bf16.msra.mxu0 0
  %116 = vmatprep.subr.bf16.mxu0 0
  %117 = vmatpush1.bf16.msra.mxu0 0
  %118 = vmatprep.subr.bf16.mxu0 0
  %119 = vmatpush1.bf16.msra.mxu0 0
  %120 = vmatprep.subr.bf16.mxu0 0
  %121 = vmatpush1.bf16.msra.mxu0 0
  %122 = vmatprep.subr.bf16.mxu0 0
  %123 = vmatpush1.bf16.msra.mxu0 0
  %124 = vmatprep.subr.bf16.mxu0 0
  %125 = vmatpush1.bf16.msra.mxu0 0
  %126 = vmatprep.subr.bf16.mxu0 0
  %127 = vmatpush1.bf16.msra.mxu0 0
  %128 = vmatprep.mubr.bf16.mxu0 0
  %129 = vmatmul.mubr.bf16.gmra.mrb[0].mxu0 %v94
  %v130 = vpop.f32.mrb[0].mxu0
  %v131 = vadd.f32 %v79, %v130
  %v132 = vpop.f32.mrb[0].mxu0
  %v133 = vpop.f32.mrb[0].mxu0
  %v134 = vadd.f32 %v79, %v133
  %v135 = vpop.f32.mrb[0].mxu0
  %136 = vdwg.mxu0
  %v137 = vpack.c.bf16 %v134, %v131
  %v139 = vunpack.c.l.b16 %v137
  %v140 = vunpack.c.h.b16 %v137
  %v141 = vpack.c.b16 %v139, %v139
  %v142 = vpack.c.b16 %v140, %v140
  %vm145 = vcmask 257024
  %146 = vst.msk [vmem:[%s5] sm:$0xf] %vm145, %v141
  %147 = vst.msk [vmem:[%s5 + $0x4] sm:$0xf] %vm145, %v142
  // Predicated region
  $region22: #{hoi_residual_attention_block.11} parent=0 // pred_check
    _
  $region23: #{hoi_residual_attention_block.11} parent=0 // pred_check_branch
    %149 = sbr.rel (0) target = $region25
  $region24: #{hoi_residual_attention_block.11} parent=0 // pred_region
    _
  $region25: #{hoi_residual_attention_block.11} parent=0 // pred_fallthru
    _
  // Predicated region
  $region26: #{hoi_residual_attention_block.11} parent=0 // pred_check
    _
  $region27: #{hoi_residual_attention_block.11} parent=0 // pred_check_branch
    %151 = sbr.rel (0) target = $region29
  $region28: #{hoi_residual_attention_block.11} parent=0 // pred_region
    _
  $region29: #{hoi_residual_attention_block.11} parent=0 // pred_fallthru
    _

// kernel: hoi_residual_attention_block.14
$region0: #{hoi_residual_attention_block.14}
  #allocation0 [shape = 'u32[]', space=smem, size = 0x4, offset = 0x4, fixed_abs, tag = 'smem constant byte address 0x4 - core index']
  #allocation1 [shape = 'u32[144,128]{1,0:T(1,128)}', space=vmem, size = 0x12000, scoped, tag = 'internal scratch']
  %s0 = inlined_call_operand.vmem [shape: f32[16,32], index: 0, kind: input, shape index: {}]
  %s1 = inlined_call_operand.vmem [shape: bf16[16,32], index: 1, kind: input, shape index: {}]
  %s2 = inlined_call_operand.vmem [shape: bf16[32,32], index: 2, kind: input, shape index: {}]
  %s3 = inlined_call_operand.vmem [shape: f32[1,32], index: 3, kind: input, shape index: {}]
  %s4 = inlined_call_operand.vmem [shape: f32[16,32], index: 4, kind: output, shape index: {}]
  %s5 = sld [smem:[#allocation0]]
  $region26: #{hoi_residual_attention_block.14} parent=0
    _
  %s7 = ssub.s32 1, %s5
  %s8 = scalar_select 0, %s7, %s5
  // Predicated region
  $region2: #{hoi_residual_attention_block.14} parent=0 // pred_check
    _
  $region3: #{hoi_residual_attention_block.14} parent=0 // pred_check_branch
    %10 = sbr.rel (0) target = $region5
  $region4: #{hoi_residual_attention_block.14} parent=0 // pred_region
    _
  $region5: #{hoi_residual_attention_block.14} parent=0 // pred_fallthru
    _
  // Predicated region
  $region6: #{hoi_residual_attention_block.14} parent=0 // pred_check
    _
  $region7: #{hoi_residual_attention_block.14} parent=0 // pred_check_branch
    %12 = sbr.rel (0) target = $region9
  $region8: #{hoi_residual_attention_block.14} parent=0 // pred_region
    _
  $region9: #{hoi_residual_attention_block.14} parent=0 // pred_fallthru
    _
  // Predicated region
  $region10: #{hoi_residual_attention_block.14} parent=0 // pred_check
    _
  $region11: #{hoi_residual_attention_block.14} parent=0 // pred_check_branch
    %14 = sbr.rel (0) target = $region13
  $region12: #{hoi_residual_attention_block.14} parent=0 // pred_region
    _
  $region13: #{hoi_residual_attention_block.14} parent=0 // pred_fallthru
    _
  // Predicated region
  $region14: #{hoi_residual_attention_block.14} parent=0 // pred_check
    _
  $region15: #{hoi_residual_attention_block.14} parent=0 // pred_check_branch
    %16 = sbr.rel (0) target = $region17
  $region16: #{hoi_residual_attention_block.14} parent=0 // pred_region
    _
  $region17: #{hoi_residual_attention_block.14} parent=0 // pred_fallthru
    _
  %v18 = vld [vmem:[%s1] sm:$0xf]
  %v19 = vld [vmem:[%s1 + $0x4] sm:$0xf]
  %v20 = vld [vmem:[%s2] sm:$0xf]
  %v21 = vld [vmem:[%s2 + $0x4] sm:$0xf]
  %v22 = vld [vmem:[%s2 + $0x8] sm:$0xf]
  %v23 = vld [vmem:[%s2 + $0xc] sm:$0xf]
  %v24 = vld [vmem:[%s3] sm:$0x1]
  %v26 = vlaneseq
  %v27 = vshrl.u32 %v26, 7
  %v28 = vsub.s32 0, %v27
  %v29 = vrot.slane %v24, %v28
  %v33 = vunpack.c.l.b16 %v18
  %v34 = vunpack.c.l.b16 %v19
  %v35 = vpack.c.b16 %v34, %v33
  %v40 = vunpack.c.l.b16 %v20
  %v41 = vunpack.c.l.b16 %v21
  %v42 = vunpack.c.l.b16 %v22
  %v43 = vunpack.c.l.b16 %v23
  %v44 = vpack.c.b16 %v41, %v40
  %v45 = vpack.c.b16 %v43, %v42
  %vm48 = vcmask 261120
  %v50 = vsel %vm48, %v35, 0
  %52 = vmatprep.subr.bf16.mxu0 0
  %53 = vmatpush1.bf16.msra.mxu0 %v44
  %54 = vmatprep.subr.bf16.mxu0 0
  %55 = vmatpush1.bf16.msra.mxu0 %v45
  %56 = vmatprep.subr.bf16.mxu0 0
  %57 = vmatpush1.bf16.msra.mxu0 0
  %58 = vmatprep.subr.bf16.mxu0 0
  %59 = vmatpush1.bf16.msra.mxu0 0
  %60 = vmatprep.subr.bf16.mxu0 0
  %61 = vmatpush1.bf16.msra.mxu0 0
  %62 = vmatprep.subr.bf16.mxu0 0
  %63 = vmatpush1.bf16.msra.mxu0 0
  %64 = vmatprep.subr.bf16.mxu0 0
  %65 = vmatpush1.bf16.msra.mxu0 0
  %66 = vmatprep.subr.bf16.mxu0 0
  %67 = vmatpush1.bf16.msra.mxu0 0
  %68 = vmatprep.subr.bf16.mxu0 0
  %69 = vmatpush1.bf16.msra.mxu0 0
  %70 = vmatprep.subr.bf16.mxu0 0
  %71 = vmatpush1.bf16.msra.mxu0 0
  %72 = vmatprep.subr.bf16.mxu0 0
  %73 = vmatpush1.bf16.msra.mxu0 0
  %74 = vmatprep.subr.bf16.mxu0 0
  %75 = vmatpush1.bf16.msra.mxu0 0
  %76 = vmatprep.subr.bf16.mxu0 0
  %77 = vmatpush1.bf16.msra.mxu0 0
  %78 = vmatprep.subr.bf16.mxu0 0
  %79 = vmatpush1.bf16.msra.mxu0 0
  %80 = vmatprep.subr.bf16.mxu0 0
  %81 = vmatpush1.bf16.msra.mxu0 0
  %82 = vmatprep.subr.bf16.mxu0 0
  %83 = vmatpush1.bf16.msra.mxu0 0
  %84 = vmatprep.mubr.bf16.mxu0 0
  %85 = vmatmul.mubr.bf16.gmra.mrb[0].mxu0 %v50
  %v86 = vpop.f32.mrb[0].mxu0
  %v87 = vadd.f32 %v29, %v86
  %v88 = vpop.f32.mrb[0].mxu0
  %v89 = vpop.f32.mrb[0].mxu0
  %v90 = vadd.f32 %v29, %v89
  %v91 = vpop.f32.mrb[0].mxu0
  %92 = vdwg.mxu0
  %v93 = vld [vmem:[%s0] sm:$0xff]
  %v94 = vld [vmem:[%s0 + $0x8] sm:$0xff]
  %v95 = vadd.f32 %v93, %v87
  %v96 = vadd.f32 %v94, %v90
  %97 = vst.msk [vmem:[%s4] sm:$0xff] %vm48, %v95
  %98 = vst.msk [vmem:[%s4 + $0x8] sm:$0xff] %vm48, %v96
  // Predicated region
  $region18: #{hoi_residual_attention_block.14} parent=0 // pred_check
    _
  $region19: #{hoi_residual_attention_block.14} parent=0 // pred_check_branch
    %100 = sbr.rel (0) target = $region21
  $region20: #{hoi_residual_attention_block.14} parent=0 // pred_region
    _
  $region21: #{hoi_residual_attention_block.14} parent=0 // pred_fallthru
    _
  // Predicated region
  $region22: #{hoi_residual_attention_block.14} parent=0 // pred_check
    _
  $region23: #{hoi_residual_attention_block.14} parent=0 // pred_check_branch
    %102 = sbr.rel (0) target = $region25
  $region24: #{hoi_residual_attention_block.14} parent=0 // pred_region
    _
  $region25: #{hoi_residual_attention_block.14} parent=0 // pred_fallthru
    _

// kernel: hoi_residual_attention_block.13
$region0: #{hoi_residual_attention_block.13}
  #allocation0 [shape = 'u32[]', space=smem, size = 0x4, offset = 0x4, fixed_abs, tag = 'smem constant byte address 0x4 - core index']
  #allocation1 [shape = 'u32[144,128]{1,0:T(1,128)}', space=vmem, size = 0x12000, scoped, tag = 'internal scratch']
  %s0 = inlined_call_operand.vmem [shape: bf16[2,4,4,8], index: 0, kind: input, shape index: {}]
  %s1 = inlined_call_operand.vmem [shape: bf16[2,4,17,8], index: 1, kind: input, shape index: {}]
  %s2 = inlined_call_operand.vmem [shape: bf16[2,4,17,8], index: 2, kind: input, shape index: {}]
  %s3 = inlined_call_operand.vmem [shape: f32[2,4,17], index: 3, kind: input, shape index: {}]
  %s4 = inlined_call_operand.vmem [shape: bf16[2,4,4,8], index: 4, kind: output, shape index: {0}]
  %s5 = inlined_call_operand.hbm [shape: f32[2,4,17], index: 5, kind: output, shape index: {1}]
  %6 = xla_tuple %s4, %s5
  %s7 = sld [smem:[#allocation0]]
  $region57: #{hoi_residual_attention_block.13} parent=0
    _
  %s9 = ssub.s32 1, %s7
  %s10 = scalar_select 0, %s9, %s7
  $region1: #{hoi_residual_attention_block.13} parent=0
    #allocation2 [shape = 'u8[4096]{0}', space=vmem, size = 0x1000, scoped, tag = 'output window, operand 1']
    #allocation3 [shape = 's32[2]{0}', space=sflag, size = 0x8, scoped, tag = 'scoped memory for hoi_residual_attention_block.13']
    %11 = vsyncpa [#allocation3], 0
    %s12 = scalar_lea.sflag [#allocation3], 1
    %13 = vsyncpa %s12, 0
    loop: start=0, step=1, limit=4
    $region2: #{hoi_residual_attention_block.13} parent=1 // loop_pre_header
      _
    $region3: #{hoi_residual_attention_block.13} parent=1 // loop_header
      %s15 = sphi 0, %s19
      %p16 = scmp.ge.s32.totalorder %s15, 4
      %s25 = sphi 0, %s27
      %s28 = sphi 0, %s25
      %s29 = sphi 0, %s28
      %s45 = sphi 0, %s29
      %s51 = sphi 0, %s53
      %s54 = sphi 0, %s51
      %s55 = sphi 0, %s54
      %s71 = sphi 0, %s55
      %s77 = sphi 0, %s79
      %s80 = sphi 0, %s77
      %s81 = sphi 0, %s80
      %s97 = sphi 0, %s81
      %s103 = sphi 0, %s105
      %s106 = sphi 0, %s103
      %s107 = sphi 0, %s106
      %s123 = sphi 0, %s107
      %s129 = sphi 0, %s131
      %s132 = sphi 0, %s129
      %s133 = sphi 0, %s132
      %s149 = sphi 0, %s133
      %s155 = sphi 0, %s157
      %s158 = sphi 0, %s155
      %s159 = sphi 0, %s158
      %s175 = sphi 0, %s159
    $region4: #{hoi_residual_attention_block.13} parent=1 // loop_header_branch
      %18 = sbr.rel (%p16) target = $region8
    $region5: #{hoi_residual_attention_block.13} parent=1 // loop_body
      %s20 = ssub.s32 %s15, 1
      %s21 = ssub.s32 %s15, 2
      %s22 = sadd.s32 %s15, 1
      %s23 = ssub.s32 %s15, %s22
      %p24 = scmp.eq.s32.totalorder %s23, 0
      %s26 = sadd.s32 %s25, 1
      %s27 = scalar_select %p24, %s25, %s26
      %p30 = pneg %p24
      %p31 = scmp.eq.s32.totalorder %s15, 1
      %p32 = por %p30, %p31
      %p33 = scmp.ne.s32.totalorder %s25, %s28
      %p34 = scmp.eq.s32.totalorder %s15, 0
      %p35 = por %p33, %p34
      %p36 = scmp.ne.s32.totalorder %s25, %s28
      %p37 = scmp.eq.s32.totalorder %s20, 1
      %p38 = por %p36, %p37
      %p39 = scmp.ne.s32.totalorder %s28, %s29
      %p40 = scmp.eq.s32.totalorder %s20, 0
      %p41 = por %p39, %p40
      %p42 = scmp.ne.s32.totalorder %s28, %s29
      %p43 = scmp.eq.s32.totalorder %s21, 1
      %p44 = por %p42, %p43
      %p46 = scmp.ne.s32.totalorder %s29, %s45
      %p47 = scmp.eq.s32.totalorder %s21, 0
      %p48 = por %p46, %p47
      %s49 = ssub.s32 %s15, %s22
      %p50 = scmp.eq.s32.totalorder %s49, 0
      %s52 = sadd.s32 %s51, 1
      %s53 = scalar_select %p50, %s51, %s52
      %p56 = pneg %p50
      %p57 = scmp.eq.s32.totalorder %s15, 1
      %p58 = por %p56, %p57
      %p59 = scmp.ne.s32.totalorder %s51, %s54
      %p60 = scmp.eq.s32.totalorder %s15, 0
      %p61 = por %p59, %p60
      %p62 = scmp.ne.s32.totalorder %s51, %s54
      %p63 = scmp.eq.s32.totalorder %s20, 1
      %p64 = por %p62, %p63
      %p65 = scmp.ne.s32.totalorder %s54, %s55
      %p66 = scmp.eq.s32.totalorder %s20, 0
      %p67 = por %p65, %p66
      %p68 = scmp.ne.s32.totalorder %s54, %s55
      %p69 = scmp.eq.s32.totalorder %s21, 1
      %p70 = por %p68, %p69
      %p72 = scmp.ne.s32.totalorder %s55, %s71
      %p73 = scmp.eq.s32.totalorder %s21, 0
      %p74 = por %p72, %p73
      %s75 = ssub.s32 %s15, %s22
      %p76 = scmp.eq.s32.totalorder %s75, 0
      %s78 = sadd.s32 %s77, 1
      %s79 = scalar_select %p76, %s77, %s78
      %p82 = pneg %p76
      %p83 = scmp.eq.s32.totalorder %s15, 1
      %p84 = por %p82, %p83
      %p85 = scmp.ne.s32.totalorder %s77, %s80
      %p86 = scmp.eq.s32.totalorder %s15, 0
      %p87 = por %p85, %p86
      %p88 = scmp.ne.s32.totalorder %s77, %s80
      %p89 = scmp.eq.s32.totalorder %s20, 1
      %p90 = por %p88, %p89
      %p91 = scmp.ne.s32.totalorder %s80, %s81
      %p92 = scmp.eq.s32.totalorder %s20, 0
      %p93 = por %p91, %p92
      %p94 = scmp.ne.s32.totalorder %s80, %s81
      %p95 = scmp.eq.s32.totalorder %s21, 1
      %p96 = por %p94, %p95
      %p98 = scmp.ne.s32.totalorder %s81, %s97
      %p99 = scmp.eq.s32.totalorder %s21, 0
      %p100 = por %p98, %p99
      %s101 = ssub.s32 %s15, %s22
      %p102 = scmp.eq.s32.totalorder %s101, 0
      %s104 = sadd.s32 %s103, 1
      %s105 = scalar_select %p102, %s103, %s104
      %p108 = pneg %p102
      %p109 = scmp.eq.s32.totalorder %s15, 1
      %p110 = por %p108, %p109
      %p111 = scmp.ne.s32.totalorder %s103, %s106
      %p112 = scmp.eq.s32.totalorder %s15, 0
      %p113 = por %p111, %p112
      %p114 = scmp.ne.s32.totalorder %s103, %s106
      %p115 = scmp.eq.s32.totalorder %s20, 1
      %p116 = por %p114, %p115
      %p117 = scmp.ne.s32.totalorder %s106, %s107
      %p118 = scmp.eq.s32.totalorder %s20, 0
      %p119 = por %p117, %p118
      %p120 = scmp.ne.s32.totalorder %s106, %s107
      %p121 = scmp.eq.s32.totalorder %s21, 1
      %p122 = por %p120, %p121
      %p124 = scmp.ne.s32.totalorder %s107, %s123
      %p125 = scmp.eq.s32.totalorder %s21, 0
      %p126 = por %p124, %p125
      %s127 = ssub.s32 %s15, %s22
      %p128 = scmp.eq.s32.totalorder %s127, 0
      %s130 = sadd.s32 %s129, 1
      %s131 = scalar_select %p128, %s129, %s130
      %p134 = pneg %p128
      %p135 = scmp.eq.s32.totalorder %s15, 1
      %p136 = por %p134, %p135
      %p137 = scmp.ne.s32.totalorder %s129, %s132
      %p138 = scmp.eq.s32.totalorder %s15, 0
      %p139 = por %p137, %p138
      %p140 = scmp.ne.s32.totalorder %s129, %s132
      %p141 = scmp.eq.s32.totalorder %s20, 1
      %p142 = por %p140, %p141
      %p143 = scmp.ne.s32.totalorder %s132, %s133
      %p144 = scmp.eq.s32.totalorder %s20, 0
      %p145 = por %p143, %p144
      %p146 = scmp.ne.s32.totalorder %s132, %s133
      %p147 = scmp.eq.s32.totalorder %s21, 1
      %p148 = por %p146, %p147
      %p150 = scmp.ne.s32.totalorder %s133, %s149
      %p151 = scmp.eq.s32.totalorder %s21, 0
      %p152 = por %p150, %p151
      %s153 = ssub.s32 %s15, %s22
      %p154 = scmp.eq.s32.totalorder %s153, 0
      %s156 = sadd.s32 %s155, 1
      %s157 = scalar_select %p154, %s155, %s156
      %p160 = pneg %p154
      %p161 = scmp.eq.s32.totalorder %s15, 1
      %p162 = por %p160, %p161
      %p163 = scmp.ne.s32.totalorder %s155, %s158
      %p164 = scmp.eq.s32.totalorder %s15, 0
      %p165 = por %p163, %p164
      %p166 = scmp.ne.s32.totalorder %s155, %s158
      %p167 = scmp.eq.s32.totalorder %s20, 1
      %p168 = por %p166, %p167
      %p169 = scmp.ne.s32.totalorder %s158, %s159
      %p170 = scmp.eq.s32.totalorder %s20, 0
      %p171 = por %p169, %p170
      %p172 = scmp.ne.s32.totalorder %s158, %s159
      %p173 = scmp.eq.s32.totalorder %s21, 1
      %p174 = por %p172, %p173
      %p176 = scmp.ne.s32.totalorder %s159, %s175
      %p177 = scmp.eq.s32.totalorder %s21, 0
      %p178 = por %p176, %p177
      %p179 = scmp.le.s32.totalorder 1, %s15
      %p180 = scmp.lt.s32.totalorder %s15, 3
      %p181 = pnand %p179, %p180
      %p182 = pneg %p181
      // Predicated region
      $region9: #{hoi_residual_attention_block.13} parent=5 // pred_check
        _
      $region10: #{hoi_residual_attention_block.13} parent=5 // pred_check_branch
        %184 = sbr.rel (%p181) target = $region12
      $region11: #{hoi_residual_attention_block.13} parent=5 // pred_region
        %s185 = ssub.s32 %s15, 1
      $region12: #{hoi_residual_attention_block.13} parent=5 // pred_fallthru
        _
      %p186 = scmp.lt.s32.totalorder %s15, 2
      // Predicated region
      $region13: #{hoi_residual_attention_block.13} parent=5 // pred_check
        %p187 = pneg %p186
      $region14: #{hoi_residual_attention_block.13} parent=5 // pred_check_branch
        %189 = sbr.rel (%p187) target = $region16
      $region15: #{hoi_residual_attention_block.13} parent=5 // pred_region
        // Predicated region
        $region17: #{hoi_residual_attention_block.13} parent=15 // pred_check
          %p190 = pneg %p35
        $region18: #{hoi_residual_attention_block.13} parent=15 // pred_check_branch
          %192 = sbr.rel (%p190) target = $region20
        $region19: #{hoi_residual_attention_block.13} parent=15 // pred_region
          %p193 = scmp.lt.s32.totalorder %s15, 1
          %s194 = scalar_select %p193, %s15, 1
          %s195 = smul.addr %s194, 4
          %s196 = smul.addr %s195, 2
          %s197 = scalar_lea.vmem %s0, %s196
        $region20: #{hoi_residual_attention_block.13} parent=15 // pred_fallthru
          _
        // Predicated region
        $region21: #{hoi_residual_attention_block.13} parent=15 // pred_check
          %p198 = pneg %p61
        $region22: #{hoi_residual_attention_block.13} parent=15 // pred_check_branch
          %200 = sbr.rel (%p198) target = $region24
        $region23: #{hoi_residual_attention_block.13} parent=15 // pred_region
          %p201 = scmp.lt.s32.totalorder %s15, 1
          %s202 = scalar_select %p201, %s15, 1
          %s203 = smul.addr %s202, 12
          %s204 = smul.addr %s203, 4
          %s205 = scalar_lea.vmem %s1, %s204
        $region24: #{hoi_residual_attention_block.13} parent=15 // pred_fallthru
          _
        // Predicated region
        $region25: #{hoi_residual_attention_block.13} parent=15 // pred_check
          %p206 = pneg %p87
        $region26: #{hoi_residual_attention_block.13} parent=15 // pred_check_branch
          %208 = sbr.rel (%p206) target = $region28
        $region27: #{hoi_residual_attention_block.13} parent=15 // pred_region
          %p209 = scmp.lt.s32.totalorder %s15, 1
          %s210 = scalar_select %p209, %s15, 1
          %s211 = smul.addr %s210, 12
          %s212 = smul.addr %s211, 4
          %s213 = scalar_lea.vmem %s2, %s212
        $region28: #{hoi_residual_attention_block.13} parent=15 // pred_fallthru
          _
        // Predicated region
        $region29: #{hoi_residual_attention_block.13} parent=15 // pred_check
          %p214 = pneg %p113
        $region30: #{hoi_residual_attention_block.13} parent=15 // pred_check_branch
          %216 = sbr.rel (%p214) target = $region32
        $region31: #{hoi_residual_attention_block.13} parent=15 // pred_region
          %p217 = scmp.lt.s32.totalorder %s15, 1
          %s218 = scalar_select %p217, %s15, 1
          %s219 = smul.addr %s218, 4
          %s220 = scalar_lea.vmem %s3, %s219
        $region32: #{hoi_residual_attention_block.13} parent=15 // pred_fallthru
          _
      $region16: #{hoi_residual_attention_block.13} parent=5 // pred_fallthru
        _
      %p221 = scmp.le.s32.totalorder 1, %s15
      %p222 = scmp.lt.s32.totalorder %s15, 3
      %p223 = pnand %p221, %p222
      %p224 = pneg %p223
      // Predicated region
      $region33: #{hoi_residual_attention_block.13} parent=5 // pred_check
        _
      $region34: #{hoi_residual_attention_block.13} parent=5 // pred_check_branch
        %226 = sbr.rel (%p223) target = $region36
      $region35: #{hoi_residual_attention_block.13} parent=5 // pred_region
        %s227 = ssub.s32 %s15, 1
        %p228 = scmp.lt.s32.totalorder %s20, 1
        %s229 = scalar_select %p228, %s20, 1
        %s230 = smul.addr %s229, 4
        %s231 = smul.addr %s230, 2
        %s232 = scalar_lea.vmem %s0, %s231
        %p233 = pneg %p41
        %p234 = pneg %p38
        %p235 = scmp.lt.s32.totalorder %s20, 1
        %s236 = scalar_select %p235, %s20, 1
        %s237 = smul.addr %s236, 12
        %s238 = smul.addr %s237, 4
        %s239 = scalar_lea.vmem %s1, %s238
        %p240 = pneg %p67
        %p241 = pneg %p64
        %p242 = scmp.lt.s32.totalorder %s20, 1
        %s243 = scalar_select %p242, %s20, 1
        %s244 = smul.addr %s243, 12
        %s245 = smul.addr %s244, 4
        %s246 = scalar_lea.vmem %s2, %s245
        %p247 = pneg %p93
        %p248 = pneg %p90
        %p249 = scmp.lt.s32.totalorder %s20, 1
        %s250 = scalar_select %p249, %s20, 1
        %s251 = smul.addr %s250, 4
        %s252 = scalar_lea.vmem %s3, %s251
        %p253 = pneg %p119
        %p254 = pneg %p116
        %p255 = pneg %p145
        %p256 = pneg %p142
        %p257 = scmp.lt.s32.totalorder %s20, 1
        %s258 = scalar_select %p257, %s20, 1
        %s259 = smul.addr %s258, 4
        %s260 = smul.addr %s259, 2
        %s261 = scalar_lea.vmem %s4, %s260
        %p262 = pneg %p171
        %p263 = pneg %p168
        %s264 = sand.u32 %s158, 1
        %s265 = scalar_lea.sflag [#allocation3], %s264
        %s266 = sand.u32 %s158, 1
        %s267 = smul.addr %s266, 4
        %s268 = scalar_lea.vmem [#allocation2], %s267
        %p269 = scmp.lt.s32.totalorder %s20, 1
        %s270 = scalar_select %p269, %s20, 1
        %s271 = smul.addr %s270, 4
        %s272 = smul.addr %s271, 2
        %s273 = scalar_lea.vmem %s0, %s272
        %p274 = scmp.lt.s32.totalorder %s20, 1
        %s275 = scalar_select %p274, %s20, 1
        %s276 = smul.addr %s275, 12
        %s277 = smul.addr %s276, 4
        %s278 = scalar_lea.vmem %s1, %s277
        %p279 = scmp.lt.s32.totalorder %s20, 1
        %s280 = scalar_select %p279, %s20, 1
        %s281 = smul.addr %s280, 12
        %s282 = smul.addr %s281, 4
        %s283 = scalar_lea.vmem %s2, %s282
        %p284 = scmp.lt.s32.totalorder %s20, 1
        %s285 = scalar_select %p284, %s20, 1
        %s286 = smul.addr %s285, 4
        %s287 = scalar_lea.vmem %s3, %s286
        %p288 = scmp.lt.s32.totalorder %s20, 1
        %s289 = scalar_select %p288, %s20, 1
        %s290 = smul.addr %s289, 4
        %s291 = smul.addr %s290, 2
        %s292 = scalar_lea.vmem %s4, %s291
        %v294 = vld [vmem:[%s273] sm:$0x3]
        %v295 = vld [vmem:[%s273 + $0x2] sm:$0x3]
        %v296 = vld [vmem:[%s273 + $0x4] sm:$0x3]
        %v297 = vld [vmem:[%s273 + $0x6] sm:$0x3]
        %v298 = vld [vmem:[%s278] sm:$0xf]
        %v299 = vld [vmem:[%s278 + $0x4] sm:$0xf]
        %v300 = vld [vmem:[%s278 + $0x8] sm:$0x1]
        %v301 = vld [vmem:[%s278 + $0xc] sm:$0xf]
        %v302 = vld [vmem:[%s278 + $0x10] sm:$0xf]
        %v303 = vld [vmem:[%s278 + $0x14] sm:$0x1]
        %v304 = vld [vmem:[%s278 + $0x18] sm:$0xf]
        %v305 = vld [vmem:[%s278 + $0x1c] sm:$0xf]
        %v306 = vld [vmem:[%s278 + $0x20] sm:$0x1]
        %v307 = vld [vmem:[%s278 + $0x24] sm:$0xf]
        %v308 = vld [vmem:[%s278 + $0x28] sm:$0xf]
        %v309 = vld [vmem:[%s278 + $0x2c] sm:$0x1]
        %v310 = vld [vmem:[%s283] sm:$0xf]
        %v311 = vld [vmem:[%s283 + $0x4] sm:$0xf]
        %v312 = vld [vmem:[%s283 + $0x8] sm:$0x1]
        %v313 = vld [vmem:[%s283 + $0xc] sm:$0xf]
        %v314 = vld [vmem:[%s283 + $0x10] sm:$0xf]
        %v315 = vld [vmem:[%s283 + $0x14] sm:$0x1]
        %v316 = vld [vmem:[%s283 + $0x18] sm:$0xf]
        %v317 = vld [vmem:[%s283 + $0x1c] sm:$0xf]
        %v318 = vld [vmem:[%s283 + $0x20] sm:$0x1]
        %v319 = vld [vmem:[%s283 + $0x24] sm:$0xf]
        %v320 = vld [vmem:[%s283 + $0x28] sm:$0xf]
        %v321 = vld [vmem:[%s283 + $0x2c] sm:$0x1]
        %v325 = vunpack.c.l.b16 %v298
        %v326 = vunpack.c.l.b16 %v299
        %v327 = vunpack.c.l.b16 %v300
        %v328 = vpack.c.b16 %v326, %v325
        %v329 = vpack.c.b16 %v327, %v327
        %vm330 = vcmask 64512
        %v332 = vsel %vm330, %v294, 0
        %v335 = vsel %vm330, %v328, 0
        %v338 = vsel %vm330, %v329, 0
        %340 = vmatprep.subr.bf16.mxu0 0
        %341 = vmatpush1.bf16.xpose.msra.mxu0 %v335
        %342 = vmatprep.subr.bf16.mxu0 0
        %343 = vmatpush1.bf16.xpose.msra.mxu0 %v338
        %344 = vmatprep.subr.bf16.mxu0 0
        %345 = vmatpush1.bf16.xpose.msra.mxu0 0
        %346 = vmatprep.subr.bf16.mxu0 0
        %347 = vmatpush1.bf16.xpose.msra.mxu0 0
        %348 = vmatprep.subr.bf16.mxu0 0
        %349 = vmatpush1.bf16.xpose.msra.mxu0 0
        %350 = vmatprep.subr.bf16.mxu0 0
        %351 = vmatpush1.bf16.xpose.msra.mxu0 0
        %352 = vmatprep.subr.bf16.mxu0 0
        %353 = vmatpush1.bf16.xpose.msra.mxu0 0
        %354 = vmatprep.subr.bf16.mxu0 0
        %355 = vmatpush1.bf16.xpose.msra.mxu0 0
        %356 = vmatprep.subr.bf16.mxu0 0
        %357 = vmatpush1.bf16.xpose.msra.mxu0 0
        %358 = vmatprep.subr.bf16.mxu0 0
        %359 = vmatpush1.bf16.xpose.msra.mxu0 0
        %360 = vmatprep.subr.bf16.mxu0 0
        %361 = vmatpush1.bf16.xpose.msra.mxu0 0
        %362 = vmatprep.subr.bf16.mxu0 0
        %363 = vmatpush1.bf16.xpose.msra.mxu0 0
        %364 = vmatprep.subr.bf16.mxu0 0
        %365 = vmatpush1.bf16.xpose.msra.mxu0 0
        %366 = vmatprep.subr.bf16.mxu0 0
        %367 = vmatpush1.bf16.xpose.msra.mxu0 0
        %368 = vmatprep.subr.bf16.mxu0 0
        %369 = vmatpush1.bf16.xpose.msra.mxu0 0
        %370 = vmatprep.subr.bf16.mxu0 0
        %371 = vmatpush1.bf16.xpose.msra.mxu0 0
        %372 = vmatprep.mubr.bf16.mxu0 0
        %373 = vmatmul.mubr.bf16.gmra.mrb[0].mxu0 %v332
        %v374 = vpop.f32.mrb[0].mxu0
        %v375 = vadd.f32 0.0, %v374
        %v376 = vpop.f32.mrb[0].mxu0
        %v377 = vpop.f32.mrb[0].mxu0
        %v378 = vpop.f32.mrb[0].mxu0
        %379 = vdwg.mxu0
        %v383 = vunpack.c.l.b16 %v301
        %v384 = vunpack.c.l.b16 %v302
        %v385 = vunpack.c.l.b16 %v303
        %v386 = vpack.c.b16 %v384, %v383
        %v387 = vpack.c.b16 %v385, %v385
        %v389 = vsel %vm330, %v295, 0
        %v392 = vsel %vm330, %v386, 0
        %v395 = vsel %vm330, %v387, 0
        %397 = vmatprep.subr.bf16.mxu0 0
        %398 = vmatpush1.bf16.xpose.msra.mxu0 %v392
        %399 = vmatprep.subr.bf16.mxu0 0
        %400 = vmatpush1.bf16.xpose.msra.mxu0 %v395
        %401 = vmatprep.subr.bf16.mxu0 0
        %402 = vmatpush1.bf16.xpose.msra.mxu0 0
        %403 = vmatprep.subr.bf16.mxu0 0
        %404 = vmatpush1.bf16.xpose.msra.mxu0 0
        %405 = vmatprep.subr.bf16.mxu0 0
        %406 = vmatpush1.bf16.xpose.msra.mxu0 0
        %407 = vmatprep.subr.bf16.mxu0 0
        %408 = vmatpush1.bf16.xpose.msra.mxu0 0
        %409 = vmatprep.subr.bf16.mxu0 0
        %410 = vmatpush1.bf16.xpose.msra.mxu0 0
        %411 = vmatprep.subr.bf16.mxu0 0
        %412 = vmatpush1.bf16.xpose.msra.mxu0 0
        %413 = vmatprep.subr.bf16.mxu0 0
        %414 = vmatpush1.bf16.xpose.msra.mxu0 0
        %415 = vmatprep.subr.bf16.mxu0 0
        %416 = vmatpush1.bf16.xpose.msra.mxu0 0
        %417 = vmatprep.subr.bf16.mxu0 0
        %418 = vmatpush1.bf16.xpose.msra.mxu0 0
        %419 = vmatprep.subr.bf16.mxu0 0
        %420 = vmatpush1.bf16.xpose.msra.mxu0 0
        %421 = vmatprep.subr.bf16.mxu0 0
        %422 = vmatpush1.bf16.xpose.msra.mxu0 0
        %423 = vmatprep.subr.bf16.mxu0 0
        %424 = vmatpush1.bf16.xpose.msra.mxu0 0
        %425 = vmatprep.subr.bf16.mxu0 0
        %426 = vmatpush1.bf16.xpose.msra.mxu0 0
        %427 = vmatprep.subr.bf16.mxu0 0
        %428 = vmatpush1.bf16.xpose.msra.mxu0 0
        %429 = vmatprep.mubr.bf16.mxu0 0
        %430 = vmatmul.mubr.bf16.gmra.mrb[0].mxu0 %v389
        %v431 = vpop.f32.mrb[0].mxu0
        %v432 = vadd.f32 0.0, %v431
        %v433 = vpop.f32.mrb[0].mxu0
        %v434 = vpop.f32.mrb[0].mxu0
        %v435 = vpop.f32.mrb[0].mxu0
        %436 = vdwg.mxu0
        %v440 = vunpack.c.l.b16 %v304
        %v441 = vunpack.c.l.b16 %v305
        %v442 = vunpack.c.l.b16 %v306
        %v443 = vpack.c.b16 %v441, %v440
        %v444 = vpack.c.b16 %v442, %v442
        %v446 = vsel %vm330, %v296, 0
        %v449 = vsel %vm330, %v443, 0
        %v452 = vsel %vm330, %v444, 0
        %454 = vmatprep.subr.bf16.mxu0 0
        %455 = vmatpush1.bf16.xpose.msra.mxu0 %v449
        %456 = vmatprep.subr.bf16.mxu0 0
        %457 = vmatpush1.bf16.xpose.msra.mxu0 %v452
        %458 = vmatprep.subr.bf16.mxu0 0
        %459 = vmatpush1.bf16.xpose.msra.mxu0 0
        %460 = vmatprep.subr.bf16.mxu0 0
        %461 = vmatpush1.bf16.xpose.msra.mxu0 0
        %462 = vmatprep.subr.bf16.mxu0 0
        %463 = vmatpush1.bf16.xpose.msra.mxu0 0
        %464 = vmatprep.subr.bf16.mxu0 0
        %465 = vmatpush1.bf16.xpose.msra.mxu0 0
        %466 = vmatprep.subr.bf16.mxu0 0
        %467 = vmatpush1.bf16.xpose.msra.mxu0 0
        %468 = vmatprep.subr.bf16.mxu0 0
        %469 = vmatpush1.bf16.xpose.msra.mxu0 0
        %470 = vmatprep.subr.bf16.mxu0 0
        %471 = vmatpush1.bf16.xpose.msra.mxu0 0
        %472 = vmatprep.subr.bf16.mxu0 0
        %473 = vmatpush1.bf16.xpose.msra.mxu0 0
        %474 = vmatprep.subr.bf16.mxu0 0
        %475 = vmatpush1.bf16.xpose.msra.mxu0 0
        %476 = vmatprep.subr.bf16.mxu0 0
        %477 = vmatpush1.bf16.xpose.msra.mxu0 0
        %478 = vmatprep.subr.bf16.mxu0 0
        %479 = vmatpush1.bf16.xpose.msra.mxu0 0
        %480 = vmatprep.subr.bf16.mxu0 0
        %481 = vmatpush1.bf16.xpose.msra.mxu0 0
        %482 = vmatprep.subr.bf16.mxu0 0
        %483 = vmatpush1.bf16.xpose.msra.mxu0 0
        %484 = vmatprep.subr.bf16.mxu0 0
        %485 = vmatpush1.bf16.xpose.msra.mxu0 0
        %486 = vmatprep.mubr.bf16.mxu0 0
        %487 = vmatmul.mubr.bf16.gmra.mrb[0].mxu0 %v446
        %v488 = vpop.f32.mrb[0].mxu0
        %v489 = vadd.f32 0.0, %v488
        %v490 = vpop.f32.mrb[0].mxu0
        %v491 = vpop.f32.mrb[0].mxu0
        %v492 = vpop.f32.mrb[0].mxu0
        %493 = vdwg.mxu0
        %v497 = vunpack.c.l.b16 %v307
        %v498 = vunpack.c.l.b16 %v308
        %v499 = vunpack.c.l.b16 %v309
        %v500 = vpack.c.b16 %v498, %v497
        %v501 = vpack.c.b16 %v499, %v499
        %v503 = vsel %vm330, %v297, 0
        %v506 = vsel %vm330, %v500, 0
        %v509 = vsel %vm330, %v501, 0
        %511 = vmatprep.subr.bf16.mxu0 0
        %512 = vmatpush1.bf16.xpose.msra.mxu0 %v506
        %513 = vmatprep.subr.bf16.mxu0 0
        %514 = vmatpush1.bf16.xpose.msra.mxu0 %v509
        %515 = vmatprep.subr.bf16.mxu0 0
        %516 = vmatpush1.bf16.xpose.msra.mxu0 0
        %517 = vmatprep.subr.bf16.mxu0 0
        %518 = vmatpush1.bf16.xpose.msra.mxu0 0
        %519 = vmatprep.subr.bf16.mxu0 0
        %520 = vmatpush1.bf16.xpose.msra.mxu0 0
        %521 = vmatprep.subr.bf16.mxu0 0
        %522 = vmatpush1.bf16.xpose.msra.mxu0 0
        %523 = vmatprep.subr.bf16.mxu0 0
        %524 = vmatpush1.bf16.xpose.msra.mxu0 0
        %525 = vmatprep.subr.bf16.mxu0 0
        %526 = vmatpush1.bf16.xpose.msra.mxu0 0
        %527 = vmatprep.subr.bf16.mxu0 0
        %528 = vmatpush1.bf16.xpose.msra.mxu0 0
        %529 = vmatprep.subr.bf16.mxu0 0
        %530 = vmatpush1.bf16.xpose.msra.mxu0 0
        %531 = vmatprep.subr.bf16.mxu0 0
        %532 = vmatpush1.bf16.xpose.msra.mxu0 0
        %533 = vmatprep.subr.bf16.mxu0 0
        %534 = vmatpush1.bf16.xpose.msra.mxu0 0
        %535 = vmatprep.subr.bf16.mxu0 0
        %536 = vmatpush1.bf16.xpose.msra.mxu0 0
        %537 = vmatprep.subr.bf16.mxu0 0
        %538 = vmatpush1.bf16.xpose.msra.mxu0 0
        %539 = vmatprep.subr.bf16.mxu0 0
        %540 = vmatpush1.bf16.xpose.msra.mxu0 0
        %541 = vmatprep.subr.bf16.mxu0 0
        %542 = vmatpush1.bf16.xpose.msra.mxu0 0
        %543 = vmatprep.mubr.bf16.mxu0 0
        %544 = vmatmul.mubr.bf16.gmra.mrb[0].mxu0 %v503
        %v545 = vpop.f32.mrb[0].mxu0
        %v546 = vadd.f32 0.0, %v545
        %v547 = vpop.f32.mrb[0].mxu0
        %v548 = vpop.f32.mrb[0].mxu0
        %v549 = vpop.f32.mrb[0].mxu0
        %550 = vdwg.mxu0
        %v551 = vmul.f32 %v375, 0.35355338
        %v552 = vmul.f32 %v432, 0.35355338
        %v553 = vmul.f32 %v489, 0.35355338
        %v554 = vmul.f32 %v546, 0.35355338
        %v555 = vld [vmem:[%s287] sm:$0xf]
        %v556 = vadd.f32 %v551, %v555
        %v557 = vadd.f32 %v552, %v555
        %v558 = vadd.f32 %v553, %v555
        %v559 = vadd.f32 %v554, %v555
        %vm560 = vcmask 134144
        %v561 = vsel %vm560, %v556, -inf
        %562 = vmax.xlane.f32.xlu0 %v561
        %v563 = vpop.xlane.xlu0 %562
        %v564 = vsel %vm560, %v557, -inf
        %565 = vmax.xlane.f32.xlu0 %v564
        %v566 = vpop.xlane.xlu0 %565
        %v567 = vsel %vm560, %v558, -inf
        %568 = vmax.xlane.f32.xlu0 %v567
        %v569 = vpop.xlane.xlu0 %568
        %v570 = vsel %vm560, %v559, -inf
        %571 = vmax.xlane.f32.xlu0 %v570
        %v572 = vpop.xlane.xlu0 %571
        %v573 = vsub.f32 %v556, %v563
        %v574 = vsub.f32 %v557, %v566
        %v575 = vsub.f32 %v558, %v569
        %v576 = vsub.f32 %v559, %v572
        %v577 = vmul.f32 %v573, 1.442695
        %v578 = vpow.pop %v577
        %v579 = vmul.f32 %v574, 1.442695
        %v580 = vpow.pop %v579
        %v581 = vmul.f32 %v575, 1.442695
        %v582 = vpow.pop %v581
        %v583 = vmul.f32 %v576, 1.442695
        %v584 = vpow.pop %v583
        %v585 = vsel %vm560, %v578, 0.0
        %586 = vadd.xlane.f32.xlu0 %v585
        %v587 = vpop.xlane.xlu0 %586
        %v588 = vsel %vm560, %v580, 0.0
        %589 = vadd.xlane.f32.xlu0 %v588
        %v590 = vpop.xlane.xlu0 %589
        %v591 = vsel %vm560, %v582, 0.0
        %592 = vadd.xlane.f32.xlu0 %v591
        %v593 = vpop.xlane.xlu0 %592
        %v594 = vsel %vm560, %v584, 0.0
        %595 = vadd.xlane.f32.xlu0 %v594
        %v596 = vpop.xlane.xlu0 %595
        %v597 = vrcp.pop %v587
        %v598 = vrcp.pop %v590
        %v599 = vrcp.pop %v593
        %v600 = vrcp.pop %v596
        %v601 = vmul.f32 %v578, %v597
        %v602 = vmul.f32 %v580, %v598
        %v603 = vmul.f32 %v582, %v599
        %v604 = vmul.f32 %v584, %v600
        %v605 = vsel %vm560, %v601, 0.0
        %v606 = vsel %vm560, %v602, 0.0
        %v607 = vadd.f32 %v605, %v606
        %v608 = vsel %vm560, %v603, 0.0
        %v609 = vadd.f32 %v607, %v608
        %v610 = vsel %vm560, %v604, 0.0
        %v611 = vadd.f32 %v609, %v610
        %v612 = vmul.f32 %v611, 0.25
        %613 = vst.msk [vmem:[%s268] sm:$0xf] %vm560, %v612
        %v614 = vpack.c.bf16 %v601, %v601
        %v615 = vpack.c.bf16 %v602, %v602
        %v616 = vpack.c.bf16 %v603, %v603
        %v617 = vpack.c.bf16 %v604, %v604
        %v621 = vunpack.c.l.b16 %v310
        %v622 = vunpack.c.l.b16 %v311
        %v623 = vunpack.c.l.b16 %v312
        %v624 = vpack.c.b16 %v622, %v621
        %v625 = vpack.c.b16 %v623, %v623
        %vm627 = vcmask 138240
        %v629 = vsel %vm627, %v614, 0
        %vm631 = vcmask 1040384
        %v632 = vsel 0, 4294967295, 65535
        %v633 = vsel %vm631, %v632, 0
        %v635 = vand.u32 %v625, %v633
        %637 = vmatprep.subr.bf16.mxu0 0
        %638 = vmatpush1.bf16.msra.mxu0 %v624
        %639 = vmatprep.subr.bf16.mxu0 0
        %640 = vmatpush1.bf16.msra.mxu0 %v635
        %641 = vmatprep.subr.bf16.mxu0 0
        %642 = vmatpush1.bf16.msra.mxu0 0
        %643 = vmatprep.subr.bf16.mxu0 0
        %644 = vmatpush1.bf16.msra.mxu0 0
        %645 = vmatprep.subr.bf16.mxu0 0
        %646 = vmatpush1.bf16.msra.mxu0 0
        %647 = vmatprep.subr.bf16.mxu0 0
        %648 = vmatpush1.bf16.msra.mxu0 0
        %649 = vmatprep.subr.bf16.mxu0 0
        %650 = vmatpush1.bf16.msra.mxu0 0
        %651 = vmatprep.subr.bf16.mxu0 0
        %652 = vmatpush1.bf16.msra.mxu0 0
        %653 = vmatprep.subr.bf16.mxu0 0
        %654 = vmatpush1.bf16.msra.mxu0 0
        %655 = vmatprep.subr.bf16.mxu0 0
        %656 = vmatpush1.bf16.msra.mxu0 0
        %657 = vmatprep.subr.bf16.mxu0 0
        %658 = vmatpush1.bf16.msra.mxu0 0
        %659 = vmatprep.subr.bf16.mxu0 0
        %660 = vmatpush1.bf16.msra.mxu0 0
        %661 = vmatprep.subr.bf16.mxu0 0
        %662 = vmatpush1.bf16.msra.mxu0 0
        %663 = vmatprep.subr.bf16.mxu0 0
        %664 = vmatpush1.bf16.msra.mxu0 0
        %665 = vmatprep.subr.bf16.mxu0 0
        %666 = vmatpush1.bf16.msra.mxu0 0
        %667 = vmatprep.subr.bf16.mxu0 0
        %668 = vmatpush1.bf16.msra.mxu0 0
        %669 = vmatprep.mubr.bf16.mxu0 0
        %670 = vmatmul.mubr.bf16.gmra.mrb[0].mxu0 %v629
        %v671 = vpop.f32.mrb[0].mxu0
        %v672 = vadd.f32 0.0, %v671
        %v673 = vpop.f32.mrb[0].mxu0
        %v674 = vpop.f32.mrb[0].mxu0
        %v675 = vpop.f32.mrb[0].mxu0
        %676 = vdwg.mxu0
        %v680 = vunpack.c.l.b16 %v313
        %v681 = vunpack.c.l.b16 %v314
        %v682 = vunpack.c.l.b16 %v315
        %v683 = vpack.c.b16 %v681, %v680
        %v684 = vpack.c.b16 %v682, %v682
        %v687 = vsel %vm627, %v615, 0
        %v690 = vand.u32 %v684, %v633
        %692 = vmatprep.subr.bf16.mxu0 0
        %693 = vmatpush1.bf16.msra.mxu0 %v683
        %694 = vmatprep.subr.bf16.mxu0 0
        %695 = vmatpush1.bf16.msra.mxu0 %v690
        %696 = vmatprep.subr.bf16.mxu0 0
        %697 = vmatpush1.bf16.msra.mxu0 0
        %698 = vmatprep.subr.bf16.mxu0 0
        %699 = vmatpush1.bf16.msra.mxu0 0
        %700 = vmatprep.subr.bf16.mxu0 0
        %701 = vmatpush1.bf16.msra.mxu0 0
        %702 = vmatprep.subr.bf16.mxu0 0
        %703 = vmatpush1.bf16.msra.mxu0 0
        %704 = vmatprep.subr.bf16.mxu0 0
        %705 = vmatpush1.bf16.msra.mxu0 0
        %706 = vmatprep.subr.bf16.mxu0 0
        %707 = vmatpush1.bf16.msra.mxu0 0
        %708 = vmatprep.subr.bf16.mxu0 0
        %709 = vmatpush1.bf16.msra.mxu0 0
        %710 = vmatprep.subr.bf16.mxu0 0
        %711 = vmatpush1.bf16.msra.mxu0 0
        %712 = vmatprep.subr.bf16.mxu0 0
        %713 = vmatpush1.bf16.msra.mxu0 0
        %714 = vmatprep.subr.bf16.mxu0 0
        %715 = vmatpush1.bf16.msra.mxu0 0
        %716 = vmatprep.subr.bf16.mxu0 0
        %717 = vmatpush1.bf16.msra.mxu0 0
        %718 = vmatprep.subr.bf16.mxu0 0
        %719 = vmatpush1.bf16.msra.mxu0 0
        %720 = vmatprep.subr.bf16.mxu0 0
        %721 = vmatpush1.bf16.msra.mxu0 0
        %722 = vmatprep.subr.bf16.mxu0 0
        %723 = vmatpush1.bf16.msra.mxu0 0
        %724 = vmatprep.mubr.bf16.mxu0 0
        %725 = vmatmul.mubr.bf16.gmra.mrb[0].mxu0 %v687
        %v726 = vpop.f32.mrb[0].mxu0
        %v727 = vadd.f32 0.0, %v726
        %v728 = vpop.f32.mrb[0].mxu0
        %v729 = vpop.f32.mrb[0].mxu0
        %v730 = vpop.f32.mrb[0].mxu0
        %731 = vdwg.mxu0
        %v735 = vunpack.c.l.b16 %v316
        %v736 = vunpack.c.l.b16 %v317
        %v737 = vunpack.c.l.b16 %v318
        %v738 = vpack.c.b16 %v736, %v735
        %v739 = vpack.c.b16 %v737, %v737
        %v742 = vsel %vm627, %v616, 0
        %v745 = vand.u32 %v739, %v633
        %747 = vmatprep.subr.bf16.mxu0 0
        %748 = vmatpush1.bf16.msra.mxu0 %v738
        %749 = vmatprep.subr.bf16.mxu0 0
        %750 = vmatpush1.bf16.msra.mxu0 %v745
        %751 = vmatprep.subr.bf16.mxu0 0
        %752 = vmatpush1.bf16.msra.mxu0 0
        %753 = vmatprep.subr.bf16.mxu0 0
        %754 = vmatpush1.bf16.msra.mxu0 0
        %755 = vmatprep.subr.bf16.mxu0 0
        %756 = vmatpush1.bf16.msra.mxu0 0
        %757 = vmatprep.subr.bf16.mxu0 0
        %758 = vmatpush1.bf16.msra.mxu0 0
        %759 = vmatprep.subr.bf16.mxu0 0
        %760 = vmatpush1.bf16.msra.mxu0 0
        %761 = vmatprep.subr.bf16.mxu0 0
        %762 = vmatpush1.bf16.msra.mxu0 0
        %763 = vmatprep.subr.bf16.mxu0 0
        %764 = vmatpush1.bf16.msra.mxu0 0
        %765 = vmatprep.subr.bf16.mxu0 0
        %766 = vmatpush1.bf16.msra.mxu0 0
        %767 = vmatprep.subr.bf16.mxu0 0
        %768 = vmatpush1.bf16.msra.mxu0 0
        %769 = vmatprep.subr.bf16.mxu0 0
        %770 = vmatpush1.bf16.msra.mxu0 0
        %771 = vmatprep.subr.bf16.mxu0 0
        %772 = vmatpush1.bf16.msra.mxu0 0
        %773 = vmatprep.subr.bf16.mxu0 0
        %774 = vmatpush1.bf16.msra.mxu0 0
        %775 = vmatprep.subr.bf16.mxu0 0
        %776 = vmatpush1.bf16.msra.mxu0 0
        %777 = vmatprep.subr.bf16.mxu0 0
        %778 = vmatpush1.bf16.msra.mxu0 0
        %779 = vmatprep.mubr.bf16.mxu0 0
        %780 = vmatmul.mubr.bf16.gmra.mrb[0].mxu0 %v742
        %v781 = vpop.f32.mrb[0].mxu0
        %v782 = vadd.f32 0.0, %v781
        %v783 = vpop.f32.mrb[0].mxu0
        %v784 = vpop.f32.mrb[0].mxu0
        %v785 = vpop.f32.mrb[0].mxu0
        %786 = vdwg.mxu0
        %v790 = vunpack.c.l.b16 %v319
        %v791 = vunpack.c.l.b16 %v320
        %v792 = vunpack.c.l.b16 %v321
        %v793 = vpack.c.b16 %v791, %v790
        %v794 = vpack.c.b16 %v792, %v792
        %v797 = vsel %vm627, %v617, 0
        %v800 = vand.u32 %v794, %v633
        %802 = vmatprep.subr.bf16.mxu0 0
        %803 = vmatpush1.bf16.msra.mxu0 %v793
        %804 = vmatprep.subr.bf16.mxu0 0
        %805 = vmatpush1.bf16.msra.mxu0 %v800
        %806 = vmatprep.subr.bf16.mxu0 0
        %807 = vmatpush1.bf16.msra.mxu0 0
        %808 = vmatprep.subr.bf16.mxu0 0
        %809 = vmatpush1.bf16.msra.mxu0 0
        %810 = vmatprep.subr.bf16.mxu0 0
        %811 = vmatpush1.bf16.msra.mxu0 0
        %812 = vmatprep.subr.bf16.mxu0 0
        %813 = vmatpush1.bf16.msra.mxu0 0
        %814 = vmatprep.subr.bf16.mxu0 0
        %815 = vmatpush1.bf16.msra.mxu0 0
        %816 = vmatprep.subr.bf16.mxu0 0
        %817 = vmatpush1.bf16.msra.mxu0 0
        %818 = vmatprep.subr.bf16.mxu0 0
        %819 = vmatpush1.bf16.msra.mxu0 0
        %820 = vmatprep.subr.bf16.mxu0 0
        %821 = vmatpush1.bf16.msra.mxu0 0
        %822 = vmatprep.subr.bf16.mxu0 0
        %823 = vmatpush1.bf16.msra.mxu0 0
        %824 = vmatprep.subr.bf16.mxu0 0
        %825 = vmatpush1.bf16.msra.mxu0 0
        %826 = vmatprep.subr.bf16.mxu0 0
        %827 = vmatpush1.bf16.msra.mxu0 0
        %828 = vmatprep.subr.bf16.mxu0 0
        %829 = vmatpush1.bf16.msra.mxu0 0
        %830 = vmatprep.subr.bf16.mxu0 0
        %831 = vmatpush1.bf16.msra.mxu0 0
        %832 = vmatprep.subr.bf16.mxu0 0
        %833 = vmatpush1.bf16.msra.mxu0 0
        %834 = vmatprep.mubr.bf16.mxu0 0
        %835 = vmatmul.mubr.bf16.gmra.mrb[0].mxu0 %v797
        %v836 = vpop.f32.mrb[0].mxu0
        %v837 = vadd.f32 0.0, %v836
        %v838 = vpop.f32.mrb[0].mxu0
        %v839 = vpop.f32.mrb[0].mxu0
        %v840 = vpop.f32.mrb[0].mxu0
        %841 = vdwg.mxu0
        %v842 = vpack.c.bf16 %v672, %v672
        %v843 = vpack.c.bf16 %v727, %v727
        %v844 = vpack.c.bf16 %v782, %v782
        %v845 = vpack.c.bf16 %v837, %v837
        %vm846 = vcmask 58368
        %847 = vst.msk [vmem:[%s292] sm:$0x3] %vm846, %v842
        %848 = vst.msk [vmem:[%s292 + $0x2] sm:$0x3] %vm846, %v843
        %849 = vst.msk [vmem:[%s292 + $0x4] sm:$0x3] %vm846, %v844
        %850 = vst.msk [vmem:[%s292 + $0x6] sm:$0x3] %vm846, %v845
        %p851 = scmp.lt.s32.totalorder %s20, 1
        %s852 = scalar_select %p851, %s20, 1
        %s853 = smul.addr %s852, 4
        %s854 = smul.addr %s853, 2
        %s855 = scalar_lea.vmem %s4, %s854
        %s856 = sand.u32 %s158, 1
        %s857 = scalar_lea.sflag [#allocation3], %s856
        %s858 = sand.u32 %s158, 1
        %s859 = smul.addr %s858, 4
        %s860 = scalar_lea.vmem [#allocation2], %s859
        // Predicated region
        $region37: #{hoi_residual_attention_block.13} parent=35 // pred_check
          %p861 = pneg %p142
        $region38: #{hoi_residual_attention_block.13} parent=35 // pred_check_branch
          %863 = sbr.rel (%p861) target = $region40
        $region39: #{hoi_residual_attention_block.13} parent=35 // pred_region
          _
        $region40: #{hoi_residual_attention_block.13} parent=35 // pred_fallthru
          _
        // Predicated region
        $region41: #{hoi_residual_attention_block.13} parent=35 // pred_check
          %p864 = pneg %p168
        $region42: #{hoi_residual_attention_block.13} parent=35 // pred_check_branch
          %866 = sbr.rel (%p864) target = $region44
        $region43: #{hoi_residual_attention_block.13} parent=35 // pred_region
          %s868 = ssub.s32 64, 64
          %869 = vsyncadd %s857, %s868
          %s870 = smul.addr %s20, 64
          %s871 = scalar_lea.hbm %s5, %s870
          %s873 = sshll.u32 %s860, 4
          %s874 = int_to_ptr.vmem [resolvable:$true] %s873
          %876 = dma.vmem_to_hbm [thread:$0]  %s874, 64, %s871, %s857
        $region44: #{hoi_residual_attention_block.13} parent=35 // pred_fallthru
          _
      $region36: #{hoi_residual_attention_block.13} parent=5 // pred_fallthru
        _
      %p877 = scmp.le.s32.totalorder 2, %s15
      // Predicated region
      $region45: #{hoi_residual_attention_block.13} parent=5 // pred_check
        %p878 = pneg %p877
      $region46: #{hoi_residual_attention_block.13} parent=5 // pred_check_branch
        %880 = sbr.rel (%p878) target = $region48
      $region47: #{hoi_residual_attention_block.13} parent=5 // pred_region
        %s881 = ssub.s32 %s15, 2
        // Predicated region
        $region49: #{hoi_residual_attention_block.13} parent=47 // pred_check
          %p882 = pneg %p148
        $region50: #{hoi_residual_attention_block.13} parent=47 // pred_check_branch
          %884 = sbr.rel (%p882) target = $region52
        $region51: #{hoi_residual_attention_block.13} parent=47 // pred_region
          %p885 = scmp.lt.s32.totalorder %s21, 1
          %s886 = scalar_select %p885, %s21, 1
          %s887 = smul.addr %s886, 4
          %s888 = smul.addr %s887, 2
          %s889 = scalar_lea.vmem %s4, %s888
        $region52: #{hoi_residual_attention_block.13} parent=47 // pred_fallthru
          _
        // Predicated region
        $region53: #{hoi_residual_attention_block.13} parent=47 // pred_check
          %p890 = pneg %p174
        $region54: #{hoi_residual_attention_block.13} parent=47 // pred_check_branch
          %892 = sbr.rel (%p890) target = $region56
        $region55: #{hoi_residual_attention_block.13} parent=47 // pred_region
          %s893 = sand.u32 %s159, 1
          %s894 = scalar_lea.sflag [#allocation3], %s893
          %s895 = sand.u32 %s159, 1
          %s896 = smul.addr %s895, 4
          %s897 = scalar_lea.vmem [#allocation2], %s896
          %898 = dma.done %s894, 64
        $region56: #{hoi_residual_attention_block.13} parent=47 // pred_fallthru
          _
      $region48: #{hoi_residual_attention_block.13} parent=5 // pred_fallthru
        _
    $region6: #{hoi_residual_attention_block.13} parent=1 // loop_footer
      %s19 = sadd.s32 1, %s15
    $region7: #{hoi_residual_attention_block.13} parent=1 // loop_footer_branch
      %14 = sbr.rel target = $region3
    $region8: #{hoi_residual_attention_block.13} parent=1 // loop_exit
      _
    %899 = vsyncpa [#allocation3], 1
    %s900 = scalar_lea.sflag [#allocation3], 1
    %901 = vsyncpa %s900, 1

// kernel: hoi_residual_attention_block.15
$region0: #{hoi_residual_attention_block.15}
  #allocation0 [shape = 'u32[]', space=smem, size = 0x4, offset = 0x4, fixed_abs, tag = 'smem constant byte address 0x4 - core index']
  #allocation1 [shape = 'u32[144,128]{1,0:T(1,128)}', space=vmem, size = 0x12000, scoped, tag = 'internal scratch']
  %s0 = inlined_call_operand.vmem [shape: f32[16,32], index: 0, kind: input, shape index: {}]
  %s1 = inlined_call_operand.vmem [shape: f32[1,32], index: 1, kind: input, shape index: {}]
  %s2 = inlined_call_operand.vmem [shape: f32[1,32], index: 2, kind: input, shape index: {}]
  %s3 = inlined_call_operand.vmem [shape: bf16[32,128], index: 3, kind: input, shape index: {}]
  %s4 = inlined_call_operand.vmem [shape: f32[1,128], index: 4, kind: input, shape index: {}]
  %s5 = inlined_call_operand.vmem [shape: bf16[128,32], index: 5, kind: input, shape index: {}]
  %s6 = inlined_call_operand.vmem [shape: f32[1,32], index: 6, kind: input, shape index: {}]
  %s7 = inlined_call_operand.vmem [shape: f32[16,32], index: 7, kind: output, shape index: {}]
  %s8 = sld [smem:[#allocation0]]
  $region38: #{hoi_residual_attention_block.15} parent=0
    _
  %s10 = ssub.s32 1, %s8
  %s11 = scalar_select 0, %s10, %s8
  // Predicated region
  $region2: #{hoi_residual_attention_block.15} parent=0 // pred_check
    _
  $region3: #{hoi_residual_attention_block.15} parent=0 // pred_check_branch
    %13 = sbr.rel (0) target = $region5
  $region4: #{hoi_residual_attention_block.15} parent=0 // pred_region
    _
  $region5: #{hoi_residual_attention_block.15} parent=0 // pred_fallthru
    _
  // Predicated region
  $region6: #{hoi_residual_attention_block.15} parent=0 // pred_check
    _
  $region7: #{hoi_residual_attention_block.15} parent=0 // pred_check_branch
    %15 = sbr.rel (0) target = $region9
  $region8: #{hoi_residual_attention_block.15} parent=0 // pred_region
    _
  $region9: #{hoi_residual_attention_block.15} parent=0 // pred_fallthru
    _
  // Predicated region
  $region10: #{hoi_residual_attention_block.15} parent=0 // pred_check
    _
  $region11: #{hoi_residual_attention_block.15} parent=0 // pred_check_branch
    %17 = sbr.rel (0) target = $region13
  $region12: #{hoi_residual_attention_block.15} parent=0 // pred_region
    _
  $region13: #{hoi_residual_attention_block.15} parent=0 // pred_fallthru
    _
  // Predicated region
  $region14: #{hoi_residual_attention_block.15} parent=0 // pred_check
    _
  $region15: #{hoi_residual_attention_block.15} parent=0 // pred_check_branch
    %19 = sbr.rel (0) target = $region17
  $region16: #{hoi_residual_attention_block.15} parent=0 // pred_region
    _
  $region17: #{hoi_residual_attention_block.15} parent=0 // pred_fallthru
    _
  // Predicated region
  $region18: #{hoi_residual_attention_block.15} parent=0 // pred_check
    _
  $region19: #{hoi_residual_attention_block.15} parent=0 // pred_check_branch
    %21 = sbr.rel (0) target = $region21
  $region20: #{hoi_residual_attention_block.15} parent=0 // pred_region
    _
  $region21: #{hoi_residual_attention_block.15} parent=0 // pred_fallthru
    _
  // Predicated region
  $region22: #{hoi_residual_attention_block.15} parent=0 // pred_check
    _
  $region23: #{hoi_residual_attention_block.15} parent=0 // pred_check_branch
    %23 = sbr.rel (0) target = $region25
  $region24: #{hoi_residual_attention_block.15} parent=0 // pred_region
    _
  $region25: #{hoi_residual_attention_block.15} parent=0 // pred_fallthru
    _
  // Predicated region
  $region26: #{hoi_residual_attention_block.15} parent=0 // pred_check
    _
  $region27: #{hoi_residual_attention_block.15} parent=0 // pred_check_branch
    %25 = sbr.rel (0) target = $region29
  $region28: #{hoi_residual_attention_block.15} parent=0 // pred_region
    _
  $region29: #{hoi_residual_attention_block.15} parent=0 // pred_fallthru
    _
  %v27 = vld [vmem:[%s0] sm:$0xff]
  %v28 = vld [vmem:[%s0 + $0x8] sm:$0xff]
  %vm29 = vcmask 261120
  %v30 = vsel %vm29, %v27, 0.0
  %31 = vadd.xlane.f32.xlu0 %v30
  %v32 = vpop.xlane.xlu0 %31
  %v33 = vsel %vm29, %v28, 0.0
  %34 = vadd.xlane.f32.xlu0 %v33
  %v35 = vpop.xlane.xlu0 %34
  %v36 = vrcp.pop 32.0
  %v37 = vmul.f32 %v32, %v36
  %v38 = vmul.f32 %v35, %v36
  %v39 = vsub.f32 %v27, %v37
  %v40 = vsub.f32 %v28, %v38
  %v41 = vmul.f32 %v39, %v39
  %v42 = vmul.f32 %v40, %v40
  %v43 = vsel %vm29, %v41, 0.0
  %44 = vadd.xlane.f32.xlu0 %v43
  %v45 = vpop.xlane.xlu0 %44
  %v46 = vsel %vm29, %v42, 0.0
  %47 = vadd.xlane.f32.xlu0 %v46
  %v48 = vpop.xlane.xlu0 %47
  %v49 = vmul.f32 %v45, %v36
  %v50 = vmul.f32 %v48, %v36
  %v51 = vadd.f32 %v49, 1e-05
  %v52 = vadd.f32 %v50, 1e-05
  %v53 = vrsqrt.pop %v51
  %v54 = vrsqrt.pop %v52
  %v55 = vmul.f32 %v39, %v53
  %v56 = vmul.f32 %v40, %v54
  %v57 = vld [vmem:[%s1] sm:$0x1]
  %v59 = vlaneseq
  %v60 = vshrl.u32 %v59, 7
  %v61 = vsub.s32 0, %v60
  %v62 = vrot.slane %v57, %v61
  %v64 = vmul.f32 %v55, %v62
  %v65 = vmul.f32 %v56, %v62
  %v66 = vld [vmem:[%s2] sm:$0x1]
  %v68 = vlaneseq
  %v69 = vshrl.u32 %v68, 7
  %v70 = vsub.s32 0, %v69
  %v71 = vrot.slane %v66, %v70
  %v73 = vadd.f32 %v64, %v71
  %v74 = vadd.f32 %v65, %v71
  %v75 = vpack.c.bf16 %v74, %v73
  %v76 = vld [vmem:[%s3] sm:$0xf]
  %v77 = vld [vmem:[%s3 + $0x4] sm:$0xf]
  %v78 = vld [vmem:[%s3 + $0x8] sm:$0xf]
  %v79 = vld [vmem:[%s3 + $0xc] sm:$0xf]
  %v80 = vld [vmem:[%s4] sm:$0x1]
  %v82 = vlaneseq
  %v83 = vshrl.u32 %v82, 7
  %v84 = vsub.s32 0, %v83
  %v85 = vrot.slane %v80, %v84
  %v91 = vunpack.c.l.b16 %v76
  %v92 = vunpack.c.l.b16 %v77
  %v93 = vunpack.c.l.b16 %v78
  %v94 = vunpack.c.l.b16 %v79
  %v95 = vpack.c.b16 %v92, %v91
  %v96 = vpack.c.b16 %v94, %v93
  %v100 = vsel %vm29, %v75, 0
  %102 = vmatprep.subr.bf16.mxu0 0
  %103 = vmatpush1.bf16.msra.mxu0 %v95
  %104 = vmatprep.subr.bf16.mxu0 0
  %105 = vmatpush1.bf16.msra.mxu0 %v96
  %106 = vmatprep.subr.bf16.mxu0 0
  %107 = vmatpush1.bf16.msra.mxu0 0
  %108 = vmatprep.subr.bf16.mxu0 0
  %109 = vmatpush1.bf16.msra.mxu0 0
  %110 = vmatprep.subr.bf16.mxu0 0
  %111 = vmatpush1.bf16.msra.mxu0 0
  %112 = vmatprep.subr.bf16.mxu0 0
  %113 = vmatpush1.bf16.msra.mxu0 0
  %114 = vmatprep.subr.bf16.mxu0 0
  %115 = vmatpush1.bf16.msra.mxu0 0
  %116 = vmatprep.subr.bf16.mxu0 0
  %117 = vmatpush1.bf16.msra.mxu0 0
  %118 = vmatprep.subr.bf16.mxu0 0
  %119 = vmatpush1.bf16.msra.mxu0 0
  %120 = vmatprep.subr.bf16.mxu0 0
  %121 = vmatpush1.bf16.msra.mxu0 0
  %122 = vmatprep.subr.bf16.mxu0 0
  %123 = vmatpush1.bf16.msra.mxu0 0
  %124 = vmatprep.subr.bf16.mxu0 0
  %125 = vmatpush1.bf16.msra.mxu0 0
  %126 = vmatprep.subr.bf16.mxu0 0
  %127 = vmatpush1.bf16.msra.mxu0 0
  %128 = vmatprep.subr.bf16.mxu0 0
  %129 = vmatpush1.bf16.msra.mxu0 0
  %130 = vmatprep.subr.bf16.mxu0 0
  %131 = vmatpush1.bf16.msra.mxu0 0
  %132 = vmatprep.subr.bf16.mxu0 0
  %133 = vmatpush1.bf16.msra.mxu0 0
  %134 = vmatprep.mubr.bf16.mxu0 0
  %135 = vmatmul.mubr.bf16.gmra.mrb[0].mxu0 %v100
  %v136 = vpop.f32.mrb[0].mxu0
  %v137 = vadd.f32 %v85, %v136
  %v138 = vpop.f32.mrb[0].mxu0
  %v139 = vpop.f32.mrb[0].mxu0
  %v140 = vadd.f32 %v85, %v139
  %v141 = vpop.f32.mrb[0].mxu0
  %142 = vdwg.mxu0
  %v143 = vmul.f32 %v137, 1.702
  %v144 = vmul.f32 %v140, 1.702
  %v145 = vxor.u32 %v143, 2147483648
  %v146 = vxor.u32 %v144, 2147483648
  %v147 = vmul.f32 %v145, 1.442695
  %v148 = vpow.pop %v147
  %v149 = vmul.f32 %v146, 1.442695
  %v150 = vpow.pop %v149
  %v151 = vadd.f32 %v148, 1.0
  %v152 = vadd.f32 %v150, 1.0
  %v153 = vrcp.pop %v151
  %v154 = vmul.f32 1.0, %v153
  %v155 = vrcp.pop %v152
  %v156 = vmul.f32 1.0, %v155
  %v157 = vmul.f32 %v137, %v154
  %v158 = vmul.f32 %v140, %v156
  %v159 = vpack.c.bf16 %v158, %v157
  %v160 = vld [vmem:[%s5] sm:$0xf]
  %v161 = vld [vmem:[%s5 + $0x4] sm:$0xf]
  %v162 = vld [vmem:[%s5 + $0x8] sm:$0xf]
  %v163 = vld [vmem:[%s5 + $0xc] sm:$0xf]
  %v164 = vld [vmem:[%s5 + $0x10] sm:$0xf]
  %v165 = vld [vmem:[%s5 + $0x14] sm:$0xf]
  %v166 = vld [vmem:[%s5 + $0x18] sm:$0xf]
  %v167 = vld [vmem:[%s5 + $0x1c] sm:$0xf]
  %v168 = vld [vmem:[%s5 + $0x20] sm:$0xf]
  %v169 = vld [vmem:[%s5 + $0x24] sm:$0xf]
  %v170 = vld [vmem:[%s5 + $0x28] sm:$0xf]
  %v171 = vld [vmem:[%s5 + $0x2c] sm:$0xf]
  %v172 = vld [vmem:[%s5 + $0x30] sm:$0xf]
  %v173 = vld [vmem:[%s5 + $0x34] sm:$0xf]
  %v174 = vld [vmem:[%s5 + $0x38] sm:$0xf]
  %v175 = vld [vmem:[%s5 + $0x3c] sm:$0xf]
  %v176 = vld [vmem:[%s6] sm:$0x1]
  %v178 = vlaneseq
  %v179 = vshrl.u32 %v178, 7
  %v180 = vsub.s32 0, %v179
  %v181 = vrot.slane %v176, %v180
  %v199 = vunpack.c.l.b16 %v160
  %v200 = vunpack.c.l.b16 %v161
  %v201 = vunpack.c.l.b16 %v162
  %v202 = vunpack.c.l.b16 %v163
  %v203 = vunpack.c.l.b16 %v164
  %v204 = vunpack.c.l.b16 %v165
  %v205 = vunpack.c.l.b16 %v166
  %v206 = vunpack.c.l.b16 %v167
  %v207 = vunpack.c.l.b16 %v168
  %v208 = vunpack.c.l.b16 %v169
  %v209 = vunpack.c.l.b16 %v170
  %v210 = vunpack.c.l.b16 %v171
  %v211 = vunpack.c.l.b16 %v172
  %v212 = vunpack.c.l.b16 %v173
  %v213 = vunpack.c.l.b16 %v174
  %v214 = vunpack.c.l.b16 %v175
  %v215 = vpack.c.b16 %v200, %v199
  %v216 = vpack.c.b16 %v202, %v201
  %v217 = vpack.c.b16 %v204, %v203
  %v218 = vpack.c.b16 %v206, %v205
  %v219 = vpack.c.b16 %v208, %v207
  %v220 = vpack.c.b16 %v210, %v209
  %v221 = vpack.c.b16 %v212, %v211
  %v222 = vpack.c.b16 %v214, %v213
  %231 = vmatprep.subr.bf16.mxu0 0
  %232 = vmatpush1.bf16.msra.mxu0 %v215
  %233 = vmatprep.subr.bf16.mxu0 0
  %234 = vmatpush1.bf16.msra.mxu0 %v216
  %235 = vmatprep.subr.bf16.mxu0 0
  %236 = vmatpush1.bf16.msra.mxu0 %v217
  %237 = vmatprep.subr.bf16.mxu0 0
  %238 = vmatpush1.bf16.msra.mxu0 %v218
  %239 = vmatprep.subr.bf16.mxu0 0
  %240 = vmatpush1.bf16.msra.mxu0 %v219
  %241 = vmatprep.subr.bf16.mxu0 0
  %242 = vmatpush1.bf16.msra.mxu0 %v220
  %243 = vmatprep.subr.bf16.mxu0 0
  %244 = vmatpush1.bf16.msra.mxu0 %v221
  %245 = vmatprep.subr.bf16.mxu0 0
  %246 = vmatpush1.bf16.msra.mxu0 %v222
  %247 = vmatprep.subr.bf16.mxu0 0
  %248 = vmatpush1.bf16.msra.mxu0 0
  %249 = vmatprep.subr.bf16.mxu0 0
  %250 = vmatpush1.bf16.msra.mxu0 0
  %251 = vmatprep.subr.bf16.mxu0 0
  %252 = vmatpush1.bf16.msra.mxu0 0
  %253 = vmatprep.subr.bf16.mxu0 0
  %254 = vmatpush1.bf16.msra.mxu0 0
  %255 = vmatprep.subr.bf16.mxu0 0
  %256 = vmatpush1.bf16.msra.mxu0 0
  %257 = vmatprep.subr.bf16.mxu0 0
  %258 = vmatpush1.bf16.msra.mxu0 0
  %259 = vmatprep.subr.bf16.mxu0 0
  %260 = vmatpush1.bf16.msra.mxu0 0
  %261 = vmatprep.subr.bf16.mxu0 0
  %262 = vmatpush1.bf16.msra.mxu0 0
  %263 = vmatprep.mubr.bf16.mxu0 0
  %264 = vmatmul.mubr.bf16.gmra.mrb[0].mxu0 %v159
  %v265 = vpop.f32.mrb[0].mxu0
  %v266 = vadd.f32 %v181, %v265
  %v267 = vpop.f32.mrb[0].mxu0
  %v268 = vpop.f32.mrb[0].mxu0
  %v269 = vadd.f32 %v181, %v268
  %v270 = vpop.f32.mrb[0].mxu0
  %271 = vdwg.mxu0
  %v272 = vadd.f32 %v27, %v266
  %v273 = vadd.f32 %v28, %v269
  %274 = vst.msk [vmem:[%s7] sm:$0xff] %vm29, %v272
  %275 = vst.msk [vmem:[%s7 + $0x8] sm:$0xff] %vm29, %v273
  // Predicated region
  $region30: #{hoi_residual_attention_block.15} parent=0 // pred_check
    _
  $region31: #{hoi_residual_attention_block.15} parent=0 // pred_check_branch
    %277 = sbr.rel (0) target = $region33
  $region32: #{hoi_residual_attention_block.15} parent=0 // pred_region
    _
  $region33: #{hoi_residual_attention_block.15} parent=0 // pred_fallthru
    _
  // Predicated region
  $region34: #{hoi_residual_attention_block.15} parent=0 // pred_check
    _
  $region35: #{hoi_residual_attention_block.15} parent=0 // pred_check_branch
    %279 = sbr.rel (0) target = $region37
  $region36: #{hoi_residual_attention_block.15} parent=0 // pred_region
    _
  $region37: #{hoi_residual_attention_block.15} parent=0 // pred_fallthru
    _

// kernel: hoi_residual_attention_block.19
$region0: #{hoi_residual_attention_block.19}
  #allocation0 [shape = 'u32[]', space=smem, size = 0x4, offset = 0x4, fixed_abs, tag = 'smem constant byte address 0x4 - core index']
  #allocation1 [shape = 'u32[144,128]{1,0:T(1,128)}', space=vmem, size = 0x12000, scoped, tag = 'internal scratch']
  %s0 = inlined_call_operand.vmem [shape: f32[16,32], index: 0, kind: input, shape index: {}]
  %s1 = inlined_call_operand.vmem [shape: f32[1,32], index: 1, kind: input, shape index: {}]
  %s2 = inlined_call_operand.vmem [shape: f32[1,32], index: 2, kind: input, shape index: {}]
  %s3 = inlined_call_operand.vmem [shape: bf16[32,96], index: 3, kind: input, shape index: {}]
  %s4 = inlined_call_operand.vmem [shape: f32[1,96], index: 4, kind: input, shape index: {}]
  %s5 = inlined_call_operand.vmem [shape: bf16[16,96], index: 5, kind: output, shape index: {}]
  %s6 = sld [smem:[#allocation0]]
  $region30: #{hoi_residual_attention_block.19} parent=0
    _
  %s8 = ssub.s32 1, %s6
  %s9 = scalar_select 0, %s8, %s6
  // Predicated region
  $region2: #{hoi_residual_attention_block.19} parent=0 // pred_check
    _
  $region3: #{hoi_residual_attention_block.19} parent=0 // pred_check_branch
    %11 = sbr.rel (0) target = $region5
  $region4: #{hoi_residual_attention_block.19} parent=0 // pred_region
    _
  $region5: #{hoi_residual_attention_block.19} parent=0 // pred_fallthru
    _
  // Predicated region
  $region6: #{hoi_residual_attention_block.19} parent=0 // pred_check
    _
  $region7: #{hoi_residual_attention_block.19} parent=0 // pred_check_branch
    %13 = sbr.rel (0) target = $region9
  $region8: #{hoi_residual_attention_block.19} parent=0 // pred_region
    _
  $region9: #{hoi_residual_attention_block.19} parent=0 // pred_fallthru
    _
  // Predicated region
  $region10: #{hoi_residual_attention_block.19} parent=0 // pred_check
    _
  $region11: #{hoi_residual_attention_block.19} parent=0 // pred_check_branch
    %15 = sbr.rel (0) target = $region13
  $region12: #{hoi_residual_attention_block.19} parent=0 // pred_region
    _
  $region13: #{hoi_residual_attention_block.19} parent=0 // pred_fallthru
    _
  // Predicated region
  $region14: #{hoi_residual_attention_block.19} parent=0 // pred_check
    _
  $region15: #{hoi_residual_attention_block.19} parent=0 // pred_check_branch
    %17 = sbr.rel (0) target = $region17
  $region16: #{hoi_residual_attention_block.19} parent=0 // pred_region
    _
  $region17: #{hoi_residual_attention_block.19} parent=0 // pred_fallthru
    _
  // Predicated region
  $region18: #{hoi_residual_attention_block.19} parent=0 // pred_check
    _
  $region19: #{hoi_residual_attention_block.19} parent=0 // pred_check_branch
    %19 = sbr.rel (0) target = $region21
  $region20: #{hoi_residual_attention_block.19} parent=0 // pred_region
    _
  $region21: #{hoi_residual_attention_block.19} parent=0 // pred_fallthru
    _
  %v21 = vld [vmem:[%s0] sm:$0xff]
  %v22 = vld [vmem:[%s0 + $0x8] sm:$0xff]
  %vm23 = vcmask 261120
  %v24 = vsel %vm23, %v21, 0.0
  %25 = vadd.xlane.f32.xlu0 %v24
  %v26 = vpop.xlane.xlu0 %25
  %v27 = vsel %vm23, %v22, 0.0
  %28 = vadd.xlane.f32.xlu0 %v27
  %v29 = vpop.xlane.xlu0 %28
  %v30 = vrcp.pop 32.0
  %v31 = vmul.f32 %v26, %v30
  %v32 = vmul.f32 %v29, %v30
  %v33 = vsub.f32 %v21, %v31
  %v34 = vsub.f32 %v22, %v32
  %v35 = vmul.f32 %v33, %v33
  %v36 = vmul.f32 %v34, %v34
  %v37 = vsel %vm23, %v35, 0.0
  %38 = vadd.xlane.f32.xlu0 %v37
  %v39 = vpop.xlane.xlu0 %38
  %v40 = vsel %vm23, %v36, 0.0
  %41 = vadd.xlane.f32.xlu0 %v40
  %v42 = vpop.xlane.xlu0 %41
  %v43 = vmul.f32 %v39, %v30
  %v44 = vmul.f32 %v42, %v30
  %v45 = vadd.f32 %v43, 1e-05
  %v46 = vadd.f32 %v44, 1e-05
  %v47 = vrsqrt.pop %v45
  %v48 = vrsqrt.pop %v46
  %v49 = vmul.f32 %v33, %v47
  %v50 = vmul.f32 %v34, %v48
  %v51 = vld [vmem:[%s1] sm:$0x1]
  %v53 = vlaneseq
  %v54 = vshrl.u32 %v53, 7
  %v55 = vsub.s32 0, %v54
  %v56 = vrot.slane %v51, %v55
  %v58 = vmul.f32 %v49, %v56
  %v59 = vmul.f32 %v50, %v56
  %v60 = vld [vmem:[%s2] sm:$0x1]
  %v62 = vlaneseq
  %v63 = vshrl.u32 %v62, 7
  %v64 = vsub.s32 0, %v63
  %v65 = vrot.slane %v60, %v64
  %v67 = vadd.f32 %v58, %v65
  %v68 = vadd.f32 %v59, %v65
  %v69 = vpack.c.bf16 %v68, %v67
  %v70 = vld [vmem:[%s3] sm:$0xf]
  %v71 = vld [vmem:[%s3 + $0x4] sm:$0xf]
  %v72 = vld [vmem:[%s3 + $0x8] sm:$0xf]
  %v73 = vld [vmem:[%s3 + $0xc] sm:$0xf]
  %v74 = vld [vmem:[%s4] sm:$0x1]
  %v76 = vlaneseq
  %v77 = vshrl.u32 %v76, 7
  %v78 = vsub.s32 0, %v77
  %v79 = vrot.slane %v74, %v78
  %v85 = vunpack.c.l.b16 %v70
  %v86 = vunpack.c.l.b16 %v71
  %v87 = vunpack.c.l.b16 %v72
  %v88 = vunpack.c.l.b16 %v73
  %v89 = vpack.c.b16 %v86, %v85
  %v90 = vpack.c.b16 %v88, %v87
  %v94 = vsel %vm23, %v69, 0
  %96 = vmatprep.subr.bf16.mxu0 0
  %97 = vmatpush1.bf16.msra.mxu0 %v89
  %98 = vmatprep.subr.bf16.mxu0 0
  %99 = vmatpush1.bf16.msra.mxu0 %v90
  %100 = vmatprep.subr.bf16.mxu0 0
  %101 = vmatpush1.bf16.msra.mxu0 0
  %102 = vmatprep.subr.bf16.mxu0 0
  %103 = vmatpush1.bf16.msra.mxu0 0
  %104 = vmatprep.subr.bf16.mxu0 0
  %105 = vmatpush1.bf16.msra.mxu0 0
  %106 = vmatprep.subr.bf16.mxu0 0
  %107 = vmatpush1.bf16.msra.mxu0 0
  %108 = vmatprep.subr.bf16.mxu0 0
  %109 = vmatpush1.bf16.msra.mxu0 0
  %110 = vmatprep.subr.bf16.mxu0 0
  %111 = vmatpush1.bf16.msra.mxu0 0
  %112 = vmatprep.subr.bf16.mxu0 0
  %113 = vmatpush1.bf16.msra.mxu0 0
  %114 = vmatprep.subr.bf16.mxu0 0
  %115 = vmatpush1.bf16.msra.mxu0 0
  %116 = vmatprep.subr.bf16.mxu0 0
  %117 = vmatpush1.bf16.msra.mxu0 0
  %118 = vmatprep.subr.bf16.mxu0 0
  %119 = vmatpush1.bf16.msra.mxu0 0
  %120 = vmatprep.subr.bf16.mxu0 0
  %121 = vmatpush1.bf16.msra.mxu0 0
  %122 = vmatprep.subr.bf16.mxu0 0
  %123 = vmatpush1.bf16.msra.mxu0 0
  %124 = vmatprep.subr.bf16.mxu0 0
  %125 = vmatpush1.bf16.msra.mxu0 0
  %126 = vmatprep.subr.bf16.mxu0 0
  %127 = vmatpush1.bf16.msra.mxu0 0
  %128 = vmatprep.mubr.bf16.mxu0 0
  %129 = vmatmul.mubr.bf16.gmra.mrb[0].mxu0 %v94
  %v130 = vpop.f32.mrb[0].mxu0
  %v131 = vadd.f32 %v79, %v130
  %v132 = vpop.f32.mrb[0].mxu0
  %v133 = vpop.f32.mrb[0].mxu0
  %v134 = vadd.f32 %v79, %v133
  %v135 = vpop.f32.mrb[0].mxu0
  %136 = vdwg.mxu0
  %v137 = vpack.c.bf16 %v134, %v131
  %v139 = vunpack.c.l.b16 %v137
  %v140 = vunpack.c.h.b16 %v137
  %v141 = vpack.c.b16 %v139, %v139
  %v142 = vpack.c.b16 %v140, %v140
  %vm145 = vcmask 781312
  %146 = vst.msk [vmem:[%s5] sm:$0xf] %vm145, %v141
  %147 = vst.msk [vmem:[%s5 + $0x4] sm:$0xf] %vm145, %v142
  // Predicated region
  $region22: #{hoi_residual_attention_block.19} parent=0 // pred_check
    _
  $region23: #{hoi_residual_attention_block.19} parent=0 // pred_check_branch
    %149 = sbr.rel (0) target = $region25
  $region24: #{hoi_residual_attention_block.19} parent=0 // pred_region
    _
  $region25: #{hoi_residual_attention_block.19} parent=0 // pred_fallthru
    _
  // Predicated region
  $region26: #{hoi_residual_attention_block.19} parent=0 // pred_check
    _
  $region27: #{hoi_residual_attention_block.19} parent=0 // pred_check_branch
    %151 = sbr.rel (0) target = $region29
  $region28: #{hoi_residual_attention_block.19} parent=0 // pred_region
    _
  $region29: #{hoi_residual_attention_block.19} parent=0 // pred_fallthru
    _

// kernel: hoi_residual_attention_block.20
$region0: #{hoi_residual_attention_block.20}
  #allocation0 [shape = 'u32[]', space=smem, size = 0x4, offset = 0x4, fixed_abs, tag = 'smem constant byte address 0x4 - core index']
  #allocation1 [shape = 'u32[144,128]{1,0:T(1,128)}', space=vmem, size = 0x12000, scoped, tag = 'internal scratch']
  %s0 = inlined_call_operand.vmem [shape: bf16[2,4,5,8], index: 0, kind: input, shape index: {}]
  %s1 = inlined_call_operand.vmem [shape: bf16[2,4,5,8], index: 1, kind: input, shape index: {}]
  %s2 = inlined_call_operand.vmem [shape: bf16[2,4,5,8], index: 2, kind: input, shape index: {}]
  %s3 = inlined_call_operand.vmem [shape: f32[2,5,5], index: 3, kind: input, shape index: {}]
  %s4 = inlined_call_operand.vmem [shape: bf16[2,4,5,8], index: 4, kind: output, shape index: {}]
  %s5 = sld [smem:[#allocation0]]
  $region49: #{hoi_residual_attention_block.20} parent=0
    _
  %s7 = ssub.s32 1, %s5
  %s8 = scalar_select 0, %s7, %s5
  loop: start=0, step=1, limit=4
  $region2: #{hoi_residual_attention_block.20} parent=0 // loop_pre_header
    _
  $region3: #{hoi_residual_attention_block.20} parent=0 // loop_header
    %s10 = sphi 0, %s14
    %p11 = scmp.ge.s32.totalorder %s10, 4
    %s20 = sphi 0, %s22
    %s23 = sphi 0, %s20
    %s24 = sphi 0, %s23
    %s40 = sphi 0, %s24
    %s46 = sphi 0, %s48
    %s49 = sphi 0, %s46
    %s50 = sphi 0, %s49
    %s66 = sphi 0, %s50
    %s72 = sphi 0, %s74
    %s75 = sphi 0, %s72
    %s76 = sphi 0, %s75
    %s92 = sphi 0, %s76
    %s98 = sphi 0, %s100
    %s101 = sphi 0, %s98
    %s102 = sphi 0, %s101
    %s118 = sphi 0, %s102
    %s124 = sphi 0, %s126
    %s127 = sphi 0, %s124
    %s128 = sphi 0, %s127
    %s144 = sphi 0, %s128
  $region4: #{hoi_residual_attention_block.20} parent=0 // loop_header_branch
    %13 = sbr.rel (%p11) target = $region8
  $region5: #{hoi_residual_attention_block.20} parent=0 // loop_body
    %s15 = ssub.s32 %s10, 1
    %s16 = ssub.s32 %s10, 2
    %s17 = sadd.s32 %s10, 1
    %s18 = ssub.s32 %s10, %s17
    %p19 = scmp.eq.s32.totalorder %s18, 0
    %s21 = sadd.s32 %s20, 1
    %s22 = scalar_select %p19, %s20, %s21
    %p25 = pneg %p19
    %p26 = scmp.eq.s32.totalorder %s10, 1
    %p27 = por %p25, %p26
    %p28 = scmp.ne.s32.totalorder %s20, %s23
    %p29 = scmp.eq.s32.totalorder %s10, 0
    %p30 = por %p28, %p29
    %p31 = scmp.ne.s32.totalorder %s20, %s23
    %p32 = scmp.eq.s32.totalorder %s15, 1
    %p33 = por %p31, %p32
    %p34 = scmp.ne.s32.totalorder %s23, %s24
    %p35 = scmp.eq.s32.totalorder %s15, 0
    %p36 = por %p34, %p35
    %p37 = scmp.ne.s32.totalorder %s23, %s24
    %p38 = scmp.eq.s32.totalorder %s16, 1
    %p39 = por %p37, %p38
    %p41 = scmp.ne.s32.totalorder %s24, %s40
    %p42 = scmp.eq.s32.totalorder %s16, 0
    %p43 = por %p41, %p42
    %s44 = ssub.s32 %s10, %s17
    %p45 = scmp.eq.s32.totalorder %s44, 0
    %s47 = sadd.s32 %s46, 1
    %s48 = scalar_select %p45, %s46, %s47
    %p51 = pneg %p45
    %p52 = scmp.eq.s32.totalorder %s10, 1
    %p53 = por %p51, %p52
    %p54 = scmp.ne.s32.totalorder %s46, %s49
    %p55 = scmp.eq.s32.totalorder %s10, 0
    %p56 = por %p54, %p55
    %p57 = scmp.ne.s32.totalorder %s46, %s49
    %p58 = scmp.eq.s32.totalorder %s15, 1
    %p59 = por %p57, %p58
    %p60 = scmp.ne.s32.totalorder %s49, %s50
    %p61 = scmp.eq.s32.totalorder %s15, 0
    %p62 = por %p60, %p61
    %p63 = scmp.ne.s32.totalorder %s49, %s50
    %p64 = scmp.eq.s32.totalorder %s16, 1
    %p65 = por %p63, %p64
    %p67 = scmp.ne.s32.totalorder %s50, %s66
    %p68 = scmp.eq.s32.totalorder %s16, 0
    %p69 = por %p67, %p68
    %s70 = ssub.s32 %s10, %s17
    %p71 = scmp.eq.s32.totalorder %s70, 0
    %s73 = sadd.s32 %s72, 1
    %s74 = scalar_select %p71, %s72, %s73
    %p77 = pneg %p71
    %p78 = scmp.eq.s32.totalorder %s10, 1
    %p79 = por %p77, %p78
    %p80 = scmp.ne.s32.totalorder %s72, %s75
    %p81 = scmp.eq.s32.totalorder %s10, 0
    %p82 = por %p80, %p81
    %p83 = scmp.ne.s32.totalorder %s72, %s75
    %p84 = scmp.eq.s32.totalorder %s15, 1
    %p85 = por %p83, %p84
    %p86 = scmp.ne.s32.totalorder %s75, %s76
    %p87 = scmp.eq.s32.totalorder %s15, 0
    %p88 = por %p86, %p87
    %p89 = scmp.ne.s32.totalorder %s75, %s76
    %p90 = scmp.eq.s32.totalorder %s16, 1
    %p91 = por %p89, %p90
    %p93 = scmp.ne.s32.totalorder %s76, %s92
    %p94 = scmp.eq.s32.totalorder %s16, 0
    %p95 = por %p93, %p94
    %s96 = ssub.s32 %s10, %s17
    %p97 = scmp.eq.s32.totalorder %s96, 0
    %s99 = sadd.s32 %s98, 1
    %s100 = scalar_select %p97, %s98, %s99
    %p103 = pneg %p97
    %p104 = scmp.eq.s32.totalorder %s10, 1
    %p105 = por %p103, %p104
    %p106 = scmp.ne.s32.totalorder %s98, %s101
    %p107 = scmp.eq.s32.totalorder %s10, 0
    %p108 = por %p106, %p107
    %p109 = scmp.ne.s32.totalorder %s98, %s101
    %p110 = scmp.eq.s32.totalorder %s15, 1
    %p111 = por %p109, %p110
    %p112 = scmp.ne.s32.totalorder %s101, %s102
    %p113 = scmp.eq.s32.totalorder %s15, 0
    %p114 = por %p112, %p113
    %p115 = scmp.ne.s32.totalorder %s101, %s102
    %p116 = scmp.eq.s32.totalorder %s16, 1
    %p117 = por %p115, %p116
    %p119 = scmp.ne.s32.totalorder %s102, %s118
    %p120 = scmp.eq.s32.totalorder %s16, 0
    %p121 = por %p119, %p120
    %s122 = ssub.s32 %s10, %s17
    %p123 = scmp.eq.s32.totalorder %s122, 0
    %s125 = sadd.s32 %s124, 1
    %s126 = scalar_select %p123, %s124, %s125
    %p129 = pneg %p123
    %p130 = scmp.eq.s32.totalorder %s10, 1
    %p131 = por %p129, %p130
    %p132 = scmp.ne.s32.totalorder %s124, %s127
    %p133 = scmp.eq.s32.totalorder %s10, 0
    %p134 = por %p132, %p133
    %p135 = scmp.ne.s32.totalorder %s124, %s127
    %p136 = scmp.eq.s32.totalorder %s15, 1
    %p137 = por %p135, %p136
    %p138 = scmp.ne.s32.totalorder %s127, %s128
    %p139 = scmp.eq.s32.totalorder %s15, 0
    %p140 = por %p138, %p139
    %p141 = scmp.ne.s32.totalorder %s127, %s128
    %p142 = scmp.eq.s32.totalorder %s16, 1
    %p143 = por %p141, %p142
    %p145 = scmp.ne.s32.totalorder %s128, %s144
    %p146 = scmp.eq.s32.totalorder %s16, 0
    %p147 = por %p145, %p146
    %p148 = scmp.le.s32.totalorder 1, %s10
    %p149 = scmp.lt.s32.totalorder %s10, 3
    %p150 = pnand %p148, %p149
    %p151 = pneg %p150
    // Predicated region
    $region9: #{hoi_residual_attention_block.20} parent=5 // pred_check
      _
    $region10: #{hoi_residual_attention_block.20} parent=5 // pred_check_branch
      %153 = sbr.rel (%p150) target = $region12
    $region11: #{hoi_residual_attention_block.20} parent=5 // pred_region
      %s154 = ssub.s32 %s10, 1
    $region12: #{hoi_residual_attention_block.20} parent=5 // pred_fallthru
      _
    %p155 = scmp.lt.s32.totalorder %s10, 2
    // Predicated region
    $region13: #{hoi_residual_attention_block.20} parent=5 // pred_check
      %p156 = pneg %p155
    $region14: #{hoi_residual_attention_block.20} parent=5 // pred_check_branch
      %158 = sbr.rel (%p156) target = $region16
    $region15: #{hoi_residual_attention_block.20} parent=5 // pred_region
      // Predicated region
      $region17: #{hoi_residual_attention_block.20} parent=15 // pred_check
        %p159 = pneg %p30
      $region18: #{hoi_residual_attention_block.20} parent=15 // pred_check_branch
        %161 = sbr.rel (%p159) target = $region20
      $region19: #{hoi_residual_attention_block.20} parent=15 // pred_region
        %p162 = scmp.lt.s32.totalorder %s10, 1
        %s163 = scalar_select %p162, %s10, 1
        %s164 = smul.addr %s163, 4
        %s165 = smul.addr %s164, 4
        %s166 = scalar_lea.vmem %s0, %s165
      $region20: #{hoi_residual_attention_block.20} parent=15 // pred_fallthru
        _
      // Predicated region
      $region21: #{hoi_residual_attention_block.20} parent=15 // pred_check
        %p167 = pneg %p56
      $region22: #{hoi_residual_attention_block.20} parent=15 // pred_check_branch
        %169 = sbr.rel (%p167) target = $region24
      $region23: #{hoi_residual_attention_block.20} parent=15 // pred_region
        %p170 = scmp.lt.s32.totalorder %s10, 1
        %s171 = scalar_select %p170, %s10, 1
        %s172 = smul.addr %s171, 4
        %s173 = smul.addr %s172, 4
        %s174 = scalar_lea.vmem %s1, %s173
      $region24: #{hoi_residual_attention_block.20} parent=15 // pred_fallthru
        _
      // Predicated region
      $region25: #{hoi_residual_attention_block.20} parent=15 // pred_check
        %p175 = pneg %p82
      $region26: #{hoi_residual_attention_block.20} parent=15 // pred_check_branch
        %177 = sbr.rel (%p175) target = $region28
      $region27: #{hoi_residual_attention_block.20} parent=15 // pred_region
        %p178 = scmp.lt.s32.totalorder %s10, 1
        %s179 = scalar_select %p178, %s10, 1
        %s180 = smul.addr %s179, 4
        %s181 = smul.addr %s180, 4
        %s182 = scalar_lea.vmem %s2, %s181
      $region28: #{hoi_residual_attention_block.20} parent=15 // pred_fallthru
        _
      // Predicated region
      $region29: #{hoi_residual_attention_block.20} parent=15 // pred_check
        %p183 = pneg %p108
      $region30: #{hoi_residual_attention_block.20} parent=15 // pred_check_branch
        %185 = sbr.rel (%p183) target = $region32
      $region31: #{hoi_residual_attention_block.20} parent=15 // pred_region
        %p186 = scmp.lt.s32.totalorder %s10, 1
        %s187 = scalar_select %p186, %s10, 1
        %s188 = smul.addr %s187, 8
        %s189 = scalar_lea.vmem %s3, %s188
      $region32: #{hoi_residual_attention_block.20} parent=15 // pred_fallthru
        _
    $region16: #{hoi_residual_attention_block.20} parent=5 // pred_fallthru
      _
    %p190 = scmp.le.s32.totalorder 1, %s10
    %p191 = scmp.lt.s32.totalorder %s10, 3
    %p192 = pnand %p190, %p191
    %p193 = pneg %p192
    // Predicated region
    $region33: #{hoi_residual_attention_block.20} parent=5 // pred_check
      _
    $region34: #{hoi_residual_attention_block.20} parent=5 // pred_check_branch
      %195 = sbr.rel (%p192) target = $region36
    $region35: #{hoi_residual_attention_block.20} parent=5 // pred_region
      %s196 = ssub.s32 %s10, 1
      %p197 = scmp.lt.s32.totalorder %s15, 1
      %s198 = scalar_select %p197, %s15, 1
      %s199 = smul.addr %s198, 4
      %s200 = smul.addr %s199, 4
      %s201 = scalar_lea.vmem %s0, %s200
      %p202 = pneg %p36
      %p203 = pneg %p33
      %p204 = scmp.lt.s32.totalorder %s15, 1
      %s205 = scalar_select %p204, %s15, 1
      %s206 = smul.addr %s205, 4
      %s207 = smul.addr %s206, 4
      %s208 = scalar_lea.vmem %s1, %s207
      %p209 = pneg %p62
      %p210 = pneg %p59
      %p211 = scmp.lt.s32.totalorder %s15, 1
      %s212 = scalar_select %p211, %s15, 1
      %s213 = smul.addr %s212, 4
      %s214 = smul.addr %s213, 4
      %s215 = scalar_lea.vmem %s2, %s214
      %p216 = pneg %p88
      %p217 = pneg %p85
      %p218 = scmp.lt.s32.totalorder %s15, 1
      %s219 = scalar_select %p218, %s15, 1
      %s220 = smul.addr %s219, 8
      %s221 = scalar_lea.vmem %s3, %s220
      %p222 = pneg %p114
      %p223 = pneg %p111
      %p224 = pneg %p140
      %p225 = pneg %p137
      %p226 = scmp.lt.s32.totalorder %s15, 1
      %s227 = scalar_select %p226, %s15, 1
      %s228 = smul.addr %s227, 4
      %s229 = smul.addr %s228, 4
      %s230 = scalar_lea.vmem %s4, %s229
      %p231 = scmp.lt.s32.totalorder %s15, 1
      %s232 = scalar_select %p231, %s15, 1
      %s233 = smul.addr %s232, 4
      %s234 = smul.addr %s233, 4
      %s235 = scalar_lea.vmem %s0, %s234
      %p236 = scmp.lt.s32.totalorder %s15, 1
      %s237 = scalar_select %p236, %s15, 1
      %s238 = smul.addr %s237, 4
      %s239 = smul.addr %s238, 4
      %s240 = scalar_lea.vmem %s1, %s239
      %p241 = scmp.lt.s32.totalorder %s15, 1
      %s242 = scalar_select %p241, %s15, 1
      %s243 = smul.addr %s242, 4
      %s244 = smul.addr %s243, 4
      %s245 = scalar_lea.vmem %s2, %s244
      %p246 = scmp.lt.s32.totalorder %s15, 1
      %s247 = scalar_select %p246, %s15, 1
      %s248 = smul.addr %s247, 8
      %s249 = scalar_lea.vmem %s3, %s248
      %p250 = scmp.lt.s32.totalorder %s15, 1
      %s251 = scalar_select %p250, %s15, 1
      %s252 = smul.addr %s251, 4
      %s253 = smul.addr %s252, 4
      %s254 = scalar_lea.vmem %s4, %s253
      %v256 = vld [vmem:[%s235] sm:$0x7]
      %v257 = vld [vmem:[%s235 + $0x4] sm:$0x7]
      %v258 = vld [vmem:[%s235 + $0x8] sm:$0x7]
      %v259 = vld [vmem:[%s235 + $0xc] sm:$0x7]
      %v260 = vld [vmem:[%s240] sm:$0x7]
      %v261 = vld [vmem:[%s240 + $0x4] sm:$0x7]
      %v262 = vld [vmem:[%s240 + $0x8] sm:$0x7]
      %v263 = vld [vmem:[%s240 + $0xc] sm:$0x7]
      %v264 = vld [vmem:[%s245] sm:$0x7]
      %v265 = vld [vmem:[%s245 + $0x4] sm:$0x7]
      %v266 = vld [vmem:[%s245 + $0x8] sm:$0x7]
      %v267 = vld [vmem:[%s245 + $0xc] sm:$0x7]
      %vm268 = vcmask 64512
      %v270 = vsel %vm268, %v256, 0
      %v273 = vsel %vm268, %v260, 0
      %275 = vmatprep.subr.bf16.mxu0 0
      %276 = vmatpush1.bf16.xpose.msra.mxu0 %v273
      %277 = vmatprep.subr.bf16.mxu0 0
      %278 = vmatpush1.bf16.xpose.msra.mxu0 0
      %279 = vmatprep.subr.bf16.mxu0 0
      %280 = vmatpush1.bf16.xpose.msra.mxu0 0
      %281 = vmatprep.subr.bf16.mxu0 0
      %282 = vmatpush1.bf16.xpose.msra.mxu0 0
      %283 = vmatprep.subr.bf16.mxu0 0
      %284 = vmatpush1.bf16.xpose.msra.mxu0 0
      %285 = vmatprep.subr.bf16.mxu0 0
      %286 = vmatpush1.bf16.xpose.msra.mxu0 0
      %287 = vmatprep.subr.bf16.mxu0 0
      %288 = vmatpush1.bf16.xpose.msra.mxu0 0
      %289 = vmatprep.subr.bf16.mxu0 0
      %290 = vmatpush1.bf16.xpose.msra.mxu0 0
      %291 = vmatprep.subr.bf16.mxu0 0
      %292 = vmatpush1.bf16.xpose.msra.mxu0 0
      %293 = vmatprep.subr.bf16.mxu0 0
      %294 = vmatpush1.bf16.xpose.msra.mxu0 0
      %295 = vmatprep.subr.bf16.mxu0 0
      %296 = vmatpush1.bf16.xpose.msra.mxu0 0
      %297 = vmatprep.subr.bf16.mxu0 0
      %298 = vmatpush1.bf16.xpose.msra.mxu0 0
      %299 = vmatprep.subr.bf16.mxu0 0
      %300 = vmatpush1.bf16.xpose.msra.mxu0 0
      %301 = vmatprep.subr.bf16.mxu0 0
      %302 = vmatpush1.bf16.xpose.msra.mxu0 0
      %303 = vmatprep.subr.bf16.mxu0 0
      %304 = vmatpush1.bf16.xpose.msra.mxu0 0
      %305 = vmatprep.subr.bf16.mxu0 0
      %306 = vmatpush1.bf16.xpose.msra.mxu0 0
      %307 = vmatprep.mubr.bf16.mxu0 0
      %308 = vmatmul.mubr.bf16.gmra.mrb[0].mxu0 %v270
      %v309 = vpop.f32.mrb[0].mxu0
      %v310 = vadd.f32 0.0, %v309
      %v311 = vpop.f32.mrb[0].mxu0
      %v312 = vpop.f32.mrb[0].mxu0
      %v313 = vpop.f32.mrb[0].mxu0
      %314 = vdwg.mxu0
      %v316 = vsel %vm268, %v257, 0
      %v319 = vsel %vm268, %v261, 0
      %321 = vmatprep.subr.bf16.mxu0 0
      %322 = vmatpush1.bf16.xpose.msra.mxu0 %v319
      %323 = vmatprep.subr.bf16.mxu0 0
      %324 = vmatpush1.bf16.xpose.msra.mxu0 0
      %325 = vmatprep.subr.bf16.mxu0 0
      %326 = vmatpush1.bf16.xpose.msra.mxu0 0
      %327 = vmatprep.subr.bf16.mxu0 0
      %328 = vmatpush1.bf16.xpose.msra.mxu0 0
      %329 = vmatprep.subr.bf16.mxu0 0
      %330 = vmatpush1.bf16.xpose.msra.mxu0 0
      %331 = vmatprep.subr.bf16.mxu0 0
      %332 = vmatpush1.bf16.xpose.msra.mxu0 0
      %333 = vmatprep.subr.bf16.mxu0 0
      %334 = vmatpush1.bf16.xpose.msra.mxu0 0
      %335 = vmatprep.subr.bf16.mxu0 0
      %336 = vmatpush1.bf16.xpose.msra.mxu0 0
      %337 = vmatprep.subr.bf16.mxu0 0
      %338 = vmatpush1.bf16.xpose.msra.mxu0 0
      %339 = vmatprep.subr.bf16.mxu0 0
      %340 = vmatpush1.bf16.xpose.msra.mxu0 0
      %341 = vmatprep.subr.bf16.mxu0 0
      %342 = vmatpush1.bf16.xpose.msra.mxu0 0
      %343 = vmatprep.subr.bf16.mxu0 0
      %344 = vmatpush1.bf16.xpose.msra.mxu0 0
      %345 = vmatprep.subr.bf16.mxu0 0
      %346 = vmatpush1.bf16.xpose.msra.mxu0 0
      %347 = vmatprep.subr.bf16.mxu0 0
      %348 = vmatpush1.bf16.xpose.msra.mxu0 0
      %349 = vmatprep.subr.bf16.mxu0 0
      %350 = vmatpush1.bf16.xpose.msra.mxu0 0
      %351 = vmatprep.subr.bf16.mxu0 0
      %352 = vmatpush1.bf16.xpose.msra.mxu0 0
      %353 = vmatprep.mubr.bf16.mxu0 0
      %354 = vmatmul.mubr.bf16.gmra.mrb[0].mxu0 %v316
      %v355 = vpop.f32.mrb[0].mxu0
      %v356 = vadd.f32 0.0, %v355
      %v357 = vpop.f32.mrb[0].mxu0
      %v358 = vpop.f32.mrb[0].mxu0
      %v359 = vpop.f32.mrb[0].mxu0
      %360 = vdwg.mxu0
      %v362 = vsel %vm268, %v258, 0
      %v365 = vsel %vm268, %v262, 0
      %367 = vmatprep.subr.bf16.mxu0 0
      %368 = vmatpush1.bf16.xpose.msra.mxu0 %v365
      %369 = vmatprep.subr.bf16.mxu0 0
      %370 = vmatpush1.bf16.xpose.msra.mxu0 0
      %371 = vmatprep.subr.bf16.mxu0 0
      %372 = vmatpush1.bf16.xpose.msra.mxu0 0
      %373 = vmatprep.subr.bf16.mxu0 0
      %374 = vmatpush1.bf16.xpose.msra.mxu0 0
      %375 = vmatprep.subr.bf16.mxu0 0
      %376 = vmatpush1.bf16.xpose.msra.mxu0 0
      %377 = vmatprep.subr.bf16.mxu0 0
      %378 = vmatpush1.bf16.xpose.msra.mxu0 0
      %379 = vmatprep.subr.bf16.mxu0 0
      %380 = vmatpush1.bf16.xpose.msra.mxu0 0
      %381 = vmatprep.subr.bf16.mxu0 0
      %382 = vmatpush1.bf16.xpose.msra.mxu0 0
      %383 = vmatprep.subr.bf16.mxu0 0
      %384 = vmatpush1.bf16.xpose.msra.mxu0 0
      %385 = vmatprep.subr.bf16.mxu0 0
      %386 = vmatpush1.bf16.xpose.msra.mxu0 0
      %387 = vmatprep.subr.bf16.mxu0 0
      %388 = vmatpush1.bf16.xpose.msra.mxu0 0
      %389 = vmatprep.subr.bf16.mxu0 0
      %390 = vmatpush1.bf16.xpose.msra.mxu0 0
      %391 = vmatprep.subr.bf16.mxu0 0
      %392 = vmatpush1.bf16.xpose.msra.mxu0 0
      %393 = vmatprep.subr.bf16.mxu0 0
      %394 = vmatpush1.bf16.xpose.msra.mxu0 0
      %395 = vmatprep.subr.bf16.mxu0 0
      %396 = vmatpush1.bf16.xpose.msra.mxu0 0
      %397 = vmatprep.subr.bf16.mxu0 0
      %398 = vmatpush1.bf16.xpose.msra.mxu0 0
      %399 = vmatprep.mubr.bf16.mxu0 0
      %400 = vmatmul.mubr.bf16.gmra.mrb[0].mxu0 %v362
      %v401 = vpop.f32.mrb[0].mxu0
      %v402 = vadd.f32 0.0, %v401
      %v403 = vpop.f32.mrb[0].mxu0
      %v404 = vpop.f32.mrb[0].mxu0
      %v405 = vpop.f32.mrb[0].mxu0
      %406 = vdwg.mxu0
      %v408 = vsel %vm268, %v259, 0
      %v411 = vsel %vm268, %v263, 0
      %413 = vmatprep.subr.bf16.mxu0 0
      %414 = vmatpush1.bf16.xpose.msra.mxu0 %v411
      %415 = vmatprep.subr.bf16.mxu0 0
      %416 = vmatpush1.bf16.xpose.msra.mxu0 0
      %417 = vmatprep.subr.bf16.mxu0 0
      %418 = vmatpush1.bf16.xpose.msra.mxu0 0
      %419 = vmatprep.subr.bf16.mxu0 0
      %420 = vmatpush1.bf16.xpose.msra.mxu0 0
      %421 = vmatprep.subr.bf16.mxu0 0
      %422 = vmatpush1.bf16.xpose.msra.mxu0 0
      %423 = vmatprep.subr.bf16.mxu0 0
      %424 = vmatpush1.bf16.xpose.msra.mxu0 0
      %425 = vmatprep.subr.bf16.mxu0 0
      %426 = vmatpush1.bf16.xpose.msra.mxu0 0
      %427 = vmatprep.subr.bf16.mxu0 0
      %428 = vmatpush1.bf16.xpose.msra.mxu0 0
      %429 = vmatprep.subr.bf16.mxu0 0
      %430 = vmatpush1.bf16.xpose.msra.mxu0 0
      %431 = vmatprep.subr.bf16.mxu0 0
      %432 = vmatpush1.bf16.xpose.msra.mxu0 0
      %433 = vmatprep.subr.bf16.mxu0 0
      %434 = vmatpush1.bf16.xpose.msra.mxu0 0
      %435 = vmatprep.subr.bf16.mxu0 0
      %436 = vmatpush1.bf16.xpose.msra.mxu0 0
      %437 = vmatprep.subr.bf16.mxu0 0
      %438 = vmatpush1.bf16.xpose.msra.mxu0 0
      %439 = vmatprep.subr.bf16.mxu0 0
      %440 = vmatpush1.bf16.xpose.msra.mxu0 0
      %441 = vmatprep.subr.bf16.mxu0 0
      %442 = vmatpush1.bf16.xpose.msra.mxu0 0
      %443 = vmatprep.subr.bf16.mxu0 0
      %444 = vmatpush1.bf16.xpose.msra.mxu0 0
      %445 = vmatprep.mubr.bf16.mxu0 0
      %446 = vmatmul.mubr.bf16.gmra.mrb[0].mxu0 %v408
      %v447 = vpop.f32.mrb[0].mxu0
      %v448 = vadd.f32 0.0, %v447
      %v449 = vpop.f32.mrb[0].mxu0
      %v450 = vpop.f32.mrb[0].mxu0
      %v451 = vpop.f32.mrb[0].mxu0
      %452 = vdwg.mxu0
      %v453 = vmul.f32 %v310, 0.35355338
      %v454 = vmul.f32 %v356, 0.35355338
      %v455 = vmul.f32 %v402, 0.35355338
      %v456 = vmul.f32 %v448, 0.35355338
      %v457 = vld [vmem:[%s249] sm:$0x1f]
      %v458 = vadd.f32 %v453, %v457
      %v459 = vadd.f32 %v454, %v457
      %v460 = vadd.f32 %v455, %v457
      %v461 = vadd.f32 %v456, %v457
      %vm462 = vcmask 36864
      %v463 = vsel %vm462, %v458, -inf
      %464 = vmax.xlane.f32.xlu0 %v463
      %v465 = vpop.xlane.xlu0 %464
      %v466 = vsel %vm462, %v459, -inf
      %467 = vmax.xlane.f32.xlu0 %v466
      %v468 = vpop.xlane.xlu0 %467
      %v469 = vsel %vm462, %v460, -inf
      %470 = vmax.xlane.f32.xlu0 %v469
      %v471 = vpop.xlane.xlu0 %470
      %v472 = vsel %vm462, %v461, -inf
      %473 = vmax.xlane.f32.xlu0 %v472
      %v474 = vpop.xlane.xlu0 %473
      %v475 = vsub.f32 %v458, %v465
      %v476 = vsub.f32 %v459, %v468
      %v477 = vsub.f32 %v460, %v471
      %v478 = vsub.f32 %v461, %v474
      %v479 = vmul.f32 %v475, 1.442695
      %v480 = vpow.pop %v479
      %v481 = vmul.f32 %v476, 1.442695
      %v482 = vpow.pop %v481
      %v483 = vmul.f32 %v477, 1.442695
      %v484 = vpow.pop %v483
      %v485 = vmul.f32 %v478, 1.442695
      %v486 = vpow.pop %v485
      %v487 = vsel %vm462, %v480, 0.0
      %488 = vadd.xlane.f32.xlu0 %v487
      %v489 = vpop.xlane.xlu0 %488
      %v490 = vsel %vm462, %v482, 0.0
      %491 = vadd.xlane.f32.xlu0 %v490
      %v492 = vpop.xlane.xlu0 %491
      %v493 = vsel %vm462, %v484, 0.0
      %494 = vadd.xlane.f32.xlu0 %v493
      %v495 = vpop.xlane.xlu0 %494
      %v496 = vsel %vm462, %v486, 0.0
      %497 = vadd.xlane.f32.xlu0 %v496
      %v498 = vpop.xlane.xlu0 %497
      %v499 = vrcp.pop %v489
      %v500 = vrcp.pop %v492
      %v501 = vrcp.pop %v495
      %v502 = vrcp.pop %v498
      %v503 = vmul.f32 %v480, %v499
      %v504 = vmul.f32 %v482, %v500
      %v505 = vmul.f32 %v484, %v501
      %v506 = vmul.f32 %v486, %v502
      %v507 = vpack.c.bf16 %v503, %v503
      %v508 = vpack.c.bf16 %v504, %v504
      %v509 = vpack.c.bf16 %v505, %v505
      %v510 = vpack.c.bf16 %v506, %v506
      %vm511 = vcmask 39936
      %v513 = vsel %vm511, %v507, 0
      %vm515 = vcmask 1041408
      %vm516 = vcmask 1042432
      %v517 = vsel %vm515, 4294967295, 65535
      %v518 = vsel %vm516, %v517, 0
      %v520 = vand.u32 %v264, %v518
      %522 = vmatprep.subr.bf16.mxu0 0
      %523 = vmatpush1.bf16.msra.mxu0 %v520
      %524 = vmatprep.subr.bf16.mxu0 0
      %525 = vmatpush1.bf16.msra.mxu0 0
      %526 = vmatprep.subr.bf16.mxu0 0
      %527 = vmatpush1.bf16.msra.mxu0 0
      %528 = vmatprep.subr.bf16.mxu0 0
      %529 = vmatpush1.bf16.msra.mxu0 0
      %530 = vmatprep.subr.bf16.mxu0 0
      %531 = vmatpush1.bf16.msra.mxu0 0
      %532 = vmatprep.subr.bf16.mxu0 0
      %533 = vmatpush1.bf16.msra.mxu0 0
      %534 = vmatprep.subr.bf16.mxu0 0
      %535 = vmatpush1.bf16.msra.mxu0 0
      %536 = vmatprep.subr.bf16.mxu0 0
      %537 = vmatpush1.bf16.msra.mxu0 0
      %538 = vmatprep.subr.bf16.mxu0 0
      %539 = vmatpush1.bf16.msra.mxu0 0
      %540 = vmatprep.subr.bf16.mxu0 0
      %541 = vmatpush1.bf16.msra.mxu0 0
      %542 = vmatprep.subr.bf16.mxu0 0
      %543 = vmatpush1.bf16.msra.mxu0 0
      %544 = vmatprep.subr.bf16.mxu0 0
      %545 = vmatpush1.bf16.msra.mxu0 0
      %546 = vmatprep.subr.bf16.mxu0 0
      %547 = vmatpush1.bf16.msra.mxu0 0
      %548 = vmatprep.subr.bf16.mxu0 0
      %549 = vmatpush1.bf16.msra.mxu0 0
      %550 = vmatprep.subr.bf16.mxu0 0
      %551 = vmatpush1.bf16.msra.mxu0 0
      %552 = vmatprep.subr.bf16.mxu0 0
      %553 = vmatpush1.bf16.msra.mxu0 0
      %554 = vmatprep.mubr.bf16.mxu0 0
      %555 = vmatmul.mubr.bf16.gmra.mrb[0].mxu0 %v513
      %v556 = vpop.f32.mrb[0].mxu0
      %v557 = vadd.f32 0.0, %v556
      %v558 = vpop.f32.mrb[0].mxu0
      %v559 = vpop.f32.mrb[0].mxu0
      %v560 = vpop.f32.mrb[0].mxu0
      %561 = vdwg.mxu0
      %v563 = vsel %vm511, %v508, 0
      %v566 = vand.u32 %v265, %v518
      %568 = vmatprep.subr.bf16.mxu0 0
      %569 = vmatpush1.bf16.msra.mxu0 %v566
      %570 = vmatprep.subr.bf16.mxu0 0
      %571 = vmatpush1.bf16.msra.mxu0 0
      %572 = vmatprep.subr.bf16.mxu0 0
      %573 = vmatpush1.bf16.msra.mxu0 0
      %574 = vmatprep.subr.bf16.mxu0 0
      %575 = vmatpush1.bf16.msra.mxu0 0
      %576 = vmatprep.subr.bf16.mxu0 0
      %577 = vmatpush1.bf16.msra.mxu0 0
      %578 = vmatprep.subr.bf16.mxu0 0
      %579 = vmatpush1.bf16.msra.mxu0 0
      %580 = vmatprep.subr.bf16.mxu0 0
      %581 = vmatpush1.bf16.msra.mxu0 0
      %582 = vmatprep.subr.bf16.mxu0 0
      %583 = vmatpush1.bf16.msra.mxu0 0
      %584 = vmatprep.subr.bf16.mxu0 0
      %585 = vmatpush1.bf16.msra.mxu0 0
      %586 = vmatprep.subr.bf16.mxu0 0
      %587 = vmatpush1.bf16.msra.mxu0 0
      %588 = vmatprep.subr.bf16.mxu0 0
      %589 = vmatpush1.bf16.msra.mxu0 0
      %590 = vmatprep.subr.bf16.mxu0 0
      %591 = vmatpush1.bf16.msra.mxu0 0
      %592 = vmatprep.subr.bf16.mxu0 0
      %593 = vmatpush1.bf16.msra.mxu0 0
      %594 = vmatprep.subr.bf16.mxu0 0
      %595 = vmatpush1.bf16.msra.mxu0 0
      %596 = vmatprep.subr.bf16.mxu0 0
      %597 = vmatpush1.bf16.msra.mxu0 0
      %598 = vmatprep.subr.bf16.mxu0 0
      %599 = vmatpush1.bf16.msra.mxu0 0
      %600 = vmatprep.mubr.bf16.mxu0 0
      %601 = vmatmul.mubr.bf16.gmra.mrb[0].mxu0 %v563
      %v602 = vpop.f32.mrb[0].mxu0
      %v603 = vadd.f32 0.0, %v602
      %v604 = vpop.f32.mrb[0].mxu0
      %v605 = vpop.f32.mrb[0].mxu0
      %v606 = vpop.f32.mrb[0].mxu0
      %607 = vdwg.mxu0
      %v609 = vsel %vm511, %v509, 0
      %v612 = vand.u32 %v266, %v518
      %614 = vmatprep.subr.bf16.mxu0 0
      %615 = vmatpush1.bf16.msra.mxu0 %v612
      %616 = vmatprep.subr.bf16.mxu0 0
      %617 = vmatpush1.bf16.msra.mxu0 0
      %618 = vmatprep.subr.bf16.mxu0 0
      %619 = vmatpush1.bf16.msra.mxu0 0
      %620 = vmatprep.subr.bf16.mxu0 0
      %621 = vmatpush1.bf16.msra.mxu0 0
      %622 = vmatprep.subr.bf16.mxu0 0
      %623 = vmatpush1.bf16.msra.mxu0 0
      %624 = vmatprep.subr.bf16.mxu0 0
      %625 = vmatpush1.bf16.msra.mxu0 0
      %626 = vmatprep.subr.bf16.mxu0 0
      %627 = vmatpush1.bf16.msra.mxu0 0
      %628 = vmatprep.subr.bf16.mxu0 0
      %629 = vmatpush1.bf16.msra.mxu0 0
      %630 = vmatprep.subr.bf16.mxu0 0
      %631 = vmatpush1.bf16.msra.mxu0 0
      %632 = vmatprep.subr.bf16.mxu0 0
      %633 = vmatpush1.bf16.msra.mxu0 0
      %634 = vmatprep.subr.bf16.mxu0 0
      %635 = vmatpush1.bf16.msra.mxu0 0
      %636 = vmatprep.subr.bf16.mxu0 0
      %637 = vmatpush1.bf16.msra.mxu0 0
      %638 = vmatprep.subr.bf16.mxu0 0
      %639 = vmatpush1.bf16.msra.mxu0 0
      %640 = vmatprep.subr.bf16.mxu0 0
      %641 = vmatpush1.bf16.msra.mxu0 0
      %642 = vmatprep.subr.bf16.mxu0 0
      %643 = vmatpush1.bf16.msra.mxu0 0
      %644 = vmatprep.subr.bf16.mxu0 0
      %645 = vmatpush1.bf16.msra.mxu0 0
      %646 = vmatprep.mubr.bf16.mxu0 0
      %647 = vmatmul.mubr.bf16.gmra.mrb[0].mxu0 %v609
      %v648 = vpop.f32.mrb[0].mxu0
      %v649 = vadd.f32 0.0, %v648
      %v650 = vpop.f32.mrb[0].mxu0
      %v651 = vpop.f32.mrb[0].mxu0
      %v652 = vpop.f32.mrb[0].mxu0
      %653 = vdwg.mxu0
      %v655 = vsel %vm511, %v510, 0
      %v658 = vand.u32 %v267, %v518
      %660 = vmatprep.subr.bf16.mxu0 0
      %661 = vmatpush1.bf16.msra.mxu0 %v658
      %662 = vmatprep.subr.bf16.mxu0 0
      %663 = vmatpush1.bf16.msra.mxu0 0
      %664 = vmatprep.subr.bf16.mxu0 0
      %665 = vmatpush1.bf16.msra.mxu0 0
      %666 = vmatprep.subr.bf16.mxu0 0
      %667 = vmatpush1.bf16.msra.mxu0 0
      %668 = vmatprep.subr.bf16.mxu0 0
      %669 = vmatpush1.bf16.msra.mxu0 0
      %670 = vmatprep.subr.bf16.mxu0 0
      %671 = vmatpush1.bf16.msra.mxu0 0
      %672 = vmatprep.subr.bf16.mxu0 0
      %673 = vmatpush1.bf16.msra.mxu0 0
      %674 = vmatprep.subr.bf16.mxu0 0
      %675 = vmatpush1.bf16.msra.mxu0 0
      %676 = vmatprep.subr.bf16.mxu0 0
      %677 = vmatpush1.bf16.msra.mxu0 0
      %678 = vmatprep.subr.bf16.mxu0 0
      %679 = vmatpush1.bf16.msra.mxu0 0
      %680 = vmatprep.subr.bf16.mxu0 0
      %681 = vmatpush1.bf16.msra.mxu0 0
      %682 = vmatprep.subr.bf16.mxu0 0
      %683 = vmatpush1.bf16.msra.mxu0 0
      %684 = vmatprep.subr.bf16.mxu0 0
      %685 = vmatpush1.bf16.msra.mxu0 0
      %686 = vmatprep.subr.bf16.mxu0 0
      %687 = vmatpush1.bf16.msra.mxu0 0
      %688 = vmatprep.subr.bf16.mxu0 0
      %689 = vmatpush1.bf16.msra.mxu0 0
      %690 = vmatprep.subr.bf16.mxu0 0
      %691 = vmatpush1.bf16.msra.mxu0 0
      %692 = vmatprep.mubr.bf16.mxu0 0
      %693 = vmatmul.mubr.bf16.gmra.mrb[0].mxu0 %v655
      %v694 = vpop.f32.mrb[0].mxu0
      %v695 = vadd.f32 0.0, %v694
      %v696 = vpop.f32.mrb[0].mxu0
      %v697 = vpop.f32.mrb[0].mxu0
      %v698 = vpop.f32.mrb[0].mxu0
      %699 = vdwg.mxu0
      %v700 = vpack.c.bf16 %v557, %v557
      %v701 = vpack.c.bf16 %v603, %v603
      %v702 = vpack.c.bf16 %v649, %v649
      %v703 = vpack.c.bf16 %v695, %v695
      %vm704 = vcmask 59392
      %vm705 = vsmask.f32 2304
      %vm706 = vmand %vm704, %vm705
      %v707 = vld [vmem:[%s254] sm:$0x7]
      %v708 = vsel %vm706, %v700, %v707
      %709 = vst [vmem:[%s254] sm:$0x7] %v708
      %v710 = vld [vmem:[%s254 + $0x4] sm:$0x7]
      %v711 = vsel %vm706, %v701, %v710
      %712 = vst [vmem:[%s254 + $0x4] sm:$0x7] %v711
      %v713 = vld [vmem:[%s254 + $0x8] sm:$0x7]
      %v714 = vsel %vm706, %v702, %v713
      %715 = vst [vmem:[%s254 + $0x8] sm:$0x7] %v714
      %v716 = vld [vmem:[%s254 + $0xc] sm:$0x7]
      %v717 = vsel %vm706, %v703, %v716
      %718 = vst [vmem:[%s254 + $0xc] sm:$0x7] %v717
      %p719 = scmp.lt.s32.totalorder %s15, 1
      %s720 = scalar_select %p719, %s15, 1
      %s721 = smul.addr %s720, 4
      %s722 = smul.addr %s721, 4
      %s723 = scalar_lea.vmem %s4, %s722
      // Predicated region
      $region37: #{hoi_residual_attention_block.20} parent=35 // pred_check
        %p724 = pneg %p137
      $region38: #{hoi_residual_attention_block.20} parent=35 // pred_check_branch
        %726 = sbr.rel (%p724) target = $region40
      $region39: #{hoi_residual_attention_block.20} parent=35 // pred_region
        _
      $region40: #{hoi_residual_attention_block.20} parent=35 // pred_fallthru
        _
    $region36: #{hoi_residual_attention_block.20} parent=5 // pred_fallthru
      _
    %p727 = scmp.le.s32.totalorder 2, %s10
    // Predicated region
    $region41: #{hoi_residual_attention_block.20} parent=5 // pred_check
      %p728 = pneg %p727
    $region42: #{hoi_residual_attention_block.20} parent=5 // pred_check_branch
      %730 = sbr.rel (%p728) target = $region44
    $region43: #{hoi_residual_attention_block.20} parent=5 // pred_region
      %s731 = ssub.s32 %s10, 2
      // Predicated region
      $region45: #{hoi_residual_attention_block.20} parent=43 // pred_check
        %p732 = pneg %p143
      $region46: #{hoi_residual_attention_block.20} parent=43 // pred_check_branch
        %734 = sbr.rel (%p732) target = $region48
      $region47: #{hoi_residual_attention_block.20} parent=43 // pred_region
        %p735 = scmp.lt.s32.totalorder %s16, 1
        %s736 = scalar_select %p735, %s16, 1
        %s737 = smul.addr %s736, 4
        %s738 = smul.addr %s737, 4
        %s739 = scalar_lea.vmem %s4, %s738
      $region48: #{hoi_residual_attention_block.20} parent=43 // pred_fallthru
        _
    $region44: #{hoi_residual_attention_block.20} parent=5 // pred_fallthru
      _
  $region6: #{hoi_residual_attention_block.20} parent=0 // loop_footer
    %s14 = sadd.s32 1, %s10
  $region7: #{hoi_residual_attention_block.20} parent=0 // loop_footer_branch
    %9 = sbr.rel target = $region3
  $region8: #{hoi_residual_attention_block.20} parent=0 // loop_exit
    _

</llo_original>
